<compile_context>
chip_gen: v6e
topology: v6e:2x2x1
jax: 0.10.0
libtpu: 0.0.40
codegen_flags: <defaults>
</compile_context>

<pallas_src>
import jax
import jax.numpy as jnp
from jax import lax
from jax.experimental import pallas as pl
from jax.experimental.pallas import tpu as pltpu

POSE_DIM = 7          # quaternion (4) + translation (3), as used by the forward
FEAT_DIM = 2048
HID_DIM = 512
OUT_PAD = 128         # lane-dense output width (>= POSE_DIM + 1)
LRELU_SLOPE = 0.01    # nn.LeakyReLU default
LN_EPS = 1e-5         # nn.LayerNorm default
NORM_EPS = 1e-12      # F.normalize default


# ---------------------------------------------------------------------------
# Kernel: pose_head MLP + quaternion normalization (the matmul hot path)
# ---------------------------------------------------------------------------
def _pose_head_kernel(x_ref, w1_ref, b1_ref, g_ref, beta_ref, w2_ref, b2_ref,
                      out_ref):
    # Dropout(p=0.5) is the identity at inference time (eval-only kernel).
    # bf16 x bf16 -> f32 accumulation on the MXU.
    h = jnp.dot(x_ref[...], w1_ref[...], preferred_element_type=jnp.float32)
    h = h + b1_ref[...]                                        # (tile_n, 512) f32
    # LayerNorm(512), biased variance (PyTorch default), math in f32.
    mu = jnp.mean(h, axis=-1, keepdims=True)
    var = jnp.mean((h - mu) ** 2, axis=-1, keepdims=True)
    h = (h - mu) * lax.rsqrt(var + LN_EPS) * g_ref[...] + beta_ref[...]
    # LeakyReLU
    h = jnp.where(h >= 0, h, LRELU_SLOPE * h)
    # Linear(512 -> OUT_PAD); only the first POSE_DIM+1 lanes are real,
    # the rest of W2/b2 is zero-padding for a lane-dense store.
    y = jnp.dot(h, w2_ref[...], preferred_element_type=jnp.float32) + b2_ref[...]
    # forward(): tmp[:, :4] = F.normalize(poses_cam[:, :4]); tmp[:, 4:] = poses_cam[:, 4:]
    lane = lax.broadcasted_iota(jnp.int32, y.shape, 1)
    qmask = lane < 4
    qsq = jnp.sum(jnp.where(qmask, y * y, 0.0), axis=-1, keepdims=True)
    # max(||v||, eps) == sqrt(max(||v||^2, eps^2)); use EUP rsqrt + VPU mul.
    inv = lax.rsqrt(jnp.maximum(qsq, NORM_EPS * NORM_EPS))
    out_ref[...] = jnp.where(qmask, y * inv, y)                # (tile_n, 128)


def pose_head(pose_feat, params):
    n = pose_feat.shape[0]
    # Accept f32 or bf16 pose_feat; ship bf16 to halve the activation DMA.
    x = pose_feat.astype(jnp.bfloat16)
    # Row tile: full N for small batches, 256 rows otherwise (fits the default
    # scoped-VMEM budget on v5e/v6e/v7x with bf16 weights + double buffers).
    tile_n = n if n <= 256 else 256
    grid = (pl.cdiv(n, tile_n),)

    out = pl.pallas_call(
        _pose_head_kernel,
        out_shape=jax.ShapeDtypeStruct((n, OUT_PAD), jnp.float32),
        grid_spec=pltpu.PrefetchScalarGridSpec(
            num_scalar_prefetch=0,
            grid=grid,
            in_specs=[
                pl.BlockSpec((tile_n, FEAT_DIM), lambda i: (i, 0)),   # x: row-tiled
                pl.BlockSpec((FEAT_DIM, HID_DIM), lambda i: (0, 0)),  # W1: resident
                pl.BlockSpec((1, HID_DIM), lambda i: (0, 0)),         # b1
                pl.BlockSpec((1, HID_DIM), lambda i: (0, 0)),         # gamma
                pl.BlockSpec((1, HID_DIM), lambda i: (0, 0)),         # beta
                pl.BlockSpec((HID_DIM, OUT_PAD), lambda i: (0, 0)),   # W2 (padded)
                pl.BlockSpec((1, OUT_PAD), lambda i: (0, 0)),         # b2 (padded)
            ],
            out_specs=pl.BlockSpec((tile_n, OUT_PAD), lambda i: (i, 0)),
        ),
        compiler_params=pltpu.CompilerParams(
            dimension_semantics=("parallel",)),   # shard rows across v7x's 2 TCs
    )(x, params["w1"], params["b1"], params["gamma"], params["beta"],
      params["w2"], params["b2"])

    poses_cam = out[:, :POSE_DIM]
    conf = out[:, POSE_DIM:POSE_DIM + 1]
    return poses_cam, conf


# ---------------------------------------------------------------------------
# sequence_from_distance — tiny reduction + sort; plain JAX (no Pallas call:
# the (b,t,3) payload is ~100 B, launch/DMA overhead would dominate).
# ---------------------------------------------------------------------------
def sequence_from_distance(trans):
    canon = trans[:, 0:1, :]                                   # trans[:, 0:1, :]
    dist = jnp.sum((trans - canon) ** 2, axis=-1)              # (b, t)
    # torch.sort(dist, descending=False) -> ascending argsort.
    return jnp.argsort(dist, axis=-1)


# ---------------------------------------------------------------------------
# chose_selected — per-batch gather along the view axis (indexing glue)
# ---------------------------------------------------------------------------
def chose_selected(tensor, idxs):
    assert tensor.shape[0] == idxs.shape[0]
    idx = idxs.reshape(idxs.shape + (1,) * (tensor.ndim - 2))
    return jnp.take_along_axis(tensor, idx, axis=1)


# ---------------------------------------------------------------------------
# Deterministic parameter init (xavier_uniform weights, zeros biases)
# ---------------------------------------------------------------------------
def init_params(key):
    k1, k2 = jax.random.split(key)

    def xavier(k, fan_in, fan_out):
        lim = (6.0 / (fan_in + fan_out)) ** 0.5
        return jax.random.uniform(k, (fan_in, fan_out), jnp.float32, -lim, lim)

    w2 = xavier(k2, HID_DIM, POSE_DIM + 1)
    w2 = jnp.pad(w2, ((0, 0), (0, OUT_PAD - (POSE_DIM + 1))))  # lane-dense output

    return {
        "w1": xavier(k1, FEAT_DIM, HID_DIM).astype(jnp.bfloat16),  # bf16 weight slab
        "b1": jnp.zeros((1, HID_DIM), jnp.float32),
        "gamma": jnp.ones((1, HID_DIM), jnp.float32),
        "beta": jnp.zeros((1, HID_DIM), jnp.float32),
        "w2": w2,
        "b2": jnp.zeros((1, OUT_PAD), jnp.float32),
    }


if __name__ == "__main__":
    key = jax.random.PRNGKey(0)
    kp, kf, kt, kv = jax.random.split(key, 4)

    b, t = 2, 5                       # FORGE uses the first 5 views
    C, D, H, W = 4, 4, 4, 4           # small voxel feature volume
    n = b * (t - 1)                   # pose head sees relative poses for t-1 views

    params = init_params(kp)

    # pose_feat = cat([pose_feat_3d, pose_feat_2d], dim=-1) -> (b*(t-1), 2048)
    pose_feat = jax.random.normal(kf, (n, FEAT_DIM), jnp.float32)
    # camPoses_cv2[:, :, :3, 3] translations -> (b, t, 3)
    trans = jax.random.normal(kt, (b, t, 3), jnp.float32)
    # rotated voxel features -> (b, t, C, D, H, W)
    features_transformed = jax.random.normal(kv, (b, t, C, D, H, W), jnp.float32)

    poses_cam, conf = pose_head(pose_feat, params)
    idxs = sequence_from_distance(trans)
    feats_selected = chose_selected(features_transformed, idxs)

    jax.block_until_ready((poses_cam, conf, idxs, feats_selected))

    assert poses_cam.shape == (n, POSE_DIM)
    assert conf.shape == (n, 1)
    assert idxs.shape == (b, t)
    assert feats_selected.shape == (b, t, C, D, H, W)
    print("KERNEL_OK")
</pallas_src>

<mosaic_0001>
module attributes {stable_mosaic.version = 11 : i64} {
  func.func @_pose_head_kernel(%arg0: i32, %arg1: memref<8x2048xbf16, #tpu.memory_space<vmem>>, %arg2: memref<2048x512xbf16, #tpu.memory_space<vmem>>, %arg3: memref<1x512xf32, #tpu.memory_space<vmem>>, %arg4: memref<1x512xf32, #tpu.memory_space<vmem>>, %arg5: memref<1x512xf32, #tpu.memory_space<vmem>>, %arg6: memref<512x128xf32, #tpu.memory_space<vmem>>, %arg7: memref<1x128xf32, #tpu.memory_space<vmem>>, %arg8: memref<8x128xf32, #tpu.memory_space<vmem>>) attributes {dimension_semantics = [#tpu.dimension_semantics<parallel>], iteration_bounds = array<i64: 1>, scalar_prefetch = 0 : i64, scratch_operands = 0 : i64, tpu.core_type = #tpu.core_type<tc>, window_params = [{transform_indices = @transform_0, window_bounds = array<i64: 8, 2048>}, {pipeline_mode = #tpu.pipeline_mode<synchronous>, transform_indices = @transform_1, window_bounds = array<i64: 2048, 512>}, {pipeline_mode = #tpu.pipeline_mode<synchronous>, transform_indices = @transform_2, window_bounds = array<i64: 1, 512>}, {pipeline_mode = #tpu.pipeline_mode<synchronous>, transform_indices = @transform_3, window_bounds = array<i64: 1, 512>}, {pipeline_mode = #tpu.pipeline_mode<synchronous>, transform_indices = @transform_4, window_bounds = array<i64: 1, 512>}, {pipeline_mode = #tpu.pipeline_mode<synchronous>, transform_indices = @transform_5, window_bounds = array<i64: 512, 128>}, {pipeline_mode = #tpu.pipeline_mode<synchronous>, transform_indices = @transform_6, window_bounds = array<i64: 1, 128>}, {transform_indices = @transform_7, window_bounds = array<i64: 8, 128>}]} {
    %c0 = arith.constant 0 : index
    %c0_0 = arith.constant 0 : index
    %0 = vector.load %arg1[%c0, %c0_0] : memref<8x2048xbf16, #tpu.memory_space<vmem>>, vector<8x2048xbf16>
    %c0_1 = arith.constant 0 : index
    %c0_2 = arith.constant 0 : index
    %1 = vector.load %arg2[%c0_1, %c0_2] : memref<2048x512xbf16, #tpu.memory_space<vmem>>, vector<2048x512xbf16>
    %cst = arith.constant dense<0.000000e+00> : vector<8x512xf32>
    %2 = tpu.matmul %0, %1, %cst {dimension_numbers = #tpu.dot_dimension_numbers<[1], [0], [0], [1], [0, 0, 1, 1], [], []>} : vector<8x2048xbf16>, vector<2048x512xbf16>, vector<8x512xf32> -> vector<8x512xf32>
    %c0_3 = arith.constant 0 : index
    %c0_4 = arith.constant 0 : index
    %3 = vector.load %arg3[%c0_3, %c0_4] : memref<1x512xf32, #tpu.memory_space<vmem>>, vector<1x512xf32>
    %4 = vector.broadcast %3 : vector<1x512xf32> to vector<8x512xf32>
    %5 = arith.addf %2, %4 : vector<8x512xf32>
    %cst_5 = arith.constant dense<0.000000e+00> : vector<8xf32>
    %6 = vector.multi_reduction <add>, %5, %cst_5 [1] : vector<8x512xf32> to vector<8xf32>
    %7 = vector.shape_cast %6 : vector<8xf32> to vector<8x1xf32>
    %cst_6 = arith.constant 5.120000e+02 : f32
    %8 = vector.broadcast %cst_6 : f32 to vector<8x1xf32>
    %9 = arith.divf %7, %8 : vector<8x1xf32>
    %10 = vector.broadcast %9 : vector<8x1xf32> to vector<8x512xf32>
    %11 = arith.subf %5, %10 : vector<8x512xf32>
    %12 = arith.mulf %11, %11 : vector<8x512xf32>
    %cst_7 = arith.constant dense<0.000000e+00> : vector<8xf32>
    %13 = vector.multi_reduction <add>, %12, %cst_7 [1] : vector<8x512xf32> to vector<8xf32>
    %14 = vector.shape_cast %13 : vector<8xf32> to vector<8x1xf32>
    %cst_8 = arith.constant 5.120000e+02 : f32
    %15 = vector.broadcast %cst_8 : f32 to vector<8x1xf32>
    %16 = arith.divf %14, %15 : vector<8x1xf32>
    %17 = vector.broadcast %9 : vector<8x1xf32> to vector<8x512xf32>
    %18 = arith.subf %5, %17 : vector<8x512xf32>
    %cst_9 = arith.constant 9.99999974E-6 : f32
    %19 = vector.broadcast %cst_9 : f32 to vector<8x1xf32>
    %20 = arith.addf %16, %19 : vector<8x1xf32>
    %21 = math.rsqrt %20 : vector<8x1xf32>
    %22 = vector.broadcast %21 : vector<8x1xf32> to vector<8x512xf32>
    %23 = arith.mulf %18, %22 : vector<8x512xf32>
    %c0_10 = arith.constant 0 : index
    %c0_11 = arith.constant 0 : index
    %24 = vector.load %arg4[%c0_10, %c0_11] : memref<1x512xf32, #tpu.memory_space<vmem>>, vector<1x512xf32>
    %25 = vector.broadcast %24 : vector<1x512xf32> to vector<8x512xf32>
    %26 = arith.mulf %23, %25 : vector<8x512xf32>
    %c0_12 = arith.constant 0 : index
    %c0_13 = arith.constant 0 : index
    %27 = vector.load %arg5[%c0_12, %c0_13] : memref<1x512xf32, #tpu.memory_space<vmem>>, vector<1x512xf32>
    %28 = vector.broadcast %27 : vector<1x512xf32> to vector<8x512xf32>
    %29 = arith.addf %26, %28 : vector<8x512xf32>
    %cst_14 = arith.constant 0.000000e+00 : f32
    %30 = vector.broadcast %cst_14 : f32 to vector<8x512xf32>
    %31 = arith.cmpf oge, %29, %30 : vector<8x512xf32>
    %cst_15 = arith.constant 0.00999999977 : f32
    %32 = vector.broadcast %cst_15 : f32 to vector<8x512xf32>
    %33 = arith.mulf %32, %29 : vector<8x512xf32>
    %34 = arith.select %31, %29, %33 : vector<8x512xi1>, vector<8x512xf32>
    %c0_16 = arith.constant 0 : index
    %c0_17 = arith.constant 0 : index
    %35 = vector.load %arg6[%c0_16, %c0_17] : memref<512x128xf32, #tpu.memory_space<vmem>>, vector<512x128xf32>
    %cst_18 = arith.constant dense<0.000000e+00> : vector<8x128xf32>
    %36 = tpu.matmul %34, %35, %cst_18 {dimension_numbers = #tpu.dot_dimension_numbers<[1], [0], [0], [1], [0, 0, 1, 1], [], []>} : vector<8x512xf32>, vector<512x128xf32>, vector<8x128xf32> -> vector<8x128xf32>
    %c0_19 = arith.constant 0 : index
    %c0_20 = arith.constant 0 : index
    %37 = vector.load %arg7[%c0_19, %c0_20] : memref<1x128xf32, #tpu.memory_space<vmem>>, vector<1x128xf32>
    %38 = vector.broadcast %37 : vector<1x128xf32> to vector<8x128xf32>
    %39 = arith.addf %36, %38 : vector<8x128xf32>
    %40 = tpu.iota {dimensions = array<i32: 1>} : vector<8x128xi32>
    %c4_i32 = arith.constant 4 : i32
    %41 = vector.broadcast %c4_i32 : i32 to vector<8x128xi32>
    %42 = arith.cmpi slt, %40, %41 : vector<8x128xi32>
    %43 = arith.mulf %39, %39 : vector<8x128xf32>
    %cst_21 = arith.constant 0.000000e+00 : f32
    %44 = vector.broadcast %cst_21 : f32 to vector<8x128xf32>
    %45 = arith.select %42, %43, %44 : vector<8x128xi1>, vector<8x128xf32>
    %cst_22 = arith.constant dense<0.000000e+00> : vector<8xf32>
    %46 = vector.multi_reduction <add>, %45, %cst_22 [1] : vector<8x128xf32> to vector<8xf32>
    %47 = vector.shape_cast %46 : vector<8xf32> to vector<8x1xf32>
    %cst_23 = arith.constant 1.000000e-24 : f32
    %48 = vector.broadcast %cst_23 : f32 to vector<8x1xf32>
    %49 = arith.maximumf %47, %48 : vector<8x1xf32>
    %50 = math.rsqrt %49 : vector<8x1xf32>
    %51 = vector.broadcast %50 : vector<8x1xf32> to vector<8x128xf32>
    %52 = arith.mulf %39, %51 : vector<8x128xf32>
    %53 = arith.select %42, %52, %39 : vector<8x128xi1>, vector<8x128xf32>
    %c0_24 = arith.constant 0 : index
    %c0_25 = arith.constant 0 : index
    %54 = vector.load %arg8[%c0_24, %c0_25] : memref<8x128xf32, #tpu.memory_space<vmem>>, vector<8x128xf32>
    tpu.vector_store %arg8[%c0_24, %c0_25], %53 {strides = array<i32>} : memref<8x128xf32, #tpu.memory_space<vmem>>, vector<8x128xf32>,
    return
  }
  func.func @transform_0(%arg0: i32) -> (i32, i32) {
    %c0_i32 = arith.constant 0 : i32
    %c0_i32_0 = arith.constant 0 : i32
    return %arg0, %c0_i32 : i32, i32
  }
  func.func @transform_1(%arg0: i32) -> (i32, i32) {
    %c0_i32 = arith.constant 0 : i32
    %c0_i32_0 = arith.constant 0 : i32
    %c0_i32_1 = arith.constant 0 : i32
    return %c0_i32, %c0_i32_0 : i32, i32
  }
  func.func @transform_2(%arg0: i32) -> (i32, i32) {
    %c0_i32 = arith.constant 0 : i32
    %c0_i32_0 = arith.constant 0 : i32
    %c0_i32_1 = arith.constant 0 : i32
    return %c0_i32, %c0_i32_0 : i32, i32
  }
  func.func @transform_3(%arg0: i32) -> (i32, i32) {
    %c0_i32 = arith.constant 0 : i32
    %c0_i32_0 = arith.constant 0 : i32
    %c0_i32_1 = arith.constant 0 : i32
    return %c0_i32, %c0_i32_0 : i32, i32
  }
  func.func @transform_4(%arg0: i32) -> (i32, i32) {
    %c0_i32 = arith.constant 0 : i32
    %c0_i32_0 = arith.constant 0 : i32
    %c0_i32_1 = arith.constant 0 : i32
    return %c0_i32, %c0_i32_0 : i32, i32
  }
  func.func @transform_5(%arg0: i32) -> (i32, i32) {
    %c0_i32 = arith.constant 0 : i32
    %c0_i32_0 = arith.constant 0 : i32
    %c0_i32_1 = arith.constant 0 : i32
    return %c0_i32, %c0_i32_0 : i32, i32
  }
  func.func @transform_6(%arg0: i32) -> (i32, i32) {
    %c0_i32 = arith.constant 0 : i32
    %c0_i32_0 = arith.constant 0 : i32
    %c0_i32_1 = arith.constant 0 : i32
    return %c0_i32, %c0_i32_0 : i32, i32
  }
  func.func @transform_7(%arg0: i32) -> (i32, i32) {
    %c0_i32 = arith.constant 0 : i32
    %c0_i32_0 = arith.constant 0 : i32
    return %arg0, %c0_i32 : i32, i32
  }
}

</mosaic_0001>

<llo_original>
// kernel: tpu_custom_call.1
$region0: #{tpu_custom_call.1}
  #allocation0 [shape = 'u32[]', space=smem, size = 0x4, offset = 0x4, fixed_abs, tag = 'smem constant byte address 0x4 - core index']
  #allocation1 [shape = 'u32[144,128]{1,0:T(1,128)}', space=vmem, size = 0x12000, scoped, tag = 'internal scratch']
  %s0 = inlined_call_operand.hbm [shape: bf16[8,2048], index: 0, kind: input, shape index: {}]
  %s1 = inlined_call_operand.hbm [shape: bf16[2048,512], index: 1, kind: input, shape index: {}]
  %s2 = inlined_call_operand.hbm [shape: f32[1,512], index: 2, kind: input, shape index: {}]
  %s3 = inlined_call_operand.hbm [shape: f32[1,512], index: 3, kind: input, shape index: {}]
  %s4 = inlined_call_operand.hbm [shape: f32[1,512], index: 4, kind: input, shape index: {}]
  %s5 = inlined_call_operand.hbm [shape: f32[512,128], index: 5, kind: input, shape index: {}]
  %s6 = inlined_call_operand.hbm [shape: f32[1,128], index: 6, kind: input, shape index: {}]
  %s7 = inlined_call_operand.hbm [shape: f32[8,128], index: 7, kind: output, shape index: {}]
  %s8 = sld [smem:[#allocation0]]
  $region66: #{tpu_custom_call.1} parent=0
    _
  %s10 = ssub.s32 1, %s8
  %s11 = scalar_select 0, %s10, %s8
  $region1: #{tpu_custom_call.1} parent=0
    #allocation2 [shape = 'u8[32768]{0}', space=vmem, size = 0x8000, scoped, tag = 'input window, operand 0, single buffered']
    #allocation3 [shape = 's32[1]{0}', space=sflag, size = 0x4, scoped, tag = 'scoped memory for tpu_custom_call.1']
    #allocation4 [shape = 's32[1]{0}', space=sflag, size = 0x4, scoped, tag = 'scoped memory for tpu_custom_call.1']
    #allocation5 [shape = 'u8[2097152]{0}', space=vmem, size = 0x200000, scoped, tag = 'input window, operand 1, single buffered']
    #allocation6 [shape = 's32[1]{0}', space=sflag, size = 0x4, scoped, tag = 'scoped memory for tpu_custom_call.1']
    #allocation7 [shape = 'u8[2048]{0}', space=vmem, size = 0x800, scoped, tag = 'input window, operand 2, single buffered']
    #allocation8 [shape = 'u8[2048]{0}', space=vmem, size = 0x800, scoped, tag = 'input window, operand 3, single buffered']
    #allocation9 [shape = 's32[1]{0}', space=sflag, size = 0x4, scoped, tag = 'scoped memory for tpu_custom_call.1']
    #allocation10 [shape = 'u8[2048]{0}', space=vmem, size = 0x800, scoped, tag = 'input window, operand 4, single buffered']
    #allocation11 [shape = 'u8[262144]{0}', space=vmem, size = 0x40000, scoped, tag = 'input window, operand 5, single buffered']
    #allocation12 [shape = 's32[1]{0}', space=sflag, size = 0x4, scoped, tag = 'scoped memory for tpu_custom_call.1']
    #allocation13 [shape = 'u8[512]{0}', space=vmem, size = 0x400, scoped, tag = 'input window, operand 6, single buffered']
    #allocation14 [shape = 'u8[4096]{0}', space=vmem, size = 0x1000, scoped, tag = 'output window, operand 0, single buffered']
    %12 = vsyncpa [#allocation3], 0
    %13 = vsyncpa [#allocation6], 0
    %14 = vsyncpa [#allocation9], 0
    %15 = vsyncpa [#allocation12], 0
    %16 = vsyncpa [#allocation4], 0
    // Predicated region
    $region2: #{tpu_custom_call.1} parent=1 // pred_check
      _
    $region3: #{tpu_custom_call.1} parent=1 // pred_check_branch
      %18 = sbr.rel (0) target = $region5
    $region4: #{tpu_custom_call.1} parent=1 // pred_region
      %s20 = ssub.s32 1024, 1024
      %21 = vsyncadd [#allocation3], %s20
      %s23 = sshll.u32 [#allocation2], 4
      %s24 = int_to_ptr.vmem [resolvable:$true] %s23
      %26 = dma.hbm_to_vmem [thread:$0]  %s0, 1024, %s24, [#allocation3]
    $region5: #{tpu_custom_call.1} parent=1 // pred_fallthru
      _
    // Predicated region
    $region6: #{tpu_custom_call.1} parent=1 // pred_check
      _
    $region7: #{tpu_custom_call.1} parent=1 // pred_check_branch
      %28 = sbr.rel (0) target = $region9
    $region8: #{tpu_custom_call.1} parent=1 // pred_region
      %s30 = ssub.s32 65536, 65536
      %31 = vsyncadd [#allocation6], %s30
      %s32 = sshll.u32 [#allocation5], 4
      %s33 = int_to_ptr.vmem [resolvable:$true] %s32
      %38 = dma.hbm_to_vmem [thread:$0]  %s1, 65536, %s33, [#allocation6], 256, 256, 16
    $region9: #{tpu_custom_call.1} parent=1 // pred_fallthru
      _
    // Predicated region
    $region10: #{tpu_custom_call.1} parent=1 // pred_check
      _
    $region11: #{tpu_custom_call.1} parent=1 // pred_check_branch
      %40 = sbr.rel (0) target = $region13
    $region12: #{tpu_custom_call.1} parent=1 // pred_region
      %s42 = ssub.s32 64, 64
      %43 = vsyncadd [#allocation6], %s42
      %s45 = sshll.u32 [#allocation7], 4
      %s46 = int_to_ptr.vmem [resolvable:$true] %s45
      %48 = dma.hbm_to_vmem [thread:$0]  %s2, 64, %s46, [#allocation6]
    $region13: #{tpu_custom_call.1} parent=1 // pred_fallthru
      _
    // Predicated region
    $region14: #{tpu_custom_call.1} parent=1 // pred_check
      _
    $region15: #{tpu_custom_call.1} parent=1 // pred_check_branch
      %50 = sbr.rel (0) target = $region17
    $region16: #{tpu_custom_call.1} parent=1 // pred_region
      %s52 = ssub.s32 64, 64
      %53 = vsyncadd [#allocation9], %s52
      %s55 = sshll.u32 [#allocation8], 4
      %s56 = int_to_ptr.vmem [resolvable:$true] %s55
      %58 = dma.hbm_to_vmem [thread:$0]  %s3, 64, %s56, [#allocation9]
    $region17: #{tpu_custom_call.1} parent=1 // pred_fallthru
      _
    // Predicated region
    $region18: #{tpu_custom_call.1} parent=1 // pred_check
      _
    $region19: #{tpu_custom_call.1} parent=1 // pred_check_branch
      %60 = sbr.rel (0) target = $region21
    $region20: #{tpu_custom_call.1} parent=1 // pred_region
      %s62 = ssub.s32 64, 64
      %63 = vsyncadd [#allocation9], %s62
      %s65 = sshll.u32 [#allocation10], 4
      %s66 = int_to_ptr.vmem [resolvable:$true] %s65
      %68 = dma.hbm_to_vmem [thread:$0]  %s4, 64, %s66, [#allocation9]
    $region21: #{tpu_custom_call.1} parent=1 // pred_fallthru
      _
    // Predicated region
    $region22: #{tpu_custom_call.1} parent=1 // pred_check
      _
    $region23: #{tpu_custom_call.1} parent=1 // pred_check_branch
      %70 = sbr.rel (0) target = $region25
    $region24: #{tpu_custom_call.1} parent=1 // pred_region
      %s72 = ssub.s32 8192, 8192
      %73 = vsyncadd [#allocation12], %s72
      %s74 = sshll.u32 [#allocation11], 4
      %s75 = int_to_ptr.vmem [resolvable:$true] %s74
      %80 = dma.hbm_to_vmem [thread:$0]  %s5, 8192, %s75, [#allocation12], 128, 128, 8
    $region25: #{tpu_custom_call.1} parent=1 // pred_fallthru
      _
    // Predicated region
    $region26: #{tpu_custom_call.1} parent=1 // pred_check
      _
    $region27: #{tpu_custom_call.1} parent=1 // pred_check_branch
      %82 = sbr.rel (0) target = $region29
    $region28: #{tpu_custom_call.1} parent=1 // pred_region
      %s84 = ssub.s32 16, 16
      %85 = vsyncadd [#allocation12], %s84
      %s87 = sshll.u32 [#allocation13], 4
      %s88 = int_to_ptr.vmem [resolvable:$true] %s87
      %90 = dma.hbm_to_vmem [thread:$0]  %s6, 16, %s88, [#allocation12]
    $region29: #{tpu_custom_call.1} parent=1 // pred_fallthru
      _
    // Predicated region
    $region30: #{tpu_custom_call.1} parent=1 // pred_check
      _
    $region31: #{tpu_custom_call.1} parent=1 // pred_check_branch
      %92 = sbr.rel (0) target = $region33
    $region32: #{tpu_custom_call.1} parent=1 // pred_region
      %93 = dma.done [#allocation3], 1024
    $region33: #{tpu_custom_call.1} parent=1 // pred_fallthru
      _
    // Predicated region
    $region34: #{tpu_custom_call.1} parent=1 // pred_check
      _
    $region35: #{tpu_custom_call.1} parent=1 // pred_check_branch
      %95 = sbr.rel (0) target = $region37
    $region36: #{tpu_custom_call.1} parent=1 // pred_region
      %96 = dma.done [#allocation6], 65536
    $region37: #{tpu_custom_call.1} parent=1 // pred_fallthru
      _
    // Predicated region
    $region38: #{tpu_custom_call.1} parent=1 // pred_check
      _
    $region39: #{tpu_custom_call.1} parent=1 // pred_check_branch
      %98 = sbr.rel (0) target = $region41
    $region40: #{tpu_custom_call.1} parent=1 // pred_region
      %99 = dma.done [#allocation6], 64
    $region41: #{tpu_custom_call.1} parent=1 // pred_fallthru
      _
    // Predicated region
    $region42: #{tpu_custom_call.1} parent=1 // pred_check
      _
    $region43: #{tpu_custom_call.1} parent=1 // pred_check_branch
      %101 = sbr.rel (0) target = $region45
    $region44: #{tpu_custom_call.1} parent=1 // pred_region
      %102 = dma.done [#allocation9], 64
    $region45: #{tpu_custom_call.1} parent=1 // pred_fallthru
      _
    // Predicated region
    $region46: #{tpu_custom_call.1} parent=1 // pred_check
      _
    $region47: #{tpu_custom_call.1} parent=1 // pred_check_branch
      %104 = sbr.rel (0) target = $region49
    $region48: #{tpu_custom_call.1} parent=1 // pred_region
      %105 = dma.done [#allocation9], 64
    $region49: #{tpu_custom_call.1} parent=1 // pred_fallthru
      _
    // Predicated region
    $region50: #{tpu_custom_call.1} parent=1 // pred_check
      _
    $region51: #{tpu_custom_call.1} parent=1 // pred_check_branch
      %107 = sbr.rel (0) target = $region53
    $region52: #{tpu_custom_call.1} parent=1 // pred_region
      %108 = dma.done [#allocation12], 8192
    $region53: #{tpu_custom_call.1} parent=1 // pred_fallthru
      _
    // Predicated region
    $region54: #{tpu_custom_call.1} parent=1 // pred_check
      _
    $region55: #{tpu_custom_call.1} parent=1 // pred_check_branch
      %110 = sbr.rel (0) target = $region57
    $region56: #{tpu_custom_call.1} parent=1 // pred_region
      %111 = dma.done [#allocation12], 16
    $region57: #{tpu_custom_call.1} parent=1 // pred_fallthru
      _
    %v112 = vld [vmem:[#allocation2] sm:$0xff]
    %v113 = vld [vmem:[#allocation2 + $0x8] sm:$0xff]
    %v114 = vld [vmem:[#allocation2 + $0x10] sm:$0xff]
    %v115 = vld [vmem:[#allocation2 + $0x18] sm:$0xff]
    %v116 = vld [vmem:[#allocation2 + $0x20] sm:$0xff]
    %v117 = vld [vmem:[#allocation2 + $0x28] sm:$0xff]
    %v118 = vld [vmem:[#allocation2 + $0x30] sm:$0xff]
    %v119 = vld [vmem:[#allocation2 + $0x38] sm:$0xff]
    %v120 = vld [vmem:[#allocation5] sm:$0xff]
    %v121 = vld [vmem:[#allocation5 + $0x8] sm:$0xff]
    %v122 = vld [vmem:[#allocation5 + $0x10] sm:$0xff]
    %v123 = vld [vmem:[#allocation5 + $0x18] sm:$0xff]
    %v124 = vld [vmem:[#allocation5 + $0x20] sm:$0xff]
    %v125 = vld [vmem:[#allocation5 + $0x28] sm:$0xff]
    %v126 = vld [vmem:[#allocation5 + $0x30] sm:$0xff]
    %v127 = vld [vmem:[#allocation5 + $0x38] sm:$0xff]
    %v128 = vld [vmem:[#allocation5 + $0x40] sm:$0xff]
    %v129 = vld [vmem:[#allocation5 + $0x48] sm:$0xff]
    %v130 = vld [vmem:[#allocation5 + $0x50] sm:$0xff]
    %v131 = vld [vmem:[#allocation5 + $0x58] sm:$0xff]
    %v132 = vld [vmem:[#allocation5 + $0x60] sm:$0xff]
    %v133 = vld [vmem:[#allocation5 + $0x68] sm:$0xff]
    %v134 = vld [vmem:[#allocation5 + $0x70] sm:$0xff]
    %v135 = vld [vmem:[#allocation5 + $0x78] sm:$0xff]
    %v136 = vld [vmem:[#allocation5 + $0x80] sm:$0xff]
    %v137 = vld [vmem:[#allocation5 + $0x88] sm:$0xff]
    %v138 = vld [vmem:[#allocation5 + $0x90] sm:$0xff]
    %v139 = vld [vmem:[#allocation5 + $0x98] sm:$0xff]
    %v140 = vld [vmem:[#allocation5 + $0xa0] sm:$0xff]
    %v141 = vld [vmem:[#allocation5 + $0xa8] sm:$0xff]
    %v142 = vld [vmem:[#allocation5 + $0xb0] sm:$0xff]
    %v143 = vld [vmem:[#allocation5 + $0xb8] sm:$0xff]
    %v144 = vld [vmem:[#allocation5 + $0xc0] sm:$0xff]
    %v145 = vld [vmem:[#allocation5 + $0xc8] sm:$0xff]
    %v146 = vld [vmem:[#allocation5 + $0xd0] sm:$0xff]
    %v147 = vld [vmem:[#allocation5 + $0xd8] sm:$0xff]
    %v148 = vld [vmem:[#allocation5 + $0xe0] sm:$0xff]
    %v149 = vld [vmem:[#allocation5 + $0xe8] sm:$0xff]
    %v150 = vld [vmem:[#allocation5 + $0xf0] sm:$0xff]
    %v151 = vld [vmem:[#allocation5 + $0xf8] sm:$0xff]
    %v152 = vld [vmem:[#allocation5 + $0x100] sm:$0xff]
    %v153 = vld [vmem:[#allocation5 + $0x108] sm:$0xff]
    %v154 = vld [vmem:[#allocation5 + $0x110] sm:$0xff]
    %v155 = vld [vmem:[#allocation5 + $0x118] sm:$0xff]
    %v156 = vld [vmem:[#allocation5 + $0x120] sm:$0xff]
    %v157 = vld [vmem:[#allocation5 + $0x128] sm:$0xff]
    %v158 = vld [vmem:[#allocation5 + $0x130] sm:$0xff]
    %v159 = vld [vmem:[#allocation5 + $0x138] sm:$0xff]
    %v160 = vld [vmem:[#allocation5 + $0x140] sm:$0xff]
    %v161 = vld [vmem:[#allocation5 + $0x148] sm:$0xff]
    %v162 = vld [vmem:[#allocation5 + $0x150] sm:$0xff]
    %v163 = vld [vmem:[#allocation5 + $0x158] sm:$0xff]
    %v164 = vld [vmem:[#allocation5 + $0x160] sm:$0xff]
    %v165 = vld [vmem:[#allocation5 + $0x168] sm:$0xff]
    %v166 = vld [vmem:[#allocation5 + $0x170] sm:$0xff]
    %v167 = vld [vmem:[#allocation5 + $0x178] sm:$0xff]
    %v168 = vld [vmem:[#allocation5 + $0x180] sm:$0xff]
    %v169 = vld [vmem:[#allocation5 + $0x188] sm:$0xff]
    %v170 = vld [vmem:[#allocation5 + $0x190] sm:$0xff]
    %v171 = vld [vmem:[#allocation5 + $0x198] sm:$0xff]
    %v172 = vld [vmem:[#allocation5 + $0x1a0] sm:$0xff]
    %v173 = vld [vmem:[#allocation5 + $0x1a8] sm:$0xff]
    %v174 = vld [vmem:[#allocation5 + $0x1b0] sm:$0xff]
    %v175 = vld [vmem:[#allocation5 + $0x1b8] sm:$0xff]
    %v176 = vld [vmem:[#allocation5 + $0x1c0] sm:$0xff]
    %v177 = vld [vmem:[#allocation5 + $0x1c8] sm:$0xff]
    %v178 = vld [vmem:[#allocation5 + $0x1d0] sm:$0xff]
    %v179 = vld [vmem:[#allocation5 + $0x1d8] sm:$0xff]
    %v180 = vld [vmem:[#allocation5 + $0x1e0] sm:$0xff]
    %v181 = vld [vmem:[#allocation5 + $0x1e8] sm:$0xff]
    %v182 = vld [vmem:[#allocation5 + $0x1f0] sm:$0xff]
    %v183 = vld [vmem:[#allocation5 + $0x1f8] sm:$0xff]
    %v184 = vld [vmem:[#allocation5 + $0x200] sm:$0xff]
    %v185 = vld [vmem:[#allocation5 + $0x208] sm:$0xff]
    %v186 = vld [vmem:[#allocation5 + $0x210] sm:$0xff]
    %v187 = vld [vmem:[#allocation5 + $0x218] sm:$0xff]
    %v188 = vld [vmem:[#allocation5 + $0x220] sm:$0xff]
    %v189 = vld [vmem:[#allocation5 + $0x228] sm:$0xff]
    %v190 = vld [vmem:[#allocation5 + $0x230] sm:$0xff]
    %v191 = vld [vmem:[#allocation5 + $0x238] sm:$0xff]
    %v192 = vld [vmem:[#allocation5 + $0x240] sm:$0xff]
    %v193 = vld [vmem:[#allocation5 + $0x248] sm:$0xff]
    %v194 = vld [vmem:[#allocation5 + $0x250] sm:$0xff]
    %v195 = vld [vmem:[#allocation5 + $0x258] sm:$0xff]
    %v196 = vld [vmem:[#allocation5 + $0x260] sm:$0xff]
    %v197 = vld [vmem:[#allocation5 + $0x268] sm:$0xff]
    %v198 = vld [vmem:[#allocation5 + $0x270] sm:$0xff]
    %v199 = vld [vmem:[#allocation5 + $0x278] sm:$0xff]
    %v200 = vld [vmem:[#allocation5 + $0x280] sm:$0xff]
    %v201 = vld [vmem:[#allocation5 + $0x288] sm:$0xff]
    %v202 = vld [vmem:[#allocation5 + $0x290] sm:$0xff]
    %v203 = vld [vmem:[#allocation5 + $0x298] sm:$0xff]
    %v204 = vld [vmem:[#allocation5 + $0x2a0] sm:$0xff]
    %v205 = vld [vmem:[#allocation5 + $0x2a8] sm:$0xff]
    %v206 = vld [vmem:[#allocation5 + $0x2b0] sm:$0xff]
    %v207 = vld [vmem:[#allocation5 + $0x2b8] sm:$0xff]
    %v208 = vld [vmem:[#allocation5 + $0x2c0] sm:$0xff]
    %v209 = vld [vmem:[#allocation5 + $0x2c8] sm:$0xff]
    %v210 = vld [vmem:[#allocation5 + $0x2d0] sm:$0xff]
    %v211 = vld [vmem:[#allocation5 + $0x2d8] sm:$0xff]
    %v212 = vld [vmem:[#allocation5 + $0x2e0] sm:$0xff]
    %v213 = vld [vmem:[#allocation5 + $0x2e8] sm:$0xff]
    %v214 = vld [vmem:[#allocation5 + $0x2f0] sm:$0xff]
    %v215 = vld [vmem:[#allocation5 + $0x2f8] sm:$0xff]
    %v216 = vld [vmem:[#allocation5 + $0x300] sm:$0xff]
    %v217 = vld [vmem:[#allocation5 + $0x308] sm:$0xff]
    %v218 = vld [vmem:[#allocation5 + $0x310] sm:$0xff]
    %v219 = vld [vmem:[#allocation5 + $0x318] sm:$0xff]
    %v220 = vld [vmem:[#allocation5 + $0x320] sm:$0xff]
    %v221 = vld [vmem:[#allocation5 + $0x328] sm:$0xff]
    %v222 = vld [vmem:[#allocation5 + $0x330] sm:$0xff]
    %v223 = vld [vmem:[#allocation5 + $0x338] sm:$0xff]
    %v224 = vld [vmem:[#allocation5 + $0x340] sm:$0xff]
    %v225 = vld [vmem:[#allocation5 + $0x348] sm:$0xff]
    %v226 = vld [vmem:[#allocation5 + $0x350] sm:$0xff]
    %v227 = vld [vmem:[#allocation5 + $0x358] sm:$0xff]
    %v228 = vld [vmem:[#allocation5 + $0x360] sm:$0xff]
    %v229 = vld [vmem:[#allocation5 + $0x368] sm:$0xff]
    %v230 = vld [vmem:[#allocation5 + $0x370] sm:$0xff]
    %v231 = vld [vmem:[#allocation5 + $0x378] sm:$0xff]
    %v232 = vld [vmem:[#allocation5 + $0x380] sm:$0xff]
    %v233 = vld [vmem:[#allocation5 + $0x388] sm:$0xff]
    %v234 = vld [vmem:[#allocation5 + $0x390] sm:$0xff]
    %v235 = vld [vmem:[#allocation5 + $0x398] sm:$0xff]
    %v236 = vld [vmem:[#allocation5 + $0x3a0] sm:$0xff]
    %v237 = vld [vmem:[#allocation5 + $0x3a8] sm:$0xff]
    %v238 = vld [vmem:[#allocation5 + $0x3b0] sm:$0xff]
    %v239 = vld [vmem:[#allocation5 + $0x3b8] sm:$0xff]
    %v240 = vld [vmem:[#allocation5 + $0x3c0] sm:$0xff]
    %v241 = vld [vmem:[#allocation5 + $0x3c8] sm:$0xff]
    %v242 = vld [vmem:[#allocation5 + $0x3d0] sm:$0xff]
    %v243 = vld [vmem:[#allocation5 + $0x3d8] sm:$0xff]
    %v244 = vld [vmem:[#allocation5 + $0x3e0] sm:$0xff]
    %v245 = vld [vmem:[#allocation5 + $0x3e8] sm:$0xff]
    %v246 = vld [vmem:[#allocation5 + $0x3f0] sm:$0xff]
    %v247 = vld [vmem:[#allocation5 + $0x3f8] sm:$0xff]
    %v248 = vld [vmem:[#allocation5 + $0x400] sm:$0xff]
    %v249 = vld [vmem:[#allocation5 + $0x408] sm:$0xff]
    %v250 = vld [vmem:[#allocation5 + $0x410] sm:$0xff]
    %v251 = vld [vmem:[#allocation5 + $0x418] sm:$0xff]
    %v252 = vld [vmem:[#allocation5 + $0x420] sm:$0xff]
    %v253 = vld [vmem:[#allocation5 + $0x428] sm:$0xff]
    %v254 = vld [vmem:[#allocation5 + $0x430] sm:$0xff]
    %v255 = vld [vmem:[#allocation5 + $0x438] sm:$0xff]
    %v256 = vld [vmem:[#allocation5 + $0x440] sm:$0xff]
    %v257 = vld [vmem:[#allocation5 + $0x448] sm:$0xff]
    %v258 = vld [vmem:[#allocation5 + $0x450] sm:$0xff]
    %v259 = vld [vmem:[#allocation5 + $0x458] sm:$0xff]
    %v260 = vld [vmem:[#allocation5 + $0x460] sm:$0xff]
    %v261 = vld [vmem:[#allocation5 + $0x468] sm:$0xff]
    %v262 = vld [vmem:[#allocation5 + $0x470] sm:$0xff]
    %v263 = vld [vmem:[#allocation5 + $0x478] sm:$0xff]
    %v264 = vld [vmem:[#allocation5 + $0x480] sm:$0xff]
    %v265 = vld [vmem:[#allocation5 + $0x488] sm:$0xff]
    %v266 = vld [vmem:[#allocation5 + $0x490] sm:$0xff]
    %v267 = vld [vmem:[#allocation5 + $0x498] sm:$0xff]
    %v268 = vld [vmem:[#allocation5 + $0x4a0] sm:$0xff]
    %v269 = vld [vmem:[#allocation5 + $0x4a8] sm:$0xff]
    %v270 = vld [vmem:[#allocation5 + $0x4b0] sm:$0xff]
    %v271 = vld [vmem:[#allocation5 + $0x4b8] sm:$0xff]
    %v272 = vld [vmem:[#allocation5 + $0x4c0] sm:$0xff]
    %v273 = vld [vmem:[#allocation5 + $0x4c8] sm:$0xff]
    %v274 = vld [vmem:[#allocation5 + $0x4d0] sm:$0xff]
    %v275 = vld [vmem:[#allocation5 + $0x4d8] sm:$0xff]
    %v276 = vld [vmem:[#allocation5 + $0x4e0] sm:$0xff]
    %v277 = vld [vmem:[#allocation5 + $0x4e8] sm:$0xff]
    %v278 = vld [vmem:[#allocation5 + $0x4f0] sm:$0xff]
    %v279 = vld [vmem:[#allocation5 + $0x4f8] sm:$0xff]
    %v280 = vld [vmem:[#allocation5 + $0x500] sm:$0xff]
    %v281 = vld [vmem:[#allocation5 + $0x508] sm:$0xff]
    %v282 = vld [vmem:[#allocation5 + $0x510] sm:$0xff]
    %v283 = vld [vmem:[#allocation5 + $0x518] sm:$0xff]
    %v284 = vld [vmem:[#allocation5 + $0x520] sm:$0xff]
    %v285 = vld [vmem:[#allocation5 + $0x528] sm:$0xff]
    %v286 = vld [vmem:[#allocation5 + $0x530] sm:$0xff]
    %v287 = vld [vmem:[#allocation5 + $0x538] sm:$0xff]
    %v288 = vld [vmem:[#allocation5 + $0x540] sm:$0xff]
    %v289 = vld [vmem:[#allocation5 + $0x548] sm:$0xff]
    %v290 = vld [vmem:[#allocation5 + $0x550] sm:$0xff]
    %v291 = vld [vmem:[#allocation5 + $0x558] sm:$0xff]
    %v292 = vld [vmem:[#allocation5 + $0x560] sm:$0xff]
    %v293 = vld [vmem:[#allocation5 + $0x568] sm:$0xff]
    %v294 = vld [vmem:[#allocation5 + $0x570] sm:$0xff]
    %v295 = vld [vmem:[#allocation5 + $0x578] sm:$0xff]
    %v296 = vld [vmem:[#allocation5 + $0x580] sm:$0xff]
    %v297 = vld [vmem:[#allocation5 + $0x588] sm:$0xff]
    %v298 = vld [vmem:[#allocation5 + $0x590] sm:$0xff]
    %v299 = vld [vmem:[#allocation5 + $0x598] sm:$0xff]
    %v300 = vld [vmem:[#allocation5 + $0x5a0] sm:$0xff]
    %v301 = vld [vmem:[#allocation5 + $0x5a8] sm:$0xff]
    %v302 = vld [vmem:[#allocation5 + $0x5b0] sm:$0xff]
    %v303 = vld [vmem:[#allocation5 + $0x5b8] sm:$0xff]
    %v304 = vld [vmem:[#allocation5 + $0x5c0] sm:$0xff]
    %v305 = vld [vmem:[#allocation5 + $0x5c8] sm:$0xff]
    %v306 = vld [vmem:[#allocation5 + $0x5d0] sm:$0xff]
    %v307 = vld [vmem:[#allocation5 + $0x5d8] sm:$0xff]
    %v308 = vld [vmem:[#allocation5 + $0x5e0] sm:$0xff]
    %v309 = vld [vmem:[#allocation5 + $0x5e8] sm:$0xff]
    %v310 = vld [vmem:[#allocation5 + $0x5f0] sm:$0xff]
    %v311 = vld [vmem:[#allocation5 + $0x5f8] sm:$0xff]
    %v312 = vld [vmem:[#allocation5 + $0x600] sm:$0xff]
    %v313 = vld [vmem:[#allocation5 + $0x608] sm:$0xff]
    %v314 = vld [vmem:[#allocation5 + $0x610] sm:$0xff]
    %v315 = vld [vmem:[#allocation5 + $0x618] sm:$0xff]
    %v316 = vld [vmem:[#allocation5 + $0x620] sm:$0xff]
    %v317 = vld [vmem:[#allocation5 + $0x628] sm:$0xff]
    %v318 = vld [vmem:[#allocation5 + $0x630] sm:$0xff]
    %v319 = vld [vmem:[#allocation5 + $0x638] sm:$0xff]
    %v320 = vld [vmem:[#allocation5 + $0x640] sm:$0xff]
    %v321 = vld [vmem:[#allocation5 + $0x648] sm:$0xff]
    %v322 = vld [vmem:[#allocation5 + $0x650] sm:$0xff]
    %v323 = vld [vmem:[#allocation5 + $0x658] sm:$0xff]
    %v324 = vld [vmem:[#allocation5 + $0x660] sm:$0xff]
    %v325 = vld [vmem:[#allocation5 + $0x668] sm:$0xff]
    %v326 = vld [vmem:[#allocation5 + $0x670] sm:$0xff]
    %v327 = vld [vmem:[#allocation5 + $0x678] sm:$0xff]
    %v328 = vld [vmem:[#allocation5 + $0x680] sm:$0xff]
    %v329 = vld [vmem:[#allocation5 + $0x688] sm:$0xff]
    %v330 = vld [vmem:[#allocation5 + $0x690] sm:$0xff]
    %v331 = vld [vmem:[#allocation5 + $0x698] sm:$0xff]
    %v332 = vld [vmem:[#allocation5 + $0x6a0] sm:$0xff]
    %v333 = vld [vmem:[#allocation5 + $0x6a8] sm:$0xff]
    %v334 = vld [vmem:[#allocation5 + $0x6b0] sm:$0xff]
    %v335 = vld [vmem:[#allocation5 + $0x6b8] sm:$0xff]
    %v336 = vld [vmem:[#allocation5 + $0x6c0] sm:$0xff]
    %v337 = vld [vmem:[#allocation5 + $0x6c8] sm:$0xff]
    %v338 = vld [vmem:[#allocation5 + $0x6d0] sm:$0xff]
    %v339 = vld [vmem:[#allocation5 + $0x6d8] sm:$0xff]
    %v340 = vld [vmem:[#allocation5 + $0x6e0] sm:$0xff]
    %v341 = vld [vmem:[#allocation5 + $0x6e8] sm:$0xff]
    %v342 = vld [vmem:[#allocation5 + $0x6f0] sm:$0xff]
    %v343 = vld [vmem:[#allocation5 + $0x6f8] sm:$0xff]
    %v344 = vld [vmem:[#allocation5 + $0x700] sm:$0xff]
    %v345 = vld [vmem:[#allocation5 + $0x708] sm:$0xff]
    %v346 = vld [vmem:[#allocation5 + $0x710] sm:$0xff]
    %v347 = vld [vmem:[#allocation5 + $0x718] sm:$0xff]
    %v348 = vld [vmem:[#allocation5 + $0x720] sm:$0xff]
    %v349 = vld [vmem:[#allocation5 + $0x728] sm:$0xff]
    %v350 = vld [vmem:[#allocation5 + $0x730] sm:$0xff]
    %v351 = vld [vmem:[#allocation5 + $0x738] sm:$0xff]
    %v352 = vld [vmem:[#allocation5 + $0x740] sm:$0xff]
    %v353 = vld [vmem:[#allocation5 + $0x748] sm:$0xff]
    %v354 = vld [vmem:[#allocation5 + $0x750] sm:$0xff]
    %v355 = vld [vmem:[#allocation5 + $0x758] sm:$0xff]
    %v356 = vld [vmem:[#allocation5 + $0x760] sm:$0xff]
    %v357 = vld [vmem:[#allocation5 + $0x768] sm:$0xff]
    %v358 = vld [vmem:[#allocation5 + $0x770] sm:$0xff]
    %v359 = vld [vmem:[#allocation5 + $0x778] sm:$0xff]
    %v360 = vld [vmem:[#allocation5 + $0x780] sm:$0xff]
    %v361 = vld [vmem:[#allocation5 + $0x788] sm:$0xff]
    %v362 = vld [vmem:[#allocation5 + $0x790] sm:$0xff]
    %v363 = vld [vmem:[#allocation5 + $0x798] sm:$0xff]
    %v364 = vld [vmem:[#allocation5 + $0x7a0] sm:$0xff]
    %v365 = vld [vmem:[#allocation5 + $0x7a8] sm:$0xff]
    %v366 = vld [vmem:[#allocation5 + $0x7b0] sm:$0xff]
    %v367 = vld [vmem:[#allocation5 + $0x7b8] sm:$0xff]
    %v368 = vld [vmem:[#allocation5 + $0x7c0] sm:$0xff]
    %v369 = vld [vmem:[#allocation5 + $0x7c8] sm:$0xff]
    %v370 = vld [vmem:[#allocation5 + $0x7d0] sm:$0xff]
    %v371 = vld [vmem:[#allocation5 + $0x7d8] sm:$0xff]
    %v372 = vld [vmem:[#allocation5 + $0x7e0] sm:$0xff]
    %v373 = vld [vmem:[#allocation5 + $0x7e8] sm:$0xff]
    %v374 = vld [vmem:[#allocation5 + $0x7f0] sm:$0xff]
    %v375 = vld [vmem:[#allocation5 + $0x7f8] sm:$0xff]
    %v376 = vld [vmem:[#allocation5 + $0x800] sm:$0xff]
    %v377 = vld [vmem:[#allocation5 + $0x808] sm:$0xff]
    %v378 = vld [vmem:[#allocation5 + $0x810] sm:$0xff]
    %v379 = vld [vmem:[#allocation5 + $0x818] sm:$0xff]
    %v380 = vld [vmem:[#allocation5 + $0x820] sm:$0xff]
    %v381 = vld [vmem:[#allocation5 + $0x828] sm:$0xff]
    %v382 = vld [vmem:[#allocation5 + $0x830] sm:$0xff]
    %v383 = vld [vmem:[#allocation5 + $0x838] sm:$0xff]
    %v384 = vld [vmem:[#allocation5 + $0x840] sm:$0xff]
    %v385 = vld [vmem:[#allocation5 + $0x848] sm:$0xff]
    %v386 = vld [vmem:[#allocation5 + $0x850] sm:$0xff]
    %v387 = vld [vmem:[#allocation5 + $0x858] sm:$0xff]
    %v388 = vld [vmem:[#allocation5 + $0x860] sm:$0xff]
    %v389 = vld [vmem:[#allocation5 + $0x868] sm:$0xff]
    %v390 = vld [vmem:[#allocation5 + $0x870] sm:$0xff]
    %v391 = vld [vmem:[#allocation5 + $0x878] sm:$0xff]
    %v392 = vld [vmem:[#allocation5 + $0x880] sm:$0xff]
    %v393 = vld [vmem:[#allocation5 + $0x888] sm:$0xff]
    %v394 = vld [vmem:[#allocation5 + $0x890] sm:$0xff]
    %v395 = vld [vmem:[#allocation5 + $0x898] sm:$0xff]
    %v396 = vld [vmem:[#allocation5 + $0x8a0] sm:$0xff]
    %v397 = vld [vmem:[#allocation5 + $0x8a8] sm:$0xff]
    %v398 = vld [vmem:[#allocation5 + $0x8b0] sm:$0xff]
    %v399 = vld [vmem:[#allocation5 + $0x8b8] sm:$0xff]
    %v400 = vld [vmem:[#allocation5 + $0x8c0] sm:$0xff]
    %v401 = vld [vmem:[#allocation5 + $0x8c8] sm:$0xff]
    %v402 = vld [vmem:[#allocation5 + $0x8d0] sm:$0xff]
    %v403 = vld [vmem:[#allocation5 + $0x8d8] sm:$0xff]
    %v404 = vld [vmem:[#allocation5 + $0x8e0] sm:$0xff]
    %v405 = vld [vmem:[#allocation5 + $0x8e8] sm:$0xff]
    %v406 = vld [vmem:[#allocation5 + $0x8f0] sm:$0xff]
    %v407 = vld [vmem:[#allocation5 + $0x8f8] sm:$0xff]
    %v408 = vld [vmem:[#allocation5 + $0x900] sm:$0xff]
    %v409 = vld [vmem:[#allocation5 + $0x908] sm:$0xff]
    %v410 = vld [vmem:[#allocation5 + $0x910] sm:$0xff]
    %v411 = vld [vmem:[#allocation5 + $0x918] sm:$0xff]
    %v412 = vld [vmem:[#allocation5 + $0x920] sm:$0xff]
    %v413 = vld [vmem:[#allocation5 + $0x928] sm:$0xff]
    %v414 = vld [vmem:[#allocation5 + $0x930] sm:$0xff]
    %v415 = vld [vmem:[#allocation5 + $0x938] sm:$0xff]
    %v416 = vld [vmem:[#allocation5 + $0x940] sm:$0xff]
    %v417 = vld [vmem:[#allocation5 + $0x948] sm:$0xff]
    %v418 = vld [vmem:[#allocation5 + $0x950] sm:$0xff]
    %v419 = vld [vmem:[#allocation5 + $0x958] sm:$0xff]
    %v420 = vld [vmem:[#allocation5 + $0x960] sm:$0xff]
    %v421 = vld [vmem:[#allocation5 + $0x968] sm:$0xff]
    %v422 = vld [vmem:[#allocation5 + $0x970] sm:$0xff]
    %v423 = vld [vmem:[#allocation5 + $0x978] sm:$0xff]
    %v424 = vld [vmem:[#allocation5 + $0x980] sm:$0xff]
    %v425 = vld [vmem:[#allocation5 + $0x988] sm:$0xff]
    %v426 = vld [vmem:[#allocation5 + $0x990] sm:$0xff]
    %v427 = vld [vmem:[#allocation5 + $0x998] sm:$0xff]
    %v428 = vld [vmem:[#allocation5 + $0x9a0] sm:$0xff]
    %v429 = vld [vmem:[#allocation5 + $0x9a8] sm:$0xff]
    %v430 = vld [vmem:[#allocation5 + $0x9b0] sm:$0xff]
    %v431 = vld [vmem:[#allocation5 + $0x9b8] sm:$0xff]
    %v432 = vld [vmem:[#allocation5 + $0x9c0] sm:$0xff]
    %v433 = vld [vmem:[#allocation5 + $0x9c8] sm:$0xff]
    %v434 = vld [vmem:[#allocation5 + $0x9d0] sm:$0xff]
    %v435 = vld [vmem:[#allocation5 + $0x9d8] sm:$0xff]
    %v436 = vld [vmem:[#allocation5 + $0x9e0] sm:$0xff]
    %v437 = vld [vmem:[#allocation5 + $0x9e8] sm:$0xff]
    %v438 = vld [vmem:[#allocation5 + $0x9f0] sm:$0xff]
    %v439 = vld [vmem:[#allocation5 + $0x9f8] sm:$0xff]
    %v440 = vld [vmem:[#allocation5 + $0xa00] sm:$0xff]
    %v441 = vld [vmem:[#allocation5 + $0xa08] sm:$0xff]
    %v442 = vld [vmem:[#allocation5 + $0xa10] sm:$0xff]
    %v443 = vld [vmem:[#allocation5 + $0xa18] sm:$0xff]
    %v444 = vld [vmem:[#allocation5 + $0xa20] sm:$0xff]
    %v445 = vld [vmem:[#allocation5 + $0xa28] sm:$0xff]
    %v446 = vld [vmem:[#allocation5 + $0xa30] sm:$0xff]
    %v447 = vld [vmem:[#allocation5 + $0xa38] sm:$0xff]
    %v448 = vld [vmem:[#allocation5 + $0xa40] sm:$0xff]
    %v449 = vld [vmem:[#allocation5 + $0xa48] sm:$0xff]
    %v450 = vld [vmem:[#allocation5 + $0xa50] sm:$0xff]
    %v451 = vld [vmem:[#allocation5 + $0xa58] sm:$0xff]
    %v452 = vld [vmem:[#allocation5 + $0xa60] sm:$0xff]
    %v453 = vld [vmem:[#allocation5 + $0xa68] sm:$0xff]
    %v454 = vld [vmem:[#allocation5 + $0xa70] sm:$0xff]
    %v455 = vld [vmem:[#allocation5 + $0xa78] sm:$0xff]
    %v456 = vld [vmem:[#allocation5 + $0xa80] sm:$0xff]
    %v457 = vld [vmem:[#allocation5 + $0xa88] sm:$0xff]
    %v458 = vld [vmem:[#allocation5 + $0xa90] sm:$0xff]
    %v459 = vld [vmem:[#allocation5 + $0xa98] sm:$0xff]
    %v460 = vld [vmem:[#allocation5 + $0xaa0] sm:$0xff]
    %v461 = vld [vmem:[#allocation5 + $0xaa8] sm:$0xff]
    %v462 = vld [vmem:[#allocation5 + $0xab0] sm:$0xff]
    %v463 = vld [vmem:[#allocation5 + $0xab8] sm:$0xff]
    %v464 = vld [vmem:[#allocation5 + $0xac0] sm:$0xff]
    %v465 = vld [vmem:[#allocation5 + $0xac8] sm:$0xff]
    %v466 = vld [vmem:[#allocation5 + $0xad0] sm:$0xff]
    %v467 = vld [vmem:[#allocation5 + $0xad8] sm:$0xff]
    %v468 = vld [vmem:[#allocation5 + $0xae0] sm:$0xff]
    %v469 = vld [vmem:[#allocation5 + $0xae8] sm:$0xff]
    %v470 = vld [vmem:[#allocation5 + $0xaf0] sm:$0xff]
    %v471 = vld [vmem:[#allocation5 + $0xaf8] sm:$0xff]
    %v472 = vld [vmem:[#allocation5 + $0xb00] sm:$0xff]
    %v473 = vld [vmem:[#allocation5 + $0xb08] sm:$0xff]
    %v474 = vld [vmem:[#allocation5 + $0xb10] sm:$0xff]
    %v475 = vld [vmem:[#allocation5 + $0xb18] sm:$0xff]
    %v476 = vld [vmem:[#allocation5 + $0xb20] sm:$0xff]
    %v477 = vld [vmem:[#allocation5 + $0xb28] sm:$0xff]
    %v478 = vld [vmem:[#allocation5 + $0xb30] sm:$0xff]
    %v479 = vld [vmem:[#allocation5 + $0xb38] sm:$0xff]
    %v480 = vld [vmem:[#allocation5 + $0xb40] sm:$0xff]
    %v481 = vld [vmem:[#allocation5 + $0xb48] sm:$0xff]
    %v482 = vld [vmem:[#allocation5 + $0xb50] sm:$0xff]
    %v483 = vld [vmem:[#allocation5 + $0xb58] sm:$0xff]
    %v484 = vld [vmem:[#allocation5 + $0xb60] sm:$0xff]
    %v485 = vld [vmem:[#allocation5 + $0xb68] sm:$0xff]
    %v486 = vld [vmem:[#allocation5 + $0xb70] sm:$0xff]
    %v487 = vld [vmem:[#allocation5 + $0xb78] sm:$0xff]
    %v488 = vld [vmem:[#allocation5 + $0xb80] sm:$0xff]
    %v489 = vld [vmem:[#allocation5 + $0xb88] sm:$0xff]
    %v490 = vld [vmem:[#allocation5 + $0xb90] sm:$0xff]
    %v491 = vld [vmem:[#allocation5 + $0xb98] sm:$0xff]
    %v492 = vld [vmem:[#allocation5 + $0xba0] sm:$0xff]
    %v493 = vld [vmem:[#allocation5 + $0xba8] sm:$0xff]
    %v494 = vld [vmem:[#allocation5 + $0xbb0] sm:$0xff]
    %v495 = vld [vmem:[#allocation5 + $0xbb8] sm:$0xff]
    %v496 = vld [vmem:[#allocation5 + $0xbc0] sm:$0xff]
    %v497 = vld [vmem:[#allocation5 + $0xbc8] sm:$0xff]
    %v498 = vld [vmem:[#allocation5 + $0xbd0] sm:$0xff]
    %v499 = vld [vmem:[#allocation5 + $0xbd8] sm:$0xff]
    %v500 = vld [vmem:[#allocation5 + $0xbe0] sm:$0xff]
    %v501 = vld [vmem:[#allocation5 + $0xbe8] sm:$0xff]
    %v502 = vld [vmem:[#allocation5 + $0xbf0] sm:$0xff]
    %v503 = vld [vmem:[#allocation5 + $0xbf8] sm:$0xff]
    %v504 = vld [vmem:[#allocation5 + $0xc00] sm:$0xff]
    %v505 = vld [vmem:[#allocation5 + $0xc08] sm:$0xff]
    %v506 = vld [vmem:[#allocation5 + $0xc10] sm:$0xff]
    %v507 = vld [vmem:[#allocation5 + $0xc18] sm:$0xff]
    %v508 = vld [vmem:[#allocation5 + $0xc20] sm:$0xff]
    %v509 = vld [vmem:[#allocation5 + $0xc28] sm:$0xff]
    %v510 = vld [vmem:[#allocation5 + $0xc30] sm:$0xff]
    %v511 = vld [vmem:[#allocation5 + $0xc38] sm:$0xff]
    %v512 = vld [vmem:[#allocation5 + $0xc40] sm:$0xff]
    %v513 = vld [vmem:[#allocation5 + $0xc48] sm:$0xff]
    %v514 = vld [vmem:[#allocation5 + $0xc50] sm:$0xff]
    %v515 = vld [vmem:[#allocation5 + $0xc58] sm:$0xff]
    %v516 = vld [vmem:[#allocation5 + $0xc60] sm:$0xff]
    %v517 = vld [vmem:[#allocation5 + $0xc68] sm:$0xff]
    %v518 = vld [vmem:[#allocation5 + $0xc70] sm:$0xff]
    %v519 = vld [vmem:[#allocation5 + $0xc78] sm:$0xff]
    %v520 = vld [vmem:[#allocation5 + $0xc80] sm:$0xff]
    %v521 = vld [vmem:[#allocation5 + $0xc88] sm:$0xff]
    %v522 = vld [vmem:[#allocation5 + $0xc90] sm:$0xff]
    %v523 = vld [vmem:[#allocation5 + $0xc98] sm:$0xff]
    %v524 = vld [vmem:[#allocation5 + $0xca0] sm:$0xff]
    %v525 = vld [vmem:[#allocation5 + $0xca8] sm:$0xff]
    %v526 = vld [vmem:[#allocation5 + $0xcb0] sm:$0xff]
    %v527 = vld [vmem:[#allocation5 + $0xcb8] sm:$0xff]
    %v528 = vld [vmem:[#allocation5 + $0xcc0] sm:$0xff]
    %v529 = vld [vmem:[#allocation5 + $0xcc8] sm:$0xff]
    %v530 = vld [vmem:[#allocation5 + $0xcd0] sm:$0xff]
    %v531 = vld [vmem:[#allocation5 + $0xcd8] sm:$0xff]
    %v532 = vld [vmem:[#allocation5 + $0xce0] sm:$0xff]
    %v533 = vld [vmem:[#allocation5 + $0xce8] sm:$0xff]
    %v534 = vld [vmem:[#allocation5 + $0xcf0] sm:$0xff]
    %v535 = vld [vmem:[#allocation5 + $0xcf8] sm:$0xff]
    %v536 = vld [vmem:[#allocation5 + $0xd00] sm:$0xff]
    %v537 = vld [vmem:[#allocation5 + $0xd08] sm:$0xff]
    %v538 = vld [vmem:[#allocation5 + $0xd10] sm:$0xff]
    %v539 = vld [vmem:[#allocation5 + $0xd18] sm:$0xff]
    %v540 = vld [vmem:[#allocation5 + $0xd20] sm:$0xff]
    %v541 = vld [vmem:[#allocation5 + $0xd28] sm:$0xff]
    %v542 = vld [vmem:[#allocation5 + $0xd30] sm:$0xff]
    %v543 = vld [vmem:[#allocation5 + $0xd38] sm:$0xff]
    %v544 = vld [vmem:[#allocation5 + $0xd40] sm:$0xff]
    %v545 = vld [vmem:[#allocation5 + $0xd48] sm:$0xff]
    %v546 = vld [vmem:[#allocation5 + $0xd50] sm:$0xff]
    %v547 = vld [vmem:[#allocation5 + $0xd58] sm:$0xff]
    %v548 = vld [vmem:[#allocation5 + $0xd60] sm:$0xff]
    %v549 = vld [vmem:[#allocation5 + $0xd68] sm:$0xff]
    %v550 = vld [vmem:[#allocation5 + $0xd70] sm:$0xff]
    %v551 = vld [vmem:[#allocation5 + $0xd78] sm:$0xff]
    %v552 = vld [vmem:[#allocation5 + $0xd80] sm:$0xff]
    %v553 = vld [vmem:[#allocation5 + $0xd88] sm:$0xff]
    %v554 = vld [vmem:[#allocation5 + $0xd90] sm:$0xff]
    %v555 = vld [vmem:[#allocation5 + $0xd98] sm:$0xff]
    %v556 = vld [vmem:[#allocation5 + $0xda0] sm:$0xff]
    %v557 = vld [vmem:[#allocation5 + $0xda8] sm:$0xff]
    %v558 = vld [vmem:[#allocation5 + $0xdb0] sm:$0xff]
    %v559 = vld [vmem:[#allocation5 + $0xdb8] sm:$0xff]
    %v560 = vld [vmem:[#allocation5 + $0xdc0] sm:$0xff]
    %v561 = vld [vmem:[#allocation5 + $0xdc8] sm:$0xff]
    %v562 = vld [vmem:[#allocation5 + $0xdd0] sm:$0xff]
    %v563 = vld [vmem:[#allocation5 + $0xdd8] sm:$0xff]
    %v564 = vld [vmem:[#allocation5 + $0xde0] sm:$0xff]
    %v565 = vld [vmem:[#allocation5 + $0xde8] sm:$0xff]
    %v566 = vld [vmem:[#allocation5 + $0xdf0] sm:$0xff]
    %v567 = vld [vmem:[#allocation5 + $0xdf8] sm:$0xff]
    %v568 = vld [vmem:[#allocation5 + $0xe00] sm:$0xff]
    %v569 = vld [vmem:[#allocation5 + $0xe08] sm:$0xff]
    %v570 = vld [vmem:[#allocation5 + $0xe10] sm:$0xff]
    %v571 = vld [vmem:[#allocation5 + $0xe18] sm:$0xff]
    %v572 = vld [vmem:[#allocation5 + $0xe20] sm:$0xff]
    %v573 = vld [vmem:[#allocation5 + $0xe28] sm:$0xff]
    %v574 = vld [vmem:[#allocation5 + $0xe30] sm:$0xff]
    %v575 = vld [vmem:[#allocation5 + $0xe38] sm:$0xff]
    %v576 = vld [vmem:[#allocation5 + $0xe40] sm:$0xff]
    %v577 = vld [vmem:[#allocation5 + $0xe48] sm:$0xff]
    %v578 = vld [vmem:[#allocation5 + $0xe50] sm:$0xff]
    %v579 = vld [vmem:[#allocation5 + $0xe58] sm:$0xff]
    %v580 = vld [vmem:[#allocation5 + $0xe60] sm:$0xff]
    %v581 = vld [vmem:[#allocation5 + $0xe68] sm:$0xff]
    %v582 = vld [vmem:[#allocation5 + $0xe70] sm:$0xff]
    %v583 = vld [vmem:[#allocation5 + $0xe78] sm:$0xff]
    %v584 = vld [vmem:[#allocation5 + $0xe80] sm:$0xff]
    %v585 = vld [vmem:[#allocation5 + $0xe88] sm:$0xff]
    %v586 = vld [vmem:[#allocation5 + $0xe90] sm:$0xff]
    %v587 = vld [vmem:[#allocation5 + $0xe98] sm:$0xff]
    %v588 = vld [vmem:[#allocation5 + $0xea0] sm:$0xff]
    %v589 = vld [vmem:[#allocation5 + $0xea8] sm:$0xff]
    %v590 = vld [vmem:[#allocation5 + $0xeb0] sm:$0xff]
    %v591 = vld [vmem:[#allocation5 + $0xeb8] sm:$0xff]
    %v592 = vld [vmem:[#allocation5 + $0xec0] sm:$0xff]
    %v593 = vld [vmem:[#allocation5 + $0xec8] sm:$0xff]
    %v594 = vld [vmem:[#allocation5 + $0xed0] sm:$0xff]
    %v595 = vld [vmem:[#allocation5 + $0xed8] sm:$0xff]
    %v596 = vld [vmem:[#allocation5 + $0xee0] sm:$0xff]
    %v597 = vld [vmem:[#allocation5 + $0xee8] sm:$0xff]
    %v598 = vld [vmem:[#allocation5 + $0xef0] sm:$0xff]
    %v599 = vld [vmem:[#allocation5 + $0xef8] sm:$0xff]
    %v600 = vld [vmem:[#allocation5 + $0xf00] sm:$0xff]
    %v601 = vld [vmem:[#allocation5 + $0xf08] sm:$0xff]
    %v602 = vld [vmem:[#allocation5 + $0xf10] sm:$0xff]
    %v603 = vld [vmem:[#allocation5 + $0xf18] sm:$0xff]
    %v604 = vld [vmem:[#allocation5 + $0xf20] sm:$0xff]
    %v605 = vld [vmem:[#allocation5 + $0xf28] sm:$0xff]
    %v606 = vld [vmem:[#allocation5 + $0xf30] sm:$0xff]
    %v607 = vld [vmem:[#allocation5 + $0xf38] sm:$0xff]
    %v608 = vld [vmem:[#allocation5 + $0xf40] sm:$0xff]
    %v609 = vld [vmem:[#allocation5 + $0xf48] sm:$0xff]
    %v610 = vld [vmem:[#allocation5 + $0xf50] sm:$0xff]
    %v611 = vld [vmem:[#allocation5 + $0xf58] sm:$0xff]
    %v612 = vld [vmem:[#allocation5 + $0xf60] sm:$0xff]
    %v613 = vld [vmem:[#allocation5 + $0xf68] sm:$0xff]
    %v614 = vld [vmem:[#allocation5 + $0xf70] sm:$0xff]
    %v615 = vld [vmem:[#allocation5 + $0xf78] sm:$0xff]
    %v616 = vld [vmem:[#allocation5 + $0xf80] sm:$0xff]
    %v617 = vld [vmem:[#allocation5 + $0xf88] sm:$0xff]
    %v618 = vld [vmem:[#allocation5 + $0xf90] sm:$0xff]
    %v619 = vld [vmem:[#allocation5 + $0xf98] sm:$0xff]
    %v620 = vld [vmem:[#allocation5 + $0xfa0] sm:$0xff]
    %v621 = vld [vmem:[#allocation5 + $0xfa8] sm:$0xff]
    %v622 = vld [vmem:[#allocation5 + $0xfb0] sm:$0xff]
    %v623 = vld [vmem:[#allocation5 + $0xfb8] sm:$0xff]
    %v624 = vld [vmem:[#allocation5 + $0xfc0] sm:$0xff]
    %v625 = vld [vmem:[#allocation5 + $0xfc8] sm:$0xff]
    %v626 = vld [vmem:[#allocation5 + $0xfd0] sm:$0xff]
    %v627 = vld [vmem:[#allocation5 + $0xfd8] sm:$0xff]
    %v628 = vld [vmem:[#allocation5 + $0xfe0] sm:$0xff]
    %v629 = vld [vmem:[#allocation5 + $0xfe8] sm:$0xff]
    %v630 = vld [vmem:[#allocation5 + $0xff0] sm:$0xff]
    %v631 = vld [vmem:[#allocation5 + $0xff8] sm:$0xff]
    %v632 = vld [vmem:[#allocation7] sm:$0xf]
    %v634 = vlaneseq
    %v635 = vshrl.u32 %v634, 7
    %v636 = vsub.s32 0, %v635
    %v637 = vrot.slane %v632, %v636
    %v638 = vlaneseq
    %v639 = vshrl.u32 %v638, 7
    %v640 = vsub.s32 1, %v639
    %v641 = vrot.slane %v632, %v640
    %v642 = vlaneseq
    %v643 = vshrl.u32 %v642, 7
    %v644 = vsub.s32 2, %v643
    %v645 = vrot.slane %v632, %v644
    %v646 = vlaneseq
    %v647 = vshrl.u32 %v646, 7
    %v648 = vsub.s32 3, %v647
    %v649 = vrot.slane %v632, %v648
    %v662 = vunpack.c.l.b16 %v112
    %v663 = vunpack.c.h.b16 %v112
    %v664 = vunpack.c.l.b16 %v113
    %v665 = vunpack.c.h.b16 %v113
    %v666 = vunpack.c.l.b16 %v114
    %v667 = vunpack.c.h.b16 %v114
    %v668 = vunpack.c.l.b16 %v115
    %v669 = vunpack.c.h.b16 %v115
    %v670 = vunpack.c.l.b16 %v116
    %v671 = vunpack.c.h.b16 %v116
    %v672 = vunpack.c.l.b16 %v117
    %v673 = vunpack.c.h.b16 %v117
    %v674 = vunpack.c.l.b16 %v118
    %v675 = vunpack.c.h.b16 %v118
    %v676 = vunpack.c.l.b16 %v119
    %v677 = vunpack.c.h.b16 %v119
    %v678 = vpack.c.b16 %v662, %v662
    %v679 = vpack.c.b16 %v663, %v663
    %v680 = vpack.c.b16 %v664, %v664
    %v681 = vpack.c.b16 %v665, %v665
    %v682 = vpack.c.b16 %v666, %v666
    %v683 = vpack.c.b16 %v667, %v667
    %v684 = vpack.c.b16 %v668, %v668
    %v685 = vpack.c.b16 %v669, %v669
    %v686 = vpack.c.b16 %v670, %v670
    %v687 = vpack.c.b16 %v671, %v671
    %v688 = vpack.c.b16 %v672, %v672
    %v689 = vpack.c.b16 %v673, %v673
    %v690 = vpack.c.b16 %v674, %v674
    %v691 = vpack.c.b16 %v675, %v675
    %v692 = vpack.c.b16 %v676, %v676
    %v693 = vpack.c.b16 %v677, %v677
    %v1222 = vunpack.c.l.b16 %v120
    %v1223 = vunpack.c.h.b16 %v120
    %v1224 = vunpack.c.l.b16 %v121
    %v1225 = vunpack.c.h.b16 %v121
    %v1226 = vunpack.c.l.b16 %v122
    %v1227 = vunpack.c.h.b16 %v122
    %v1228 = vunpack.c.l.b16 %v123
    %v1229 = vunpack.c.h.b16 %v123
    %v1230 = vunpack.c.l.b16 %v124
    %v1231 = vunpack.c.h.b16 %v124
    %v1232 = vunpack.c.l.b16 %v125
    %v1233 = vunpack.c.h.b16 %v125
    %v1234 = vunpack.c.l.b16 %v126
    %v1235 = vunpack.c.h.b16 %v126
    %v1236 = vunpack.c.l.b16 %v127
    %v1237 = vunpack.c.h.b16 %v127
    %v1238 = vunpack.c.l.b16 %v128
    %v1239 = vunpack.c.h.b16 %v128
    %v1240 = vunpack.c.l.b16 %v129
    %v1241 = vunpack.c.h.b16 %v129
    %v1242 = vunpack.c.l.b16 %v130
    %v1243 = vunpack.c.h.b16 %v130
    %v1244 = vunpack.c.l.b16 %v131
    %v1245 = vunpack.c.h.b16 %v131
    %v1246 = vunpack.c.l.b16 %v132
    %v1247 = vunpack.c.h.b16 %v132
    %v1248 = vunpack.c.l.b16 %v133
    %v1249 = vunpack.c.h.b16 %v133
    %v1250 = vunpack.c.l.b16 %v134
    %v1251 = vunpack.c.h.b16 %v134
    %v1252 = vunpack.c.l.b16 %v135
    %v1253 = vunpack.c.h.b16 %v135
    %v1254 = vunpack.c.l.b16 %v136
    %v1255 = vunpack.c.h.b16 %v136
    %v1256 = vunpack.c.l.b16 %v137
    %v1257 = vunpack.c.h.b16 %v137
    %v1258 = vunpack.c.l.b16 %v138
    %v1259 = vunpack.c.h.b16 %v138
    %v1260 = vunpack.c.l.b16 %v139
    %v1261 = vunpack.c.h.b16 %v139
    %v1262 = vunpack.c.l.b16 %v140
    %v1263 = vunpack.c.h.b16 %v140
    %v1264 = vunpack.c.l.b16 %v141
    %v1265 = vunpack.c.h.b16 %v141
    %v1266 = vunpack.c.l.b16 %v142
    %v1267 = vunpack.c.h.b16 %v142
    %v1268 = vunpack.c.l.b16 %v143
    %v1269 = vunpack.c.h.b16 %v143
    %v1270 = vunpack.c.l.b16 %v144
    %v1271 = vunpack.c.h.b16 %v144
    %v1272 = vunpack.c.l.b16 %v145
    %v1273 = vunpack.c.h.b16 %v145
    %v1274 = vunpack.c.l.b16 %v146
    %v1275 = vunpack.c.h.b16 %v146
    %v1276 = vunpack.c.l.b16 %v147
    %v1277 = vunpack.c.h.b16 %v147
    %v1278 = vunpack.c.l.b16 %v148
    %v1279 = vunpack.c.h.b16 %v148
    %v1280 = vunpack.c.l.b16 %v149
    %v1281 = vunpack.c.h.b16 %v149
    %v1282 = vunpack.c.l.b16 %v150
    %v1283 = vunpack.c.h.b16 %v150
    %v1284 = vunpack.c.l.b16 %v151
    %v1285 = vunpack.c.h.b16 %v151
    %v1286 = vunpack.c.l.b16 %v152
    %v1287 = vunpack.c.h.b16 %v152
    %v1288 = vunpack.c.l.b16 %v153
    %v1289 = vunpack.c.h.b16 %v153
    %v1290 = vunpack.c.l.b16 %v154
    %v1291 = vunpack.c.h.b16 %v154
    %v1292 = vunpack.c.l.b16 %v155
    %v1293 = vunpack.c.h.b16 %v155
    %v1294 = vunpack.c.l.b16 %v156
    %v1295 = vunpack.c.h.b16 %v156
    %v1296 = vunpack.c.l.b16 %v157
    %v1297 = vunpack.c.h.b16 %v157
    %v1298 = vunpack.c.l.b16 %v158
    %v1299 = vunpack.c.h.b16 %v158
    %v1300 = vunpack.c.l.b16 %v159
    %v1301 = vunpack.c.h.b16 %v159
    %v1302 = vunpack.c.l.b16 %v160
    %v1303 = vunpack.c.h.b16 %v160
    %v1304 = vunpack.c.l.b16 %v161
    %v1305 = vunpack.c.h.b16 %v161
    %v1306 = vunpack.c.l.b16 %v162
    %v1307 = vunpack.c.h.b16 %v162
    %v1308 = vunpack.c.l.b16 %v163
    %v1309 = vunpack.c.h.b16 %v163
    %v1310 = vunpack.c.l.b16 %v164
    %v1311 = vunpack.c.h.b16 %v164
    %v1312 = vunpack.c.l.b16 %v165
    %v1313 = vunpack.c.h.b16 %v165
    %v1314 = vunpack.c.l.b16 %v166
    %v1315 = vunpack.c.h.b16 %v166
    %v1316 = vunpack.c.l.b16 %v167
    %v1317 = vunpack.c.h.b16 %v167
    %v1318 = vunpack.c.l.b16 %v168
    %v1319 = vunpack.c.h.b16 %v168
    %v1320 = vunpack.c.l.b16 %v169
    %v1321 = vunpack.c.h.b16 %v169
    %v1322 = vunpack.c.l.b16 %v170
    %v1323 = vunpack.c.h.b16 %v170
    %v1324 = vunpack.c.l.b16 %v171
    %v1325 = vunpack.c.h.b16 %v171
    %v1326 = vunpack.c.l.b16 %v172
    %v1327 = vunpack.c.h.b16 %v172
    %v1328 = vunpack.c.l.b16 %v173
    %v1329 = vunpack.c.h.b16 %v173
    %v1330 = vunpack.c.l.b16 %v174
    %v1331 = vunpack.c.h.b16 %v174
    %v1332 = vunpack.c.l.b16 %v175
    %v1333 = vunpack.c.h.b16 %v175
    %v1334 = vunpack.c.l.b16 %v176
    %v1335 = vunpack.c.h.b16 %v176
    %v1336 = vunpack.c.l.b16 %v177
    %v1337 = vunpack.c.h.b16 %v177
    %v1338 = vunpack.c.l.b16 %v178
    %v1339 = vunpack.c.h.b16 %v178
    %v1340 = vunpack.c.l.b16 %v179
    %v1341 = vunpack.c.h.b16 %v179
    %v1342 = vunpack.c.l.b16 %v180
    %v1343 = vunpack.c.h.b16 %v180
    %v1344 = vunpack.c.l.b16 %v181
    %v1345 = vunpack.c.h.b16 %v181
    %v1346 = vunpack.c.l.b16 %v182
    %v1347 = vunpack.c.h.b16 %v182
    %v1348 = vunpack.c.l.b16 %v183
    %v1349 = vunpack.c.h.b16 %v183
    %v1350 = vunpack.c.l.b16 %v184
    %v1351 = vunpack.c.h.b16 %v184
    %v1352 = vunpack.c.l.b16 %v185
    %v1353 = vunpack.c.h.b16 %v185
    %v1354 = vunpack.c.l.b16 %v186
    %v1355 = vunpack.c.h.b16 %v186
    %v1356 = vunpack.c.l.b16 %v187
    %v1357 = vunpack.c.h.b16 %v187
    %v1358 = vunpack.c.l.b16 %v188
    %v1359 = vunpack.c.h.b16 %v188
    %v1360 = vunpack.c.l.b16 %v189
    %v1361 = vunpack.c.h.b16 %v189
    %v1362 = vunpack.c.l.b16 %v190
    %v1363 = vunpack.c.h.b16 %v190
    %v1364 = vunpack.c.l.b16 %v191
    %v1365 = vunpack.c.h.b16 %v191
    %v1366 = vunpack.c.l.b16 %v192
    %v1367 = vunpack.c.h.b16 %v192
    %v1368 = vunpack.c.l.b16 %v193
    %v1369 = vunpack.c.h.b16 %v193
    %v1370 = vunpack.c.l.b16 %v194
    %v1371 = vunpack.c.h.b16 %v194
    %v1372 = vunpack.c.l.b16 %v195
    %v1373 = vunpack.c.h.b16 %v195
    %v1374 = vunpack.c.l.b16 %v196
    %v1375 = vunpack.c.h.b16 %v196
    %v1376 = vunpack.c.l.b16 %v197
    %v1377 = vunpack.c.h.b16 %v197
    %v1378 = vunpack.c.l.b16 %v198
    %v1379 = vunpack.c.h.b16 %v198
    %v1380 = vunpack.c.l.b16 %v199
    %v1381 = vunpack.c.h.b16 %v199
    %v1382 = vunpack.c.l.b16 %v200
    %v1383 = vunpack.c.h.b16 %v200
    %v1384 = vunpack.c.l.b16 %v201
    %v1385 = vunpack.c.h.b16 %v201
    %v1386 = vunpack.c.l.b16 %v202
    %v1387 = vunpack.c.h.b16 %v202
    %v1388 = vunpack.c.l.b16 %v203
    %v1389 = vunpack.c.h.b16 %v203
    %v1390 = vunpack.c.l.b16 %v204
    %v1391 = vunpack.c.h.b16 %v204
    %v1392 = vunpack.c.l.b16 %v205
    %v1393 = vunpack.c.h.b16 %v205
    %v1394 = vunpack.c.l.b16 %v206
    %v1395 = vunpack.c.h.b16 %v206
    %v1396 = vunpack.c.l.b16 %v207
    %v1397 = vunpack.c.h.b16 %v207
    %v1398 = vunpack.c.l.b16 %v208
    %v1399 = vunpack.c.h.b16 %v208
    %v1400 = vunpack.c.l.b16 %v209
    %v1401 = vunpack.c.h.b16 %v209
    %v1402 = vunpack.c.l.b16 %v210
    %v1403 = vunpack.c.h.b16 %v210
    %v1404 = vunpack.c.l.b16 %v211
    %v1405 = vunpack.c.h.b16 %v211
    %v1406 = vunpack.c.l.b16 %v212
    %v1407 = vunpack.c.h.b16 %v212
    %v1408 = vunpack.c.l.b16 %v213
    %v1409 = vunpack.c.h.b16 %v213
    %v1410 = vunpack.c.l.b16 %v214
    %v1411 = vunpack.c.h.b16 %v214
    %v1412 = vunpack.c.l.b16 %v215
    %v1413 = vunpack.c.h.b16 %v215
    %v1414 = vunpack.c.l.b16 %v216
    %v1415 = vunpack.c.h.b16 %v216
    %v1416 = vunpack.c.l.b16 %v217
    %v1417 = vunpack.c.h.b16 %v217
    %v1418 = vunpack.c.l.b16 %v218
    %v1419 = vunpack.c.h.b16 %v218
    %v1420 = vunpack.c.l.b16 %v219
    %v1421 = vunpack.c.h.b16 %v219
    %v1422 = vunpack.c.l.b16 %v220
    %v1423 = vunpack.c.h.b16 %v220
    %v1424 = vunpack.c.l.b16 %v221
    %v1425 = vunpack.c.h.b16 %v221
    %v1426 = vunpack.c.l.b16 %v222
    %v1427 = vunpack.c.h.b16 %v222
    %v1428 = vunpack.c.l.b16 %v223
    %v1429 = vunpack.c.h.b16 %v223
    %v1430 = vunpack.c.l.b16 %v224
    %v1431 = vunpack.c.h.b16 %v224
    %v1432 = vunpack.c.l.b16 %v225
    %v1433 = vunpack.c.h.b16 %v225
    %v1434 = vunpack.c.l.b16 %v226
    %v1435 = vunpack.c.h.b16 %v226
    %v1436 = vunpack.c.l.b16 %v227
    %v1437 = vunpack.c.h.b16 %v227
    %v1438 = vunpack.c.l.b16 %v228
    %v1439 = vunpack.c.h.b16 %v228
    %v1440 = vunpack.c.l.b16 %v229
    %v1441 = vunpack.c.h.b16 %v229
    %v1442 = vunpack.c.l.b16 %v230
    %v1443 = vunpack.c.h.b16 %v230
    %v1444 = vunpack.c.l.b16 %v231
    %v1445 = vunpack.c.h.b16 %v231
    %v1446 = vunpack.c.l.b16 %v232
    %v1447 = vunpack.c.h.b16 %v232
    %v1448 = vunpack.c.l.b16 %v233
    %v1449 = vunpack.c.h.b16 %v233
    %v1450 = vunpack.c.l.b16 %v234
    %v1451 = vunpack.c.h.b16 %v234
    %v1452 = vunpack.c.l.b16 %v235
    %v1453 = vunpack.c.h.b16 %v235
    %v1454 = vunpack.c.l.b16 %v236
    %v1455 = vunpack.c.h.b16 %v236
    %v1456 = vunpack.c.l.b16 %v237
    %v1457 = vunpack.c.h.b16 %v237
    %v1458 = vunpack.c.l.b16 %v238
    %v1459 = vunpack.c.h.b16 %v238
    %v1460 = vunpack.c.l.b16 %v239
    %v1461 = vunpack.c.h.b16 %v239
    %v1462 = vunpack.c.l.b16 %v240
    %v1463 = vunpack.c.h.b16 %v240
    %v1464 = vunpack.c.l.b16 %v241
    %v1465 = vunpack.c.h.b16 %v241
    %v1466 = vunpack.c.l.b16 %v242
    %v1467 = vunpack.c.h.b16 %v242
    %v1468 = vunpack.c.l.b16 %v243
    %v1469 = vunpack.c.h.b16 %v243
    %v1470 = vunpack.c.l.b16 %v244
    %v1471 = vunpack.c.h.b16 %v244
    %v1472 = vunpack.c.l.b16 %v245
    %v1473 = vunpack.c.h.b16 %v245
    %v1474 = vunpack.c.l.b16 %v246
    %v1475 = vunpack.c.h.b16 %v246
    %v1476 = vunpack.c.l.b16 %v247
    %v1477 = vunpack.c.h.b16 %v247
    %v1478 = vunpack.c.l.b16 %v248
    %v1479 = vunpack.c.h.b16 %v248
    %v1480 = vunpack.c.l.b16 %v249
    %v1481 = vunpack.c.h.b16 %v249
    %v1482 = vunpack.c.l.b16 %v250
    %v1483 = vunpack.c.h.b16 %v250
    %v1484 = vunpack.c.l.b16 %v251
    %v1485 = vunpack.c.h.b16 %v251
    %v1486 = vunpack.c.l.b16 %v252
    %v1487 = vunpack.c.h.b16 %v252
    %v1488 = vunpack.c.l.b16 %v253
    %v1489 = vunpack.c.h.b16 %v253
    %v1490 = vunpack.c.l.b16 %v254
    %v1491 = vunpack.c.h.b16 %v254
    %v1492 = vunpack.c.l.b16 %v255
    %v1493 = vunpack.c.h.b16 %v255
    %v1494 = vunpack.c.l.b16 %v256
    %v1495 = vunpack.c.h.b16 %v256
    %v1496 = vunpack.c.l.b16 %v257
    %v1497 = vunpack.c.h.b16 %v257
    %v1498 = vunpack.c.l.b16 %v258
    %v1499 = vunpack.c.h.b16 %v258
    %v1500 = vunpack.c.l.b16 %v259
    %v1501 = vunpack.c.h.b16 %v259
    %v1502 = vunpack.c.l.b16 %v260
    %v1503 = vunpack.c.h.b16 %v260
    %v1504 = vunpack.c.l.b16 %v261
    %v1505 = vunpack.c.h.b16 %v261
    %v1506 = vunpack.c.l.b16 %v262
    %v1507 = vunpack.c.h.b16 %v262
    %v1508 = vunpack.c.l.b16 %v263
    %v1509 = vunpack.c.h.b16 %v263
    %v1510 = vunpack.c.l.b16 %v264
    %v1511 = vunpack.c.h.b16 %v264
    %v1512 = vunpack.c.l.b16 %v265
    %v1513 = vunpack.c.h.b16 %v265
    %v1514 = vunpack.c.l.b16 %v266
    %v1515 = vunpack.c.h.b16 %v266
    %v1516 = vunpack.c.l.b16 %v267
    %v1517 = vunpack.c.h.b16 %v267
    %v1518 = vunpack.c.l.b16 %v268
    %v1519 = vunpack.c.h.b16 %v268
    %v1520 = vunpack.c.l.b16 %v269
    %v1521 = vunpack.c.h.b16 %v269
    %v1522 = vunpack.c.l.b16 %v270
    %v1523 = vunpack.c.h.b16 %v270
    %v1524 = vunpack.c.l.b16 %v271
    %v1525 = vunpack.c.h.b16 %v271
    %v1526 = vunpack.c.l.b16 %v272
    %v1527 = vunpack.c.h.b16 %v272
    %v1528 = vunpack.c.l.b16 %v273
    %v1529 = vunpack.c.h.b16 %v273
    %v1530 = vunpack.c.l.b16 %v274
    %v1531 = vunpack.c.h.b16 %v274
    %v1532 = vunpack.c.l.b16 %v275
    %v1533 = vunpack.c.h.b16 %v275
    %v1534 = vunpack.c.l.b16 %v276
    %v1535 = vunpack.c.h.b16 %v276
    %v1536 = vunpack.c.l.b16 %v277
    %v1537 = vunpack.c.h.b16 %v277
    %v1538 = vunpack.c.l.b16 %v278
    %v1539 = vunpack.c.h.b16 %v278
    %v1540 = vunpack.c.l.b16 %v279
    %v1541 = vunpack.c.h.b16 %v279
    %v1542 = vunpack.c.l.b16 %v280
    %v1543 = vunpack.c.h.b16 %v280
    %v1544 = vunpack.c.l.b16 %v281
    %v1545 = vunpack.c.h.b16 %v281
    %v1546 = vunpack.c.l.b16 %v282
    %v1547 = vunpack.c.h.b16 %v282
    %v1548 = vunpack.c.l.b16 %v283
    %v1549 = vunpack.c.h.b16 %v283
    %v1550 = vunpack.c.l.b16 %v284
    %v1551 = vunpack.c.h.b16 %v284
    %v1552 = vunpack.c.l.b16 %v285
    %v1553 = vunpack.c.h.b16 %v285
    %v1554 = vunpack.c.l.b16 %v286
    %v1555 = vunpack.c.h.b16 %v286
    %v1556 = vunpack.c.l.b16 %v287
    %v1557 = vunpack.c.h.b16 %v287
    %v1558 = vunpack.c.l.b16 %v288
    %v1559 = vunpack.c.h.b16 %v288
    %v1560 = vunpack.c.l.b16 %v289
    %v1561 = vunpack.c.h.b16 %v289
    %v1562 = vunpack.c.l.b16 %v290
    %v1563 = vunpack.c.h.b16 %v290
    %v1564 = vunpack.c.l.b16 %v291
    %v1565 = vunpack.c.h.b16 %v291
    %v1566 = vunpack.c.l.b16 %v292
    %v1567 = vunpack.c.h.b16 %v292
    %v1568 = vunpack.c.l.b16 %v293
    %v1569 = vunpack.c.h.b16 %v293
    %v1570 = vunpack.c.l.b16 %v294
    %v1571 = vunpack.c.h.b16 %v294
    %v1572 = vunpack.c.l.b16 %v295
    %v1573 = vunpack.c.h.b16 %v295
    %v1574 = vunpack.c.l.b16 %v296
    %v1575 = vunpack.c.h.b16 %v296
    %v1576 = vunpack.c.l.b16 %v297
    %v1577 = vunpack.c.h.b16 %v297
    %v1578 = vunpack.c.l.b16 %v298
    %v1579 = vunpack.c.h.b16 %v298
    %v1580 = vunpack.c.l.b16 %v299
    %v1581 = vunpack.c.h.b16 %v299
    %v1582 = vunpack.c.l.b16 %v300
    %v1583 = vunpack.c.h.b16 %v300
    %v1584 = vunpack.c.l.b16 %v301
    %v1585 = vunpack.c.h.b16 %v301
    %v1586 = vunpack.c.l.b16 %v302
    %v1587 = vunpack.c.h.b16 %v302
    %v1588 = vunpack.c.l.b16 %v303
    %v1589 = vunpack.c.h.b16 %v303
    %v1590 = vunpack.c.l.b16 %v304
    %v1591 = vunpack.c.h.b16 %v304
    %v1592 = vunpack.c.l.b16 %v305
    %v1593 = vunpack.c.h.b16 %v305
    %v1594 = vunpack.c.l.b16 %v306
    %v1595 = vunpack.c.h.b16 %v306
    %v1596 = vunpack.c.l.b16 %v307
    %v1597 = vunpack.c.h.b16 %v307
    %v1598 = vunpack.c.l.b16 %v308
    %v1599 = vunpack.c.h.b16 %v308
    %v1600 = vunpack.c.l.b16 %v309
    %v1601 = vunpack.c.h.b16 %v309
    %v1602 = vunpack.c.l.b16 %v310
    %v1603 = vunpack.c.h.b16 %v310
    %v1604 = vunpack.c.l.b16 %v311
    %v1605 = vunpack.c.h.b16 %v311
    %v1606 = vunpack.c.l.b16 %v312
    %v1607 = vunpack.c.h.b16 %v312
    %v1608 = vunpack.c.l.b16 %v313
    %v1609 = vunpack.c.h.b16 %v313
    %v1610 = vunpack.c.l.b16 %v314
    %v1611 = vunpack.c.h.b16 %v314
    %v1612 = vunpack.c.l.b16 %v315
    %v1613 = vunpack.c.h.b16 %v315
    %v1614 = vunpack.c.l.b16 %v316
    %v1615 = vunpack.c.h.b16 %v316
    %v1616 = vunpack.c.l.b16 %v317
    %v1617 = vunpack.c.h.b16 %v317
    %v1618 = vunpack.c.l.b16 %v318
    %v1619 = vunpack.c.h.b16 %v318
    %v1620 = vunpack.c.l.b16 %v319
    %v1621 = vunpack.c.h.b16 %v319
    %v1622 = vunpack.c.l.b16 %v320
    %v1623 = vunpack.c.h.b16 %v320
    %v1624 = vunpack.c.l.b16 %v321
    %v1625 = vunpack.c.h.b16 %v321
    %v1626 = vunpack.c.l.b16 %v322
    %v1627 = vunpack.c.h.b16 %v322
    %v1628 = vunpack.c.l.b16 %v323
    %v1629 = vunpack.c.h.b16 %v323
    %v1630 = vunpack.c.l.b16 %v324
    %v1631 = vunpack.c.h.b16 %v324
    %v1632 = vunpack.c.l.b16 %v325
    %v1633 = vunpack.c.h.b16 %v325
    %v1634 = vunpack.c.l.b16 %v326
    %v1635 = vunpack.c.h.b16 %v326
    %v1636 = vunpack.c.l.b16 %v327
    %v1637 = vunpack.c.h.b16 %v327
    %v1638 = vunpack.c.l.b16 %v328
    %v1639 = vunpack.c.h.b16 %v328
    %v1640 = vunpack.c.l.b16 %v329
    %v1641 = vunpack.c.h.b16 %v329
    %v1642 = vunpack.c.l.b16 %v330
    %v1643 = vunpack.c.h.b16 %v330
    %v1644 = vunpack.c.l.b16 %v331
    %v1645 = vunpack.c.h.b16 %v331
    %v1646 = vunpack.c.l.b16 %v332
    %v1647 = vunpack.c.h.b16 %v332
    %v1648 = vunpack.c.l.b16 %v333
    %v1649 = vunpack.c.h.b16 %v333
    %v1650 = vunpack.c.l.b16 %v334
    %v1651 = vunpack.c.h.b16 %v334
    %v1652 = vunpack.c.l.b16 %v335
    %v1653 = vunpack.c.h.b16 %v335
    %v1654 = vunpack.c.l.b16 %v336
    %v1655 = vunpack.c.h.b16 %v336
    %v1656 = vunpack.c.l.b16 %v337
    %v1657 = vunpack.c.h.b16 %v337
    %v1658 = vunpack.c.l.b16 %v338
    %v1659 = vunpack.c.h.b16 %v338
    %v1660 = vunpack.c.l.b16 %v339
    %v1661 = vunpack.c.h.b16 %v339
    %v1662 = vunpack.c.l.b16 %v340
    %v1663 = vunpack.c.h.b16 %v340
    %v1664 = vunpack.c.l.b16 %v341
    %v1665 = vunpack.c.h.b16 %v341
    %v1666 = vunpack.c.l.b16 %v342
    %v1667 = vunpack.c.h.b16 %v342
    %v1668 = vunpack.c.l.b16 %v343
    %v1669 = vunpack.c.h.b16 %v343
    %v1670 = vunpack.c.l.b16 %v344
    %v1671 = vunpack.c.h.b16 %v344
    %v1672 = vunpack.c.l.b16 %v345
    %v1673 = vunpack.c.h.b16 %v345
    %v1674 = vunpack.c.l.b16 %v346
    %v1675 = vunpack.c.h.b16 %v346
    %v1676 = vunpack.c.l.b16 %v347
    %v1677 = vunpack.c.h.b16 %v347
    %v1678 = vunpack.c.l.b16 %v348
    %v1679 = vunpack.c.h.b16 %v348
    %v1680 = vunpack.c.l.b16 %v349
    %v1681 = vunpack.c.h.b16 %v349
    %v1682 = vunpack.c.l.b16 %v350
    %v1683 = vunpack.c.h.b16 %v350
    %v1684 = vunpack.c.l.b16 %v351
    %v1685 = vunpack.c.h.b16 %v351
    %v1686 = vunpack.c.l.b16 %v352
    %v1687 = vunpack.c.h.b16 %v352
    %v1688 = vunpack.c.l.b16 %v353
    %v1689 = vunpack.c.h.b16 %v353
    %v1690 = vunpack.c.l.b16 %v354
    %v1691 = vunpack.c.h.b16 %v354
    %v1692 = vunpack.c.l.b16 %v355
    %v1693 = vunpack.c.h.b16 %v355
    %v1694 = vunpack.c.l.b16 %v356
    %v1695 = vunpack.c.h.b16 %v356
    %v1696 = vunpack.c.l.b16 %v357
    %v1697 = vunpack.c.h.b16 %v357
    %v1698 = vunpack.c.l.b16 %v358
    %v1699 = vunpack.c.h.b16 %v358
    %v1700 = vunpack.c.l.b16 %v359
    %v1701 = vunpack.c.h.b16 %v359
    %v1702 = vunpack.c.l.b16 %v360
    %v1703 = vunpack.c.h.b16 %v360
    %v1704 = vunpack.c.l.b16 %v361
    %v1705 = vunpack.c.h.b16 %v361
    %v1706 = vunpack.c.l.b16 %v362
    %v1707 = vunpack.c.h.b16 %v362
    %v1708 = vunpack.c.l.b16 %v363
    %v1709 = vunpack.c.h.b16 %v363
    %v1710 = vunpack.c.l.b16 %v364
    %v1711 = vunpack.c.h.b16 %v364
    %v1712 = vunpack.c.l.b16 %v365
    %v1713 = vunpack.c.h.b16 %v365
    %v1714 = vunpack.c.l.b16 %v366
    %v1715 = vunpack.c.h.b16 %v366
    %v1716 = vunpack.c.l.b16 %v367
    %v1717 = vunpack.c.h.b16 %v367
    %v1718 = vunpack.c.l.b16 %v368
    %v1719 = vunpack.c.h.b16 %v368
    %v1720 = vunpack.c.l.b16 %v369
    %v1721 = vunpack.c.h.b16 %v369
    %v1722 = vunpack.c.l.b16 %v370
    %v1723 = vunpack.c.h.b16 %v370
    %v1724 = vunpack.c.l.b16 %v371
    %v1725 = vunpack.c.h.b16 %v371
    %v1726 = vunpack.c.l.b16 %v372
    %v1727 = vunpack.c.h.b16 %v372
    %v1728 = vunpack.c.l.b16 %v373
    %v1729 = vunpack.c.h.b16 %v373
    %v1730 = vunpack.c.l.b16 %v374
    %v1731 = vunpack.c.h.b16 %v374
    %v1732 = vunpack.c.l.b16 %v375
    %v1733 = vunpack.c.h.b16 %v375
    %v1734 = vunpack.c.l.b16 %v376
    %v1735 = vunpack.c.h.b16 %v376
    %v1736 = vunpack.c.l.b16 %v377
    %v1737 = vunpack.c.h.b16 %v377
    %v1738 = vunpack.c.l.b16 %v378
    %v1739 = vunpack.c.h.b16 %v378
    %v1740 = vunpack.c.l.b16 %v379
    %v1741 = vunpack.c.h.b16 %v379
    %v1742 = vunpack.c.l.b16 %v380
    %v1743 = vunpack.c.h.b16 %v380
    %v1744 = vunpack.c.l.b16 %v381
    %v1745 = vunpack.c.h.b16 %v381
    %v1746 = vunpack.c.l.b16 %v382
    %v1747 = vunpack.c.h.b16 %v382
    %v1748 = vunpack.c.l.b16 %v383
    %v1749 = vunpack.c.h.b16 %v383
    %v1750 = vunpack.c.l.b16 %v384
    %v1751 = vunpack.c.h.b16 %v384
    %v1752 = vunpack.c.l.b16 %v385
    %v1753 = vunpack.c.h.b16 %v385
    %v1754 = vunpack.c.l.b16 %v386
    %v1755 = vunpack.c.h.b16 %v386
    %v1756 = vunpack.c.l.b16 %v387
    %v1757 = vunpack.c.h.b16 %v387
    %v1758 = vunpack.c.l.b16 %v388
    %v1759 = vunpack.c.h.b16 %v388
    %v1760 = vunpack.c.l.b16 %v389
    %v1761 = vunpack.c.h.b16 %v389
    %v1762 = vunpack.c.l.b16 %v390
    %v1763 = vunpack.c.h.b16 %v390
    %v1764 = vunpack.c.l.b16 %v391
    %v1765 = vunpack.c.h.b16 %v391
    %v1766 = vunpack.c.l.b16 %v392
    %v1767 = vunpack.c.h.b16 %v392
    %v1768 = vunpack.c.l.b16 %v393
    %v1769 = vunpack.c.h.b16 %v393
    %v1770 = vunpack.c.l.b16 %v394
    %v1771 = vunpack.c.h.b16 %v394
    %v1772 = vunpack.c.l.b16 %v395
    %v1773 = vunpack.c.h.b16 %v395
    %v1774 = vunpack.c.l.b16 %v396
    %v1775 = vunpack.c.h.b16 %v396
    %v1776 = vunpack.c.l.b16 %v397
    %v1777 = vunpack.c.h.b16 %v397
    %v1778 = vunpack.c.l.b16 %v398
    %v1779 = vunpack.c.h.b16 %v398
    %v1780 = vunpack.c.l.b16 %v399
    %v1781 = vunpack.c.h.b16 %v399
    %v1782 = vunpack.c.l.b16 %v400
    %v1783 = vunpack.c.h.b16 %v400
    %v1784 = vunpack.c.l.b16 %v401
    %v1785 = vunpack.c.h.b16 %v401
    %v1786 = vunpack.c.l.b16 %v402
    %v1787 = vunpack.c.h.b16 %v402
    %v1788 = vunpack.c.l.b16 %v403
    %v1789 = vunpack.c.h.b16 %v403
    %v1790 = vunpack.c.l.b16 %v404
    %v1791 = vunpack.c.h.b16 %v404
    %v1792 = vunpack.c.l.b16 %v405
    %v1793 = vunpack.c.h.b16 %v405
    %v1794 = vunpack.c.l.b16 %v406
    %v1795 = vunpack.c.h.b16 %v406
    %v1796 = vunpack.c.l.b16 %v407
    %v1797 = vunpack.c.h.b16 %v407
    %v1798 = vunpack.c.l.b16 %v408
    %v1799 = vunpack.c.h.b16 %v408
    %v1800 = vunpack.c.l.b16 %v409
    %v1801 = vunpack.c.h.b16 %v409
    %v1802 = vunpack.c.l.b16 %v410
    %v1803 = vunpack.c.h.b16 %v410
    %v1804 = vunpack.c.l.b16 %v411
    %v1805 = vunpack.c.h.b16 %v411
    %v1806 = vunpack.c.l.b16 %v412
    %v1807 = vunpack.c.h.b16 %v412
    %v1808 = vunpack.c.l.b16 %v413
    %v1809 = vunpack.c.h.b16 %v413
    %v1810 = vunpack.c.l.b16 %v414
    %v1811 = vunpack.c.h.b16 %v414
    %v1812 = vunpack.c.l.b16 %v415
    %v1813 = vunpack.c.h.b16 %v415
    %v1814 = vunpack.c.l.b16 %v416
    %v1815 = vunpack.c.h.b16 %v416
    %v1816 = vunpack.c.l.b16 %v417
    %v1817 = vunpack.c.h.b16 %v417
    %v1818 = vunpack.c.l.b16 %v418
    %v1819 = vunpack.c.h.b16 %v418
    %v1820 = vunpack.c.l.b16 %v419
    %v1821 = vunpack.c.h.b16 %v419
    %v1822 = vunpack.c.l.b16 %v420
    %v1823 = vunpack.c.h.b16 %v420
    %v1824 = vunpack.c.l.b16 %v421
    %v1825 = vunpack.c.h.b16 %v421
    %v1826 = vunpack.c.l.b16 %v422
    %v1827 = vunpack.c.h.b16 %v422
    %v1828 = vunpack.c.l.b16 %v423
    %v1829 = vunpack.c.h.b16 %v423
    %v1830 = vunpack.c.l.b16 %v424
    %v1831 = vunpack.c.h.b16 %v424
    %v1832 = vunpack.c.l.b16 %v425
    %v1833 = vunpack.c.h.b16 %v425
    %v1834 = vunpack.c.l.b16 %v426
    %v1835 = vunpack.c.h.b16 %v426
    %v1836 = vunpack.c.l.b16 %v427
    %v1837 = vunpack.c.h.b16 %v427
    %v1838 = vunpack.c.l.b16 %v428
    %v1839 = vunpack.c.h.b16 %v428
    %v1840 = vunpack.c.l.b16 %v429
    %v1841 = vunpack.c.h.b16 %v429
    %v1842 = vunpack.c.l.b16 %v430
    %v1843 = vunpack.c.h.b16 %v430
    %v1844 = vunpack.c.l.b16 %v431
    %v1845 = vunpack.c.h.b16 %v431
    %v1846 = vunpack.c.l.b16 %v432
    %v1847 = vunpack.c.h.b16 %v432
    %v1848 = vunpack.c.l.b16 %v433
    %v1849 = vunpack.c.h.b16 %v433
    %v1850 = vunpack.c.l.b16 %v434
    %v1851 = vunpack.c.h.b16 %v434
    %v1852 = vunpack.c.l.b16 %v435
    %v1853 = vunpack.c.h.b16 %v435
    %v1854 = vunpack.c.l.b16 %v436
    %v1855 = vunpack.c.h.b16 %v436
    %v1856 = vunpack.c.l.b16 %v437
    %v1857 = vunpack.c.h.b16 %v437
    %v1858 = vunpack.c.l.b16 %v438
    %v1859 = vunpack.c.h.b16 %v438
    %v1860 = vunpack.c.l.b16 %v439
    %v1861 = vunpack.c.h.b16 %v439
    %v1862 = vunpack.c.l.b16 %v440
    %v1863 = vunpack.c.h.b16 %v440
    %v1864 = vunpack.c.l.b16 %v441
    %v1865 = vunpack.c.h.b16 %v441
    %v1866 = vunpack.c.l.b16 %v442
    %v1867 = vunpack.c.h.b16 %v442
    %v1868 = vunpack.c.l.b16 %v443
    %v1869 = vunpack.c.h.b16 %v443
    %v1870 = vunpack.c.l.b16 %v444
    %v1871 = vunpack.c.h.b16 %v444
    %v1872 = vunpack.c.l.b16 %v445
    %v1873 = vunpack.c.h.b16 %v445
    %v1874 = vunpack.c.l.b16 %v446
    %v1875 = vunpack.c.h.b16 %v446
    %v1876 = vunpack.c.l.b16 %v447
    %v1877 = vunpack.c.h.b16 %v447
    %v1878 = vunpack.c.l.b16 %v448
    %v1879 = vunpack.c.h.b16 %v448
    %v1880 = vunpack.c.l.b16 %v449
    %v1881 = vunpack.c.h.b16 %v449
    %v1882 = vunpack.c.l.b16 %v450
    %v1883 = vunpack.c.h.b16 %v450
    %v1884 = vunpack.c.l.b16 %v451
    %v1885 = vunpack.c.h.b16 %v451
    %v1886 = vunpack.c.l.b16 %v452
    %v1887 = vunpack.c.h.b16 %v452
    %v1888 = vunpack.c.l.b16 %v453
    %v1889 = vunpack.c.h.b16 %v453
    %v1890 = vunpack.c.l.b16 %v454
    %v1891 = vunpack.c.h.b16 %v454
    %v1892 = vunpack.c.l.b16 %v455
    %v1893 = vunpack.c.h.b16 %v455
    %v1894 = vunpack.c.l.b16 %v456
    %v1895 = vunpack.c.h.b16 %v456
    %v1896 = vunpack.c.l.b16 %v457
    %v1897 = vunpack.c.h.b16 %v457
    %v1898 = vunpack.c.l.b16 %v458
    %v1899 = vunpack.c.h.b16 %v458
    %v1900 = vunpack.c.l.b16 %v459
    %v1901 = vunpack.c.h.b16 %v459
    %v1902 = vunpack.c.l.b16 %v460
    %v1903 = vunpack.c.h.b16 %v460
    %v1904 = vunpack.c.l.b16 %v461
    %v1905 = vunpack.c.h.b16 %v461
    %v1906 = vunpack.c.l.b16 %v462
    %v1907 = vunpack.c.h.b16 %v462
    %v1908 = vunpack.c.l.b16 %v463
    %v1909 = vunpack.c.h.b16 %v463
    %v1910 = vunpack.c.l.b16 %v464
    %v1911 = vunpack.c.h.b16 %v464
    %v1912 = vunpack.c.l.b16 %v465
    %v1913 = vunpack.c.h.b16 %v465
    %v1914 = vunpack.c.l.b16 %v466
    %v1915 = vunpack.c.h.b16 %v466
    %v1916 = vunpack.c.l.b16 %v467
    %v1917 = vunpack.c.h.b16 %v467
    %v1918 = vunpack.c.l.b16 %v468
    %v1919 = vunpack.c.h.b16 %v468
    %v1920 = vunpack.c.l.b16 %v469
    %v1921 = vunpack.c.h.b16 %v469
    %v1922 = vunpack.c.l.b16 %v470
    %v1923 = vunpack.c.h.b16 %v470
    %v1924 = vunpack.c.l.b16 %v471
    %v1925 = vunpack.c.h.b16 %v471
    %v1926 = vunpack.c.l.b16 %v472
    %v1927 = vunpack.c.h.b16 %v472
    %v1928 = vunpack.c.l.b16 %v473
    %v1929 = vunpack.c.h.b16 %v473
    %v1930 = vunpack.c.l.b16 %v474
    %v1931 = vunpack.c.h.b16 %v474
    %v1932 = vunpack.c.l.b16 %v475
    %v1933 = vunpack.c.h.b16 %v475
    %v1934 = vunpack.c.l.b16 %v476
    %v1935 = vunpack.c.h.b16 %v476
    %v1936 = vunpack.c.l.b16 %v477
    %v1937 = vunpack.c.h.b16 %v477
    %v1938 = vunpack.c.l.b16 %v478
    %v1939 = vunpack.c.h.b16 %v478
    %v1940 = vunpack.c.l.b16 %v479
    %v1941 = vunpack.c.h.b16 %v479
    %v1942 = vunpack.c.l.b16 %v480
    %v1943 = vunpack.c.h.b16 %v480
    %v1944 = vunpack.c.l.b16 %v481
    %v1945 = vunpack.c.h.b16 %v481
    %v1946 = vunpack.c.l.b16 %v482
    %v1947 = vunpack.c.h.b16 %v482
    %v1948 = vunpack.c.l.b16 %v483
    %v1949 = vunpack.c.h.b16 %v483
    %v1950 = vunpack.c.l.b16 %v484
    %v1951 = vunpack.c.h.b16 %v484
    %v1952 = vunpack.c.l.b16 %v485
    %v1953 = vunpack.c.h.b16 %v485
    %v1954 = vunpack.c.l.b16 %v486
    %v1955 = vunpack.c.h.b16 %v486
    %v1956 = vunpack.c.l.b16 %v487
    %v1957 = vunpack.c.h.b16 %v487
    %v1958 = vunpack.c.l.b16 %v488
    %v1959 = vunpack.c.h.b16 %v488
    %v1960 = vunpack.c.l.b16 %v489
    %v1961 = vunpack.c.h.b16 %v489
    %v1962 = vunpack.c.l.b16 %v490
    %v1963 = vunpack.c.h.b16 %v490
    %v1964 = vunpack.c.l.b16 %v491
    %v1965 = vunpack.c.h.b16 %v491
    %v1966 = vunpack.c.l.b16 %v492
    %v1967 = vunpack.c.h.b16 %v492
    %v1968 = vunpack.c.l.b16 %v493
    %v1969 = vunpack.c.h.b16 %v493
    %v1970 = vunpack.c.l.b16 %v494
    %v1971 = vunpack.c.h.b16 %v494
    %v1972 = vunpack.c.l.b16 %v495
    %v1973 = vunpack.c.h.b16 %v495
    %v1974 = vunpack.c.l.b16 %v496
    %v1975 = vunpack.c.h.b16 %v496
    %v1976 = vunpack.c.l.b16 %v497
    %v1977 = vunpack.c.h.b16 %v497
    %v1978 = vunpack.c.l.b16 %v498
    %v1979 = vunpack.c.h.b16 %v498
    %v1980 = vunpack.c.l.b16 %v499
    %v1981 = vunpack.c.h.b16 %v499
    %v1982 = vunpack.c.l.b16 %v500
    %v1983 = vunpack.c.h.b16 %v500
    %v1984 = vunpack.c.l.b16 %v501
    %v1985 = vunpack.c.h.b16 %v501
    %v1986 = vunpack.c.l.b16 %v502
    %v1987 = vunpack.c.h.b16 %v502
    %v1988 = vunpack.c.l.b16 %v503
    %v1989 = vunpack.c.h.b16 %v503
    %v1990 = vunpack.c.l.b16 %v504
    %v1991 = vunpack.c.h.b16 %v504
    %v1992 = vunpack.c.l.b16 %v505
    %v1993 = vunpack.c.h.b16 %v505
    %v1994 = vunpack.c.l.b16 %v506
    %v1995 = vunpack.c.h.b16 %v506
    %v1996 = vunpack.c.l.b16 %v507
    %v1997 = vunpack.c.h.b16 %v507
    %v1998 = vunpack.c.l.b16 %v508
    %v1999 = vunpack.c.h.b16 %v508
    %v2000 = vunpack.c.l.b16 %v509
    %v2001 = vunpack.c.h.b16 %v509
    %v2002 = vunpack.c.l.b16 %v510
    %v2003 = vunpack.c.h.b16 %v510
    %v2004 = vunpack.c.l.b16 %v511
    %v2005 = vunpack.c.h.b16 %v511
    %v2006 = vunpack.c.l.b16 %v512
    %v2007 = vunpack.c.h.b16 %v512
    %v2008 = vunpack.c.l.b16 %v513
    %v2009 = vunpack.c.h.b16 %v513
    %v2010 = vunpack.c.l.b16 %v514
    %v2011 = vunpack.c.h.b16 %v514
    %v2012 = vunpack.c.l.b16 %v515
    %v2013 = vunpack.c.h.b16 %v515
    %v2014 = vunpack.c.l.b16 %v516
    %v2015 = vunpack.c.h.b16 %v516
    %v2016 = vunpack.c.l.b16 %v517
    %v2017 = vunpack.c.h.b16 %v517
    %v2018 = vunpack.c.l.b16 %v518
    %v2019 = vunpack.c.h.b16 %v518
    %v2020 = vunpack.c.l.b16 %v519
    %v2021 = vunpack.c.h.b16 %v519
    %v2022 = vunpack.c.l.b16 %v520
    %v2023 = vunpack.c.h.b16 %v520
    %v2024 = vunpack.c.l.b16 %v521
    %v2025 = vunpack.c.h.b16 %v521
    %v2026 = vunpack.c.l.b16 %v522
    %v2027 = vunpack.c.h.b16 %v522
    %v2028 = vunpack.c.l.b16 %v523
    %v2029 = vunpack.c.h.b16 %v523
    %v2030 = vunpack.c.l.b16 %v524
    %v2031 = vunpack.c.h.b16 %v524
    %v2032 = vunpack.c.l.b16 %v525
    %v2033 = vunpack.c.h.b16 %v525
    %v2034 = vunpack.c.l.b16 %v526
    %v2035 = vunpack.c.h.b16 %v526
    %v2036 = vunpack.c.l.b16 %v527
    %v2037 = vunpack.c.h.b16 %v527
    %v2038 = vunpack.c.l.b16 %v528
    %v2039 = vunpack.c.h.b16 %v528
    %v2040 = vunpack.c.l.b16 %v529
    %v2041 = vunpack.c.h.b16 %v529
    %v2042 = vunpack.c.l.b16 %v530
    %v2043 = vunpack.c.h.b16 %v530
    %v2044 = vunpack.c.l.b16 %v531
    %v2045 = vunpack.c.h.b16 %v531
    %v2046 = vunpack.c.l.b16 %v532
    %v2047 = vunpack.c.h.b16 %v532
    %v2048 = vunpack.c.l.b16 %v533
    %v2049 = vunpack.c.h.b16 %v533
    %v2050 = vunpack.c.l.b16 %v534
    %v2051 = vunpack.c.h.b16 %v534
    %v2052 = vunpack.c.l.b16 %v535
    %v2053 = vunpack.c.h.b16 %v535
    %v2054 = vunpack.c.l.b16 %v536
    %v2055 = vunpack.c.h.b16 %v536
    %v2056 = vunpack.c.l.b16 %v537
    %v2057 = vunpack.c.h.b16 %v537
    %v2058 = vunpack.c.l.b16 %v538
    %v2059 = vunpack.c.h.b16 %v538
    %v2060 = vunpack.c.l.b16 %v539
    %v2061 = vunpack.c.h.b16 %v539
    %v2062 = vunpack.c.l.b16 %v540
    %v2063 = vunpack.c.h.b16 %v540
    %v2064 = vunpack.c.l.b16 %v541
    %v2065 = vunpack.c.h.b16 %v541
    %v2066 = vunpack.c.l.b16 %v542
    %v2067 = vunpack.c.h.b16 %v542
    %v2068 = vunpack.c.l.b16 %v543
    %v2069 = vunpack.c.h.b16 %v543
    %v2070 = vunpack.c.l.b16 %v544
    %v2071 = vunpack.c.h.b16 %v544
    %v2072 = vunpack.c.l.b16 %v545
    %v2073 = vunpack.c.h.b16 %v545
    %v2074 = vunpack.c.l.b16 %v546
    %v2075 = vunpack.c.h.b16 %v546
    %v2076 = vunpack.c.l.b16 %v547
    %v2077 = vunpack.c.h.b16 %v547
    %v2078 = vunpack.c.l.b16 %v548
    %v2079 = vunpack.c.h.b16 %v548
    %v2080 = vunpack.c.l.b16 %v549
    %v2081 = vunpack.c.h.b16 %v549
    %v2082 = vunpack.c.l.b16 %v550
    %v2083 = vunpack.c.h.b16 %v550
    %v2084 = vunpack.c.l.b16 %v551
    %v2085 = vunpack.c.h.b16 %v551
    %v2086 = vunpack.c.l.b16 %v552
    %v2087 = vunpack.c.h.b16 %v552
    %v2088 = vunpack.c.l.b16 %v553
    %v2089 = vunpack.c.h.b16 %v553
    %v2090 = vunpack.c.l.b16 %v554
    %v2091 = vunpack.c.h.b16 %v554
    %v2092 = vunpack.c.l.b16 %v555
    %v2093 = vunpack.c.h.b16 %v555
    %v2094 = vunpack.c.l.b16 %v556
    %v2095 = vunpack.c.h.b16 %v556
    %v2096 = vunpack.c.l.b16 %v557
    %v2097 = vunpack.c.h.b16 %v557
    %v2098 = vunpack.c.l.b16 %v558
    %v2099 = vunpack.c.h.b16 %v558
    %v2100 = vunpack.c.l.b16 %v559
    %v2101 = vunpack.c.h.b16 %v559
    %v2102 = vunpack.c.l.b16 %v560
    %v2103 = vunpack.c.h.b16 %v560
    %v2104 = vunpack.c.l.b16 %v561
    %v2105 = vunpack.c.h.b16 %v561
    %v2106 = vunpack.c.l.b16 %v562
    %v2107 = vunpack.c.h.b16 %v562
    %v2108 = vunpack.c.l.b16 %v563
    %v2109 = vunpack.c.h.b16 %v563
    %v2110 = vunpack.c.l.b16 %v564
    %v2111 = vunpack.c.h.b16 %v564
    %v2112 = vunpack.c.l.b16 %v565
    %v2113 = vunpack.c.h.b16 %v565
    %v2114 = vunpack.c.l.b16 %v566
    %v2115 = vunpack.c.h.b16 %v566
    %v2116 = vunpack.c.l.b16 %v567
    %v2117 = vunpack.c.h.b16 %v567
    %v2118 = vunpack.c.l.b16 %v568
    %v2119 = vunpack.c.h.b16 %v568
    %v2120 = vunpack.c.l.b16 %v569
    %v2121 = vunpack.c.h.b16 %v569
    %v2122 = vunpack.c.l.b16 %v570
    %v2123 = vunpack.c.h.b16 %v570
    %v2124 = vunpack.c.l.b16 %v571
    %v2125 = vunpack.c.h.b16 %v571
    %v2126 = vunpack.c.l.b16 %v572
    %v2127 = vunpack.c.h.b16 %v572
    %v2128 = vunpack.c.l.b16 %v573
    %v2129 = vunpack.c.h.b16 %v573
    %v2130 = vunpack.c.l.b16 %v574
    %v2131 = vunpack.c.h.b16 %v574
    %v2132 = vunpack.c.l.b16 %v575
    %v2133 = vunpack.c.h.b16 %v575
    %v2134 = vunpack.c.l.b16 %v576
    %v2135 = vunpack.c.h.b16 %v576
    %v2136 = vunpack.c.l.b16 %v577
    %v2137 = vunpack.c.h.b16 %v577
    %v2138 = vunpack.c.l.b16 %v578
    %v2139 = vunpack.c.h.b16 %v578
    %v2140 = vunpack.c.l.b16 %v579
    %v2141 = vunpack.c.h.b16 %v579
    %v2142 = vunpack.c.l.b16 %v580
    %v2143 = vunpack.c.h.b16 %v580
    %v2144 = vunpack.c.l.b16 %v581
    %v2145 = vunpack.c.h.b16 %v581
    %v2146 = vunpack.c.l.b16 %v582
    %v2147 = vunpack.c.h.b16 %v582
    %v2148 = vunpack.c.l.b16 %v583
    %v2149 = vunpack.c.h.b16 %v583
    %v2150 = vunpack.c.l.b16 %v584
    %v2151 = vunpack.c.h.b16 %v584
    %v2152 = vunpack.c.l.b16 %v585
    %v2153 = vunpack.c.h.b16 %v585
    %v2154 = vunpack.c.l.b16 %v586
    %v2155 = vunpack.c.h.b16 %v586
    %v2156 = vunpack.c.l.b16 %v587
    %v2157 = vunpack.c.h.b16 %v587
    %v2158 = vunpack.c.l.b16 %v588
    %v2159 = vunpack.c.h.b16 %v588
    %v2160 = vunpack.c.l.b16 %v589
    %v2161 = vunpack.c.h.b16 %v589
    %v2162 = vunpack.c.l.b16 %v590
    %v2163 = vunpack.c.h.b16 %v590
    %v2164 = vunpack.c.l.b16 %v591
    %v2165 = vunpack.c.h.b16 %v591
    %v2166 = vunpack.c.l.b16 %v592
    %v2167 = vunpack.c.h.b16 %v592
    %v2168 = vunpack.c.l.b16 %v593
    %v2169 = vunpack.c.h.b16 %v593
    %v2170 = vunpack.c.l.b16 %v594
    %v2171 = vunpack.c.h.b16 %v594
    %v2172 = vunpack.c.l.b16 %v595
    %v2173 = vunpack.c.h.b16 %v595
    %v2174 = vunpack.c.l.b16 %v596
    %v2175 = vunpack.c.h.b16 %v596
    %v2176 = vunpack.c.l.b16 %v597
    %v2177 = vunpack.c.h.b16 %v597
    %v2178 = vunpack.c.l.b16 %v598
    %v2179 = vunpack.c.h.b16 %v598
    %v2180 = vunpack.c.l.b16 %v599
    %v2181 = vunpack.c.h.b16 %v599
    %v2182 = vunpack.c.l.b16 %v600
    %v2183 = vunpack.c.h.b16 %v600
    %v2184 = vunpack.c.l.b16 %v601
    %v2185 = vunpack.c.h.b16 %v601
    %v2186 = vunpack.c.l.b16 %v602
    %v2187 = vunpack.c.h.b16 %v602
    %v2188 = vunpack.c.l.b16 %v603
    %v2189 = vunpack.c.h.b16 %v603
    %v2190 = vunpack.c.l.b16 %v604
    %v2191 = vunpack.c.h.b16 %v604
    %v2192 = vunpack.c.l.b16 %v605
    %v2193 = vunpack.c.h.b16 %v605
    %v2194 = vunpack.c.l.b16 %v606
    %v2195 = vunpack.c.h.b16 %v606
    %v2196 = vunpack.c.l.b16 %v607
    %v2197 = vunpack.c.h.b16 %v607
    %v2198 = vunpack.c.l.b16 %v608
    %v2199 = vunpack.c.h.b16 %v608
    %v2200 = vunpack.c.l.b16 %v609
    %v2201 = vunpack.c.h.b16 %v609
    %v2202 = vunpack.c.l.b16 %v610
    %v2203 = vunpack.c.h.b16 %v610
    %v2204 = vunpack.c.l.b16 %v611
    %v2205 = vunpack.c.h.b16 %v611
    %v2206 = vunpack.c.l.b16 %v612
    %v2207 = vunpack.c.h.b16 %v612
    %v2208 = vunpack.c.l.b16 %v613
    %v2209 = vunpack.c.h.b16 %v613
    %v2210 = vunpack.c.l.b16 %v614
    %v2211 = vunpack.c.h.b16 %v614
    %v2212 = vunpack.c.l.b16 %v615
    %v2213 = vunpack.c.h.b16 %v615
    %v2214 = vunpack.c.l.b16 %v616
    %v2215 = vunpack.c.h.b16 %v616
    %v2216 = vunpack.c.l.b16 %v617
    %v2217 = vunpack.c.h.b16 %v617
    %v2218 = vunpack.c.l.b16 %v618
    %v2219 = vunpack.c.h.b16 %v618
    %v2220 = vunpack.c.l.b16 %v619
    %v2221 = vunpack.c.h.b16 %v619
    %v2222 = vunpack.c.l.b16 %v620
    %v2223 = vunpack.c.h.b16 %v620
    %v2224 = vunpack.c.l.b16 %v621
    %v2225 = vunpack.c.h.b16 %v621
    %v2226 = vunpack.c.l.b16 %v622
    %v2227 = vunpack.c.h.b16 %v622
    %v2228 = vunpack.c.l.b16 %v623
    %v2229 = vunpack.c.h.b16 %v623
    %v2230 = vunpack.c.l.b16 %v624
    %v2231 = vunpack.c.h.b16 %v624
    %v2232 = vunpack.c.l.b16 %v625
    %v2233 = vunpack.c.h.b16 %v625
    %v2234 = vunpack.c.l.b16 %v626
    %v2235 = vunpack.c.h.b16 %v626
    %v2236 = vunpack.c.l.b16 %v627
    %v2237 = vunpack.c.h.b16 %v627
    %v2238 = vunpack.c.l.b16 %v628
    %v2239 = vunpack.c.h.b16 %v628
    %v2240 = vunpack.c.l.b16 %v629
    %v2241 = vunpack.c.h.b16 %v629
    %v2242 = vunpack.c.l.b16 %v630
    %v2243 = vunpack.c.h.b16 %v630
    %v2244 = vunpack.c.l.b16 %v631
    %v2245 = vunpack.c.h.b16 %v631
    %v2246 = vpack.c.b16 %v1226, %v1222
    %v2247 = vpack.c.b16 %v1227, %v1223
    %v2248 = vpack.c.b16 %v1228, %v1224
    %v2249 = vpack.c.b16 %v1229, %v1225
    %v2250 = vpack.c.b16 %v1234, %v1230
    %v2251 = vpack.c.b16 %v1235, %v1231
    %v2252 = vpack.c.b16 %v1236, %v1232
    %v2253 = vpack.c.b16 %v1237, %v1233
    %v2254 = vpack.c.b16 %v1242, %v1238
    %v2255 = vpack.c.b16 %v1243, %v1239
    %v2256 = vpack.c.b16 %v1244, %v1240
    %v2257 = vpack.c.b16 %v1245, %v1241
    %v2258 = vpack.c.b16 %v1250, %v1246
    %v2259 = vpack.c.b16 %v1251, %v1247
    %v2260 = vpack.c.b16 %v1252, %v1248
    %v2261 = vpack.c.b16 %v1253, %v1249
    %v2262 = vpack.c.b16 %v1258, %v1254
    %v2263 = vpack.c.b16 %v1259, %v1255
    %v2264 = vpack.c.b16 %v1260, %v1256
    %v2265 = vpack.c.b16 %v1261, %v1257
    %v2266 = vpack.c.b16 %v1266, %v1262
    %v2267 = vpack.c.b16 %v1267, %v1263
    %v2268 = vpack.c.b16 %v1268, %v1264
    %v2269 = vpack.c.b16 %v1269, %v1265
    %v2270 = vpack.c.b16 %v1274, %v1270
    %v2271 = vpack.c.b16 %v1275, %v1271
    %v2272 = vpack.c.b16 %v1276, %v1272
    %v2273 = vpack.c.b16 %v1277, %v1273
    %v2274 = vpack.c.b16 %v1282, %v1278
    %v2275 = vpack.c.b16 %v1283, %v1279
    %v2276 = vpack.c.b16 %v1284, %v1280
    %v2277 = vpack.c.b16 %v1285, %v1281
    %v2278 = vpack.c.b16 %v1290, %v1286
    %v2279 = vpack.c.b16 %v1291, %v1287
    %v2280 = vpack.c.b16 %v1292, %v1288
    %v2281 = vpack.c.b16 %v1293, %v1289
    %v2282 = vpack.c.b16 %v1298, %v1294
    %v2283 = vpack.c.b16 %v1299, %v1295
    %v2284 = vpack.c.b16 %v1300, %v1296
    %v2285 = vpack.c.b16 %v1301, %v1297
    %v2286 = vpack.c.b16 %v1306, %v1302
    %v2287 = vpack.c.b16 %v1307, %v1303
    %v2288 = vpack.c.b16 %v1308, %v1304
    %v2289 = vpack.c.b16 %v1309, %v1305
    %v2290 = vpack.c.b16 %v1314, %v1310
    %v2291 = vpack.c.b16 %v1315, %v1311
    %v2292 = vpack.c.b16 %v1316, %v1312
    %v2293 = vpack.c.b16 %v1317, %v1313
    %v2294 = vpack.c.b16 %v1322, %v1318
    %v2295 = vpack.c.b16 %v1323, %v1319
    %v2296 = vpack.c.b16 %v1324, %v1320
    %v2297 = vpack.c.b16 %v1325, %v1321
    %v2298 = vpack.c.b16 %v1330, %v1326
    %v2299 = vpack.c.b16 %v1331, %v1327
    %v2300 = vpack.c.b16 %v1332, %v1328
    %v2301 = vpack.c.b16 %v1333, %v1329
    %v2302 = vpack.c.b16 %v1338, %v1334
    %v2303 = vpack.c.b16 %v1339, %v1335
    %v2304 = vpack.c.b16 %v1340, %v1336
    %v2305 = vpack.c.b16 %v1341, %v1337
    %v2306 = vpack.c.b16 %v1346, %v1342
    %v2307 = vpack.c.b16 %v1347, %v1343
    %v2308 = vpack.c.b16 %v1348, %v1344
    %v2309 = vpack.c.b16 %v1349, %v1345
    %v2310 = vpack.c.b16 %v1354, %v1350
    %v2311 = vpack.c.b16 %v1355, %v1351
    %v2312 = vpack.c.b16 %v1356, %v1352
    %v2313 = vpack.c.b16 %v1357, %v1353
    %v2314 = vpack.c.b16 %v1362, %v1358
    %v2315 = vpack.c.b16 %v1363, %v1359
    %v2316 = vpack.c.b16 %v1364, %v1360
    %v2317 = vpack.c.b16 %v1365, %v1361
    %v2318 = vpack.c.b16 %v1370, %v1366
    %v2319 = vpack.c.b16 %v1371, %v1367
    %v2320 = vpack.c.b16 %v1372, %v1368
    %v2321 = vpack.c.b16 %v1373, %v1369
    %v2322 = vpack.c.b16 %v1378, %v1374
    %v2323 = vpack.c.b16 %v1379, %v1375
    %v2324 = vpack.c.b16 %v1380, %v1376
    %v2325 = vpack.c.b16 %v1381, %v1377
    %v2326 = vpack.c.b16 %v1386, %v1382
    %v2327 = vpack.c.b16 %v1387, %v1383
    %v2328 = vpack.c.b16 %v1388, %v1384
    %v2329 = vpack.c.b16 %v1389, %v1385
    %v2330 = vpack.c.b16 %v1394, %v1390
    %v2331 = vpack.c.b16 %v1395, %v1391
    %v2332 = vpack.c.b16 %v1396, %v1392
    %v2333 = vpack.c.b16 %v1397, %v1393
    %v2334 = vpack.c.b16 %v1402, %v1398
    %v2335 = vpack.c.b16 %v1403, %v1399
    %v2336 = vpack.c.b16 %v1404, %v1400
    %v2337 = vpack.c.b16 %v1405, %v1401
    %v2338 = vpack.c.b16 %v1410, %v1406
    %v2339 = vpack.c.b16 %v1411, %v1407
    %v2340 = vpack.c.b16 %v1412, %v1408
    %v2341 = vpack.c.b16 %v1413, %v1409
    %v2342 = vpack.c.b16 %v1418, %v1414
    %v2343 = vpack.c.b16 %v1419, %v1415
    %v2344 = vpack.c.b16 %v1420, %v1416
    %v2345 = vpack.c.b16 %v1421, %v1417
    %v2346 = vpack.c.b16 %v1426, %v1422
    %v2347 = vpack.c.b16 %v1427, %v1423
    %v2348 = vpack.c.b16 %v1428, %v1424
    %v2349 = vpack.c.b16 %v1429, %v1425
    %v2350 = vpack.c.b16 %v1434, %v1430
    %v2351 = vpack.c.b16 %v1435, %v1431
    %v2352 = vpack.c.b16 %v1436, %v1432
    %v2353 = vpack.c.b16 %v1437, %v1433
    %v2354 = vpack.c.b16 %v1442, %v1438
    %v2355 = vpack.c.b16 %v1443, %v1439
    %v2356 = vpack.c.b16 %v1444, %v1440
    %v2357 = vpack.c.b16 %v1445, %v1441
    %v2358 = vpack.c.b16 %v1450, %v1446
    %v2359 = vpack.c.b16 %v1451, %v1447
    %v2360 = vpack.c.b16 %v1452, %v1448
    %v2361 = vpack.c.b16 %v1453, %v1449
    %v2362 = vpack.c.b16 %v1458, %v1454
    %v2363 = vpack.c.b16 %v1459, %v1455
    %v2364 = vpack.c.b16 %v1460, %v1456
    %v2365 = vpack.c.b16 %v1461, %v1457
    %v2366 = vpack.c.b16 %v1466, %v1462
    %v2367 = vpack.c.b16 %v1467, %v1463
    %v2368 = vpack.c.b16 %v1468, %v1464
    %v2369 = vpack.c.b16 %v1469, %v1465
    %v2370 = vpack.c.b16 %v1474, %v1470
    %v2371 = vpack.c.b16 %v1475, %v1471
    %v2372 = vpack.c.b16 %v1476, %v1472
    %v2373 = vpack.c.b16 %v1477, %v1473
    %v2374 = vpack.c.b16 %v1482, %v1478
    %v2375 = vpack.c.b16 %v1483, %v1479
    %v2376 = vpack.c.b16 %v1484, %v1480
    %v2377 = vpack.c.b16 %v1485, %v1481
    %v2378 = vpack.c.b16 %v1490, %v1486
    %v2379 = vpack.c.b16 %v1491, %v1487
    %v2380 = vpack.c.b16 %v1492, %v1488
    %v2381 = vpack.c.b16 %v1493, %v1489
    %v2382 = vpack.c.b16 %v1498, %v1494
    %v2383 = vpack.c.b16 %v1499, %v1495
    %v2384 = vpack.c.b16 %v1500, %v1496
    %v2385 = vpack.c.b16 %v1501, %v1497
    %v2386 = vpack.c.b16 %v1506, %v1502
    %v2387 = vpack.c.b16 %v1507, %v1503
    %v2388 = vpack.c.b16 %v1508, %v1504
    %v2389 = vpack.c.b16 %v1509, %v1505
    %v2390 = vpack.c.b16 %v1514, %v1510
    %v2391 = vpack.c.b16 %v1515, %v1511
    %v2392 = vpack.c.b16 %v1516, %v1512
    %v2393 = vpack.c.b16 %v1517, %v1513
    %v2394 = vpack.c.b16 %v1522, %v1518
    %v2395 = vpack.c.b16 %v1523, %v1519
    %v2396 = vpack.c.b16 %v1524, %v1520
    %v2397 = vpack.c.b16 %v1525, %v1521
    %v2398 = vpack.c.b16 %v1530, %v1526
    %v2399 = vpack.c.b16 %v1531, %v1527
    %v2400 = vpack.c.b16 %v1532, %v1528
    %v2401 = vpack.c.b16 %v1533, %v1529
    %v2402 = vpack.c.b16 %v1538, %v1534
    %v2403 = vpack.c.b16 %v1539, %v1535
    %v2404 = vpack.c.b16 %v1540, %v1536
    %v2405 = vpack.c.b16 %v1541, %v1537
    %v2406 = vpack.c.b16 %v1546, %v1542
    %v2407 = vpack.c.b16 %v1547, %v1543
    %v2408 = vpack.c.b16 %v1548, %v1544
    %v2409 = vpack.c.b16 %v1549, %v1545
    %v2410 = vpack.c.b16 %v1554, %v1550
    %v2411 = vpack.c.b16 %v1555, %v1551
    %v2412 = vpack.c.b16 %v1556, %v1552
    %v2413 = vpack.c.b16 %v1557, %v1553
    %v2414 = vpack.c.b16 %v1562, %v1558
    %v2415 = vpack.c.b16 %v1563, %v1559
    %v2416 = vpack.c.b16 %v1564, %v1560
    %v2417 = vpack.c.b16 %v1565, %v1561
    %v2418 = vpack.c.b16 %v1570, %v1566
    %v2419 = vpack.c.b16 %v1571, %v1567
    %v2420 = vpack.c.b16 %v1572, %v1568
    %v2421 = vpack.c.b16 %v1573, %v1569
    %v2422 = vpack.c.b16 %v1578, %v1574
    %v2423 = vpack.c.b16 %v1579, %v1575
    %v2424 = vpack.c.b16 %v1580, %v1576
    %v2425 = vpack.c.b16 %v1581, %v1577
    %v2426 = vpack.c.b16 %v1586, %v1582
    %v2427 = vpack.c.b16 %v1587, %v1583
    %v2428 = vpack.c.b16 %v1588, %v1584
    %v2429 = vpack.c.b16 %v1589, %v1585
    %v2430 = vpack.c.b16 %v1594, %v1590
    %v2431 = vpack.c.b16 %v1595, %v1591
    %v2432 = vpack.c.b16 %v1596, %v1592
    %v2433 = vpack.c.b16 %v1597, %v1593
    %v2434 = vpack.c.b16 %v1602, %v1598
    %v2435 = vpack.c.b16 %v1603, %v1599
    %v2436 = vpack.c.b16 %v1604, %v1600
    %v2437 = vpack.c.b16 %v1605, %v1601
    %v2438 = vpack.c.b16 %v1610, %v1606
    %v2439 = vpack.c.b16 %v1611, %v1607
    %v2440 = vpack.c.b16 %v1612, %v1608
    %v2441 = vpack.c.b16 %v1613, %v1609
    %v2442 = vpack.c.b16 %v1618, %v1614
    %v2443 = vpack.c.b16 %v1619, %v1615
    %v2444 = vpack.c.b16 %v1620, %v1616
    %v2445 = vpack.c.b16 %v1621, %v1617
    %v2446 = vpack.c.b16 %v1626, %v1622
    %v2447 = vpack.c.b16 %v1627, %v1623
    %v2448 = vpack.c.b16 %v1628, %v1624
    %v2449 = vpack.c.b16 %v1629, %v1625
    %v2450 = vpack.c.b16 %v1634, %v1630
    %v2451 = vpack.c.b16 %v1635, %v1631
    %v2452 = vpack.c.b16 %v1636, %v1632
    %v2453 = vpack.c.b16 %v1637, %v1633
    %v2454 = vpack.c.b16 %v1642, %v1638
    %v2455 = vpack.c.b16 %v1643, %v1639
    %v2456 = vpack.c.b16 %v1644, %v1640
    %v2457 = vpack.c.b16 %v1645, %v1641
    %v2458 = vpack.c.b16 %v1650, %v1646
    %v2459 = vpack.c.b16 %v1651, %v1647
    %v2460 = vpack.c.b16 %v1652, %v1648
    %v2461 = vpack.c.b16 %v1653, %v1649
    %v2462 = vpack.c.b16 %v1658, %v1654
    %v2463 = vpack.c.b16 %v1659, %v1655
    %v2464 = vpack.c.b16 %v1660, %v1656
    %v2465 = vpack.c.b16 %v1661, %v1657
    %v2466 = vpack.c.b16 %v1666, %v1662
    %v2467 = vpack.c.b16 %v1667, %v1663
    %v2468 = vpack.c.b16 %v1668, %v1664
    %v2469 = vpack.c.b16 %v1669, %v1665
    %v2470 = vpack.c.b16 %v1674, %v1670
    %v2471 = vpack.c.b16 %v1675, %v1671
    %v2472 = vpack.c.b16 %v1676, %v1672
    %v2473 = vpack.c.b16 %v1677, %v1673
    %v2474 = vpack.c.b16 %v1682, %v1678
    %v2475 = vpack.c.b16 %v1683, %v1679
    %v2476 = vpack.c.b16 %v1684, %v1680
    %v2477 = vpack.c.b16 %v1685, %v1681
    %v2478 = vpack.c.b16 %v1690, %v1686
    %v2479 = vpack.c.b16 %v1691, %v1687
    %v2480 = vpack.c.b16 %v1692, %v1688
    %v2481 = vpack.c.b16 %v1693, %v1689
    %v2482 = vpack.c.b16 %v1698, %v1694
    %v2483 = vpack.c.b16 %v1699, %v1695
    %v2484 = vpack.c.b16 %v1700, %v1696
    %v2485 = vpack.c.b16 %v1701, %v1697
    %v2486 = vpack.c.b16 %v1706, %v1702
    %v2487 = vpack.c.b16 %v1707, %v1703
    %v2488 = vpack.c.b16 %v1708, %v1704
    %v2489 = vpack.c.b16 %v1709, %v1705
    %v2490 = vpack.c.b16 %v1714, %v1710
    %v2491 = vpack.c.b16 %v1715, %v1711
    %v2492 = vpack.c.b16 %v1716, %v1712
    %v2493 = vpack.c.b16 %v1717, %v1713
    %v2494 = vpack.c.b16 %v1722, %v1718
    %v2495 = vpack.c.b16 %v1723, %v1719
    %v2496 = vpack.c.b16 %v1724, %v1720
    %v2497 = vpack.c.b16 %v1725, %v1721
    %v2498 = vpack.c.b16 %v1730, %v1726
    %v2499 = vpack.c.b16 %v1731, %v1727
    %v2500 = vpack.c.b16 %v1732, %v1728
    %v2501 = vpack.c.b16 %v1733, %v1729
    %v2502 = vpack.c.b16 %v1738, %v1734
    %v2503 = vpack.c.b16 %v1739, %v1735
    %v2504 = vpack.c.b16 %v1740, %v1736
    %v2505 = vpack.c.b16 %v1741, %v1737
    %v2506 = vpack.c.b16 %v1746, %v1742
    %v2507 = vpack.c.b16 %v1747, %v1743
    %v2508 = vpack.c.b16 %v1748, %v1744
    %v2509 = vpack.c.b16 %v1749, %v1745
    %v2510 = vpack.c.b16 %v1754, %v1750
    %v2511 = vpack.c.b16 %v1755, %v1751
    %v2512 = vpack.c.b16 %v1756, %v1752
    %v2513 = vpack.c.b16 %v1757, %v1753
    %v2514 = vpack.c.b16 %v1762, %v1758
    %v2515 = vpack.c.b16 %v1763, %v1759
    %v2516 = vpack.c.b16 %v1764, %v1760
    %v2517 = vpack.c.b16 %v1765, %v1761
    %v2518 = vpack.c.b16 %v1770, %v1766
    %v2519 = vpack.c.b16 %v1771, %v1767
    %v2520 = vpack.c.b16 %v1772, %v1768
    %v2521 = vpack.c.b16 %v1773, %v1769
    %v2522 = vpack.c.b16 %v1778, %v1774
    %v2523 = vpack.c.b16 %v1779, %v1775
    %v2524 = vpack.c.b16 %v1780, %v1776
    %v2525 = vpack.c.b16 %v1781, %v1777
    %v2526 = vpack.c.b16 %v1786, %v1782
    %v2527 = vpack.c.b16 %v1787, %v1783
    %v2528 = vpack.c.b16 %v1788, %v1784
    %v2529 = vpack.c.b16 %v1789, %v1785
    %v2530 = vpack.c.b16 %v1794, %v1790
    %v2531 = vpack.c.b16 %v1795, %v1791
    %v2532 = vpack.c.b16 %v1796, %v1792
    %v2533 = vpack.c.b16 %v1797, %v1793
    %v2534 = vpack.c.b16 %v1802, %v1798
    %v2535 = vpack.c.b16 %v1803, %v1799
    %v2536 = vpack.c.b16 %v1804, %v1800
    %v2537 = vpack.c.b16 %v1805, %v1801
    %v2538 = vpack.c.b16 %v1810, %v1806
    %v2539 = vpack.c.b16 %v1811, %v1807
    %v2540 = vpack.c.b16 %v1812, %v1808
    %v2541 = vpack.c.b16 %v1813, %v1809
    %v2542 = vpack.c.b16 %v1818, %v1814
    %v2543 = vpack.c.b16 %v1819, %v1815
    %v2544 = vpack.c.b16 %v1820, %v1816
    %v2545 = vpack.c.b16 %v1821, %v1817
    %v2546 = vpack.c.b16 %v1826, %v1822
    %v2547 = vpack.c.b16 %v1827, %v1823
    %v2548 = vpack.c.b16 %v1828, %v1824
    %v2549 = vpack.c.b16 %v1829, %v1825
    %v2550 = vpack.c.b16 %v1834, %v1830
    %v2551 = vpack.c.b16 %v1835, %v1831
    %v2552 = vpack.c.b16 %v1836, %v1832
    %v2553 = vpack.c.b16 %v1837, %v1833
    %v2554 = vpack.c.b16 %v1842, %v1838
    %v2555 = vpack.c.b16 %v1843, %v1839
    %v2556 = vpack.c.b16 %v1844, %v1840
    %v2557 = vpack.c.b16 %v1845, %v1841
    %v2558 = vpack.c.b16 %v1850, %v1846
    %v2559 = vpack.c.b16 %v1851, %v1847
    %v2560 = vpack.c.b16 %v1852, %v1848
    %v2561 = vpack.c.b16 %v1853, %v1849
    %v2562 = vpack.c.b16 %v1858, %v1854
    %v2563 = vpack.c.b16 %v1859, %v1855
    %v2564 = vpack.c.b16 %v1860, %v1856
    %v2565 = vpack.c.b16 %v1861, %v1857
    %v2566 = vpack.c.b16 %v1866, %v1862
    %v2567 = vpack.c.b16 %v1867, %v1863
    %v2568 = vpack.c.b16 %v1868, %v1864
    %v2569 = vpack.c.b16 %v1869, %v1865
    %v2570 = vpack.c.b16 %v1874, %v1870
    %v2571 = vpack.c.b16 %v1875, %v1871
    %v2572 = vpack.c.b16 %v1876, %v1872
    %v2573 = vpack.c.b16 %v1877, %v1873
    %v2574 = vpack.c.b16 %v1882, %v1878
    %v2575 = vpack.c.b16 %v1883, %v1879
    %v2576 = vpack.c.b16 %v1884, %v1880
    %v2577 = vpack.c.b16 %v1885, %v1881
    %v2578 = vpack.c.b16 %v1890, %v1886
    %v2579 = vpack.c.b16 %v1891, %v1887
    %v2580 = vpack.c.b16 %v1892, %v1888
    %v2581 = vpack.c.b16 %v1893, %v1889
    %v2582 = vpack.c.b16 %v1898, %v1894
    %v2583 = vpack.c.b16 %v1899, %v1895
    %v2584 = vpack.c.b16 %v1900, %v1896
    %v2585 = vpack.c.b16 %v1901, %v1897
    %v2586 = vpack.c.b16 %v1906, %v1902
    %v2587 = vpack.c.b16 %v1907, %v1903
    %v2588 = vpack.c.b16 %v1908, %v1904
    %v2589 = vpack.c.b16 %v1909, %v1905
    %v2590 = vpack.c.b16 %v1914, %v1910
    %v2591 = vpack.c.b16 %v1915, %v1911
    %v2592 = vpack.c.b16 %v1916, %v1912
    %v2593 = vpack.c.b16 %v1917, %v1913
    %v2594 = vpack.c.b16 %v1922, %v1918
    %v2595 = vpack.c.b16 %v1923, %v1919
    %v2596 = vpack.c.b16 %v1924, %v1920
    %v2597 = vpack.c.b16 %v1925, %v1921
    %v2598 = vpack.c.b16 %v1930, %v1926
    %v2599 = vpack.c.b16 %v1931, %v1927
    %v2600 = vpack.c.b16 %v1932, %v1928
    %v2601 = vpack.c.b16 %v1933, %v1929
    %v2602 = vpack.c.b16 %v1938, %v1934
    %v2603 = vpack.c.b16 %v1939, %v1935
    %v2604 = vpack.c.b16 %v1940, %v1936
    %v2605 = vpack.c.b16 %v1941, %v1937
    %v2606 = vpack.c.b16 %v1946, %v1942
    %v2607 = vpack.c.b16 %v1947, %v1943
    %v2608 = vpack.c.b16 %v1948, %v1944
    %v2609 = vpack.c.b16 %v1949, %v1945
    %v2610 = vpack.c.b16 %v1954, %v1950
    %v2611 = vpack.c.b16 %v1955, %v1951
    %v2612 = vpack.c.b16 %v1956, %v1952
    %v2613 = vpack.c.b16 %v1957, %v1953
    %v2614 = vpack.c.b16 %v1962, %v1958
    %v2615 = vpack.c.b16 %v1963, %v1959
    %v2616 = vpack.c.b16 %v1964, %v1960
    %v2617 = vpack.c.b16 %v1965, %v1961
    %v2618 = vpack.c.b16 %v1970, %v1966
    %v2619 = vpack.c.b16 %v1971, %v1967
    %v2620 = vpack.c.b16 %v1972, %v1968
    %v2621 = vpack.c.b16 %v1973, %v1969
    %v2622 = vpack.c.b16 %v1978, %v1974
    %v2623 = vpack.c.b16 %v1979, %v1975
    %v2624 = vpack.c.b16 %v1980, %v1976
    %v2625 = vpack.c.b16 %v1981, %v1977
    %v2626 = vpack.c.b16 %v1986, %v1982
    %v2627 = vpack.c.b16 %v1987, %v1983
    %v2628 = vpack.c.b16 %v1988, %v1984
    %v2629 = vpack.c.b16 %v1989, %v1985
    %v2630 = vpack.c.b16 %v1994, %v1990
    %v2631 = vpack.c.b16 %v1995, %v1991
    %v2632 = vpack.c.b16 %v1996, %v1992
    %v2633 = vpack.c.b16 %v1997, %v1993
    %v2634 = vpack.c.b16 %v2002, %v1998
    %v2635 = vpack.c.b16 %v2003, %v1999
    %v2636 = vpack.c.b16 %v2004, %v2000
    %v2637 = vpack.c.b16 %v2005, %v2001
    %v2638 = vpack.c.b16 %v2010, %v2006
    %v2639 = vpack.c.b16 %v2011, %v2007
    %v2640 = vpack.c.b16 %v2012, %v2008
    %v2641 = vpack.c.b16 %v2013, %v2009
    %v2642 = vpack.c.b16 %v2018, %v2014
    %v2643 = vpack.c.b16 %v2019, %v2015
    %v2644 = vpack.c.b16 %v2020, %v2016
    %v2645 = vpack.c.b16 %v2021, %v2017
    %v2646 = vpack.c.b16 %v2026, %v2022
    %v2647 = vpack.c.b16 %v2027, %v2023
    %v2648 = vpack.c.b16 %v2028, %v2024
    %v2649 = vpack.c.b16 %v2029, %v2025
    %v2650 = vpack.c.b16 %v2034, %v2030
    %v2651 = vpack.c.b16 %v2035, %v2031
    %v2652 = vpack.c.b16 %v2036, %v2032
    %v2653 = vpack.c.b16 %v2037, %v2033
    %v2654 = vpack.c.b16 %v2042, %v2038
    %v2655 = vpack.c.b16 %v2043, %v2039
    %v2656 = vpack.c.b16 %v2044, %v2040
    %v2657 = vpack.c.b16 %v2045, %v2041
    %v2658 = vpack.c.b16 %v2050, %v2046
    %v2659 = vpack.c.b16 %v2051, %v2047
    %v2660 = vpack.c.b16 %v2052, %v2048
    %v2661 = vpack.c.b16 %v2053, %v2049
    %v2662 = vpack.c.b16 %v2058, %v2054
    %v2663 = vpack.c.b16 %v2059, %v2055
    %v2664 = vpack.c.b16 %v2060, %v2056
    %v2665 = vpack.c.b16 %v2061, %v2057
    %v2666 = vpack.c.b16 %v2066, %v2062
    %v2667 = vpack.c.b16 %v2067, %v2063
    %v2668 = vpack.c.b16 %v2068, %v2064
    %v2669 = vpack.c.b16 %v2069, %v2065
    %v2670 = vpack.c.b16 %v2074, %v2070
    %v2671 = vpack.c.b16 %v2075, %v2071
    %v2672 = vpack.c.b16 %v2076, %v2072
    %v2673 = vpack.c.b16 %v2077, %v2073
    %v2674 = vpack.c.b16 %v2082, %v2078
    %v2675 = vpack.c.b16 %v2083, %v2079
    %v2676 = vpack.c.b16 %v2084, %v2080
    %v2677 = vpack.c.b16 %v2085, %v2081
    %v2678 = vpack.c.b16 %v2090, %v2086
    %v2679 = vpack.c.b16 %v2091, %v2087
    %v2680 = vpack.c.b16 %v2092, %v2088
    %v2681 = vpack.c.b16 %v2093, %v2089
    %v2682 = vpack.c.b16 %v2098, %v2094
    %v2683 = vpack.c.b16 %v2099, %v2095
    %v2684 = vpack.c.b16 %v2100, %v2096
    %v2685 = vpack.c.b16 %v2101, %v2097
    %v2686 = vpack.c.b16 %v2106, %v2102
    %v2687 = vpack.c.b16 %v2107, %v2103
    %v2688 = vpack.c.b16 %v2108, %v2104
    %v2689 = vpack.c.b16 %v2109, %v2105
    %v2690 = vpack.c.b16 %v2114, %v2110
    %v2691 = vpack.c.b16 %v2115, %v2111
    %v2692 = vpack.c.b16 %v2116, %v2112
    %v2693 = vpack.c.b16 %v2117, %v2113
    %v2694 = vpack.c.b16 %v2122, %v2118
    %v2695 = vpack.c.b16 %v2123, %v2119
    %v2696 = vpack.c.b16 %v2124, %v2120
    %v2697 = vpack.c.b16 %v2125, %v2121
    %v2698 = vpack.c.b16 %v2130, %v2126
    %v2699 = vpack.c.b16 %v2131, %v2127
    %v2700 = vpack.c.b16 %v2132, %v2128
    %v2701 = vpack.c.b16 %v2133, %v2129
    %v2702 = vpack.c.b16 %v2138, %v2134
    %v2703 = vpack.c.b16 %v2139, %v2135
    %v2704 = vpack.c.b16 %v2140, %v2136
    %v2705 = vpack.c.b16 %v2141, %v2137
    %v2706 = vpack.c.b16 %v2146, %v2142
    %v2707 = vpack.c.b16 %v2147, %v2143
    %v2708 = vpack.c.b16 %v2148, %v2144
    %v2709 = vpack.c.b16 %v2149, %v2145
    %v2710 = vpack.c.b16 %v2154, %v2150
    %v2711 = vpack.c.b16 %v2155, %v2151
    %v2712 = vpack.c.b16 %v2156, %v2152
    %v2713 = vpack.c.b16 %v2157, %v2153
    %v2714 = vpack.c.b16 %v2162, %v2158
    %v2715 = vpack.c.b16 %v2163, %v2159
    %v2716 = vpack.c.b16 %v2164, %v2160
    %v2717 = vpack.c.b16 %v2165, %v2161
    %v2718 = vpack.c.b16 %v2170, %v2166
    %v2719 = vpack.c.b16 %v2171, %v2167
    %v2720 = vpack.c.b16 %v2172, %v2168
    %v2721 = vpack.c.b16 %v2173, %v2169
    %v2722 = vpack.c.b16 %v2178, %v2174
    %v2723 = vpack.c.b16 %v2179, %v2175
    %v2724 = vpack.c.b16 %v2180, %v2176
    %v2725 = vpack.c.b16 %v2181, %v2177
    %v2726 = vpack.c.b16 %v2186, %v2182
    %v2727 = vpack.c.b16 %v2187, %v2183
    %v2728 = vpack.c.b16 %v2188, %v2184
    %v2729 = vpack.c.b16 %v2189, %v2185
    %v2730 = vpack.c.b16 %v2194, %v2190
    %v2731 = vpack.c.b16 %v2195, %v2191
    %v2732 = vpack.c.b16 %v2196, %v2192
    %v2733 = vpack.c.b16 %v2197, %v2193
    %v2734 = vpack.c.b16 %v2202, %v2198
    %v2735 = vpack.c.b16 %v2203, %v2199
    %v2736 = vpack.c.b16 %v2204, %v2200
    %v2737 = vpack.c.b16 %v2205, %v2201
    %v2738 = vpack.c.b16 %v2210, %v2206
    %v2739 = vpack.c.b16 %v2211, %v2207
    %v2740 = vpack.c.b16 %v2212, %v2208
    %v2741 = vpack.c.b16 %v2213, %v2209
    %v2742 = vpack.c.b16 %v2218, %v2214
    %v2743 = vpack.c.b16 %v2219, %v2215
    %v2744 = vpack.c.b16 %v2220, %v2216
    %v2745 = vpack.c.b16 %v2221, %v2217
    %v2746 = vpack.c.b16 %v2226, %v2222
    %v2747 = vpack.c.b16 %v2227, %v2223
    %v2748 = vpack.c.b16 %v2228, %v2224
    %v2749 = vpack.c.b16 %v2229, %v2225
    %v2750 = vpack.c.b16 %v2234, %v2230
    %v2751 = vpack.c.b16 %v2235, %v2231
    %v2752 = vpack.c.b16 %v2236, %v2232
    %v2753 = vpack.c.b16 %v2237, %v2233
    %v2754 = vpack.c.b16 %v2242, %v2238
    %v2755 = vpack.c.b16 %v2243, %v2239
    %v2756 = vpack.c.b16 %v2244, %v2240
    %v2757 = vpack.c.b16 %v2245, %v2241
    %3270 = vmatprep.subr.bf16.mxu0 %v2275
    %3271 = vmatpush1.bf16.msra.mxu0 %v2274
    %3272 = vmatprep.subr.bf16.mxu0 %v2271
    %3273 = vmatpush1.bf16.msra.mxu0 %v2270
    %3274 = vmatprep.subr.bf16.mxu0 %v2267
    %3275 = vmatpush1.bf16.msra.mxu0 %v2266
    %3276 = vmatprep.subr.bf16.mxu0 %v2263
    %3277 = vmatpush1.bf16.msra.mxu0 %v2262
    %3278 = vmatprep.subr.bf16.mxu0 %v2259
    %3279 = vmatpush1.bf16.msra.mxu0 %v2258
    %3280 = vmatprep.subr.bf16.mxu0 %v2255
    %3281 = vmatpush1.bf16.msra.mxu0 %v2254
    %3282 = vmatprep.subr.bf16.mxu0 %v2251
    %3283 = vmatpush1.bf16.msra.mxu0 %v2250
    %3284 = vmatprep.subr.bf16.mxu0 %v2247
    %3285 = vmatpush1.bf16.msra.mxu0 %v2246
    %3286 = vmatprep.subr.bf16.mxu0 %v2307
    %3287 = vmatpush2.bf16.msra.mxu0 %v2306
    %3288 = vmatprep.subr.bf16.mxu0 %v2303
    %3289 = vmatpush2.bf16.msra.mxu0 %v2302
    %3290 = vmatprep.subr.bf16.mxu0 %v2299
    %3291 = vmatpush2.bf16.msra.mxu0 %v2298
    %3292 = vmatprep.subr.bf16.mxu0 %v2295
    %3293 = vmatpush2.bf16.msra.mxu0 %v2294
    %3294 = vmatprep.subr.bf16.mxu0 %v2291
    %3295 = vmatpush2.bf16.msra.mxu0 %v2290
    %3296 = vmatprep.subr.bf16.mxu0 %v2287
    %3297 = vmatpush2.bf16.msra.mxu0 %v2286
    %3298 = vmatprep.subr.bf16.mxu0 %v2283
    %3299 = vmatpush2.bf16.msra.mxu0 %v2282
    %3300 = vmatprep.subr.bf16.mxu0 %v2279
    %3301 = vmatpush2.bf16.msra.mxu0 %v2278
    %3302 = vmatprep.mubr.bf16.mxu0 %v679
    %3303 = vmatmul.mubr.bf16.gmra.mxu0 %v678
    %v3304 = vpop.f32.mrf.mxu0
    %v3305 = vadd.f32 %v637, %v3304
    %v3306 = vpop.f32.mrf.mxu0
    %v3307 = vadd.f32 %v641, %v3306
    %v3308 = vpop.f32.mrf.mxu0
    %v3309 = vpop.f32.mrf.mxu0
    %3310 = vdwg.mxu0
    %3311 = vmatprep.subr.bf16.mxu0 %v2339
    %3312 = vmatpush1.bf16.msra.mxu0 %v2338
    %3313 = vmatprep.subr.bf16.mxu0 %v2335
    %3314 = vmatpush1.bf16.msra.mxu0 %v2334
    %3315 = vmatprep.subr.bf16.mxu0 %v2331
    %3316 = vmatpush1.bf16.msra.mxu0 %v2330
    %3317 = vmatprep.subr.bf16.mxu0 %v2327
    %3318 = vmatpush1.bf16.msra.mxu0 %v2326
    %3319 = vmatprep.subr.bf16.mxu0 %v2323
    %3320 = vmatpush1.bf16.msra.mxu0 %v2322
    %3321 = vmatprep.subr.bf16.mxu0 %v2319
    %3322 = vmatpush1.bf16.msra.mxu0 %v2318
    %3323 = vmatprep.subr.bf16.mxu0 %v2315
    %3324 = vmatpush1.bf16.msra.mxu0 %v2314
    %3325 = vmatprep.subr.bf16.mxu0 %v2311
    %3326 = vmatpush1.bf16.msra.mxu0 %v2310
    %3327 = vmatprep.subr.bf16.mxu0 %v2371
    %3328 = vmatpush2.bf16.msra.mxu0 %v2370
    %3329 = vmatprep.subr.bf16.mxu0 %v2367
    %3330 = vmatpush2.bf16.msra.mxu0 %v2366
    %3331 = vmatprep.subr.bf16.mxu0 %v2363
    %3332 = vmatpush2.bf16.msra.mxu0 %v2362
    %3333 = vmatprep.subr.bf16.mxu0 %v2359
    %3334 = vmatpush2.bf16.msra.mxu0 %v2358
    %3335 = vmatprep.subr.bf16.mxu0 %v2355
    %3336 = vmatpush2.bf16.msra.mxu0 %v2354
    %3337 = vmatprep.subr.bf16.mxu0 %v2351
    %3338 = vmatpush2.bf16.msra.mxu0 %v2350
    %3339 = vmatprep.subr.bf16.mxu0 %v2347
    %3340 = vmatpush2.bf16.msra.mxu0 %v2346
    %3341 = vmatprep.subr.bf16.mxu0 %v2343
    %3342 = vmatpush2.bf16.msra.mxu0 %v2342
    %3343 = vmatprep.mubr.bf16.mxu0 %v681
    %3344 = vmatmul.mubr.bf16.gmra.mxu0 %v680
    %v3345 = vpop.f32.mrf.mxu0
    %v3346 = vadd.f32 %v3305, %v3345
    %v3347 = vpop.f32.mrf.mxu0
    %v3348 = vadd.f32 %v3307, %v3347
    %v3349 = vpop.f32.mrf.mxu0
    %v3350 = vpop.f32.mrf.mxu0
    %3351 = vdwg.mxu0
    %3352 = vmatprep.subr.bf16.mxu0 %v2403
    %3353 = vmatpush1.bf16.msra.mxu0 %v2402
    %3354 = vmatprep.subr.bf16.mxu0 %v2399
    %3355 = vmatpush1.bf16.msra.mxu0 %v2398
    %3356 = vmatprep.subr.bf16.mxu0 %v2395
    %3357 = vmatpush1.bf16.msra.mxu0 %v2394
    %3358 = vmatprep.subr.bf16.mxu0 %v2391
    %3359 = vmatpush1.bf16.msra.mxu0 %v2390
    %3360 = vmatprep.subr.bf16.mxu0 %v2387
    %3361 = vmatpush1.bf16.msra.mxu0 %v2386
    %3362 = vmatprep.subr.bf16.mxu0 %v2383
    %3363 = vmatpush1.bf16.msra.mxu0 %v2382
    %3364 = vmatprep.subr.bf16.mxu0 %v2379
    %3365 = vmatpush1.bf16.msra.mxu0 %v2378
    %3366 = vmatprep.subr.bf16.mxu0 %v2375
    %3367 = vmatpush1.bf16.msra.mxu0 %v2374
    %3368 = vmatprep.subr.bf16.mxu0 %v2435
    %3369 = vmatpush2.bf16.msra.mxu0 %v2434
    %3370 = vmatprep.subr.bf16.mxu0 %v2431
    %3371 = vmatpush2.bf16.msra.mxu0 %v2430
    %3372 = vmatprep.subr.bf16.mxu0 %v2427
    %3373 = vmatpush2.bf16.msra.mxu0 %v2426
    %3374 = vmatprep.subr.bf16.mxu0 %v2423
    %3375 = vmatpush2.bf16.msra.mxu0 %v2422
    %3376 = vmatprep.subr.bf16.mxu0 %v2419
    %3377 = vmatpush2.bf16.msra.mxu0 %v2418
    %3378 = vmatprep.subr.bf16.mxu0 %v2415
    %3379 = vmatpush2.bf16.msra.mxu0 %v2414
    %3380 = vmatprep.subr.bf16.mxu0 %v2411
    %3381 = vmatpush2.bf16.msra.mxu0 %v2410
    %3382 = vmatprep.subr.bf16.mxu0 %v2407
    %3383 = vmatpush2.bf16.msra.mxu0 %v2406
    %3384 = vmatprep.mubr.bf16.mxu0 %v683
    %3385 = vmatmul.mubr.bf16.gmra.mxu0 %v682
    %v3386 = vpop.f32.mrf.mxu0
    %v3387 = vadd.f32 %v3346, %v3386
    %v3388 = vpop.f32.mrf.mxu0
    %v3389 = vadd.f32 %v3348, %v3388
    %v3390 = vpop.f32.mrf.mxu0
    %v3391 = vpop.f32.mrf.mxu0
    %3392 = vdwg.mxu0
    %3393 = vmatprep.subr.bf16.mxu0 %v2467
    %3394 = vmatpush1.bf16.msra.mxu0 %v2466
    %3395 = vmatprep.subr.bf16.mxu0 %v2463
    %3396 = vmatpush1.bf16.msra.mxu0 %v2462
    %3397 = vmatprep.subr.bf16.mxu0 %v2459
    %3398 = vmatpush1.bf16.msra.mxu0 %v2458
    %3399 = vmatprep.subr.bf16.mxu0 %v2455
    %3400 = vmatpush1.bf16.msra.mxu0 %v2454
    %3401 = vmatprep.subr.bf16.mxu0 %v2451
    %3402 = vmatpush1.bf16.msra.mxu0 %v2450
    %3403 = vmatprep.subr.bf16.mxu0 %v2447
    %3404 = vmatpush1.bf16.msra.mxu0 %v2446
    %3405 = vmatprep.subr.bf16.mxu0 %v2443
    %3406 = vmatpush1.bf16.msra.mxu0 %v2442
    %3407 = vmatprep.subr.bf16.mxu0 %v2439
    %3408 = vmatpush1.bf16.msra.mxu0 %v2438
    %3409 = vmatprep.subr.bf16.mxu0 %v2499
    %3410 = vmatpush2.bf16.msra.mxu0 %v2498
    %3411 = vmatprep.subr.bf16.mxu0 %v2495
    %3412 = vmatpush2.bf16.msra.mxu0 %v2494
    %3413 = vmatprep.subr.bf16.mxu0 %v2491
    %3414 = vmatpush2.bf16.msra.mxu0 %v2490
    %3415 = vmatprep.subr.bf16.mxu0 %v2487
    %3416 = vmatpush2.bf16.msra.mxu0 %v2486
    %3417 = vmatprep.subr.bf16.mxu0 %v2483
    %3418 = vmatpush2.bf16.msra.mxu0 %v2482
    %3419 = vmatprep.subr.bf16.mxu0 %v2479
    %3420 = vmatpush2.bf16.msra.mxu0 %v2478
    %3421 = vmatprep.subr.bf16.mxu0 %v2475
    %3422 = vmatpush2.bf16.msra.mxu0 %v2474
    %3423 = vmatprep.subr.bf16.mxu0 %v2471
    %3424 = vmatpush2.bf16.msra.mxu0 %v2470
    %3425 = vmatprep.mubr.bf16.mxu0 %v685
    %3426 = vmatmul.mubr.bf16.gmra.mxu0 %v684
    %v3427 = vpop.f32.mrf.mxu0
    %v3428 = vadd.f32 %v3387, %v3427
    %v3429 = vpop.f32.mrf.mxu0
    %v3430 = vadd.f32 %v3389, %v3429
    %v3431 = vpop.f32.mrf.mxu0
    %v3432 = vpop.f32.mrf.mxu0
    %3433 = vdwg.mxu0
    %3434 = vmatprep.subr.bf16.mxu0 %v2531
    %3435 = vmatpush1.bf16.msra.mxu0 %v2530
    %3436 = vmatprep.subr.bf16.mxu0 %v2527
    %3437 = vmatpush1.bf16.msra.mxu0 %v2526
    %3438 = vmatprep.subr.bf16.mxu0 %v2523
    %3439 = vmatpush1.bf16.msra.mxu0 %v2522
    %3440 = vmatprep.subr.bf16.mxu0 %v2519
    %3441 = vmatpush1.bf16.msra.mxu0 %v2518
    %3442 = vmatprep.subr.bf16.mxu0 %v2515
    %3443 = vmatpush1.bf16.msra.mxu0 %v2514
    %3444 = vmatprep.subr.bf16.mxu0 %v2511
    %3445 = vmatpush1.bf16.msra.mxu0 %v2510
    %3446 = vmatprep.subr.bf16.mxu0 %v2507
    %3447 = vmatpush1.bf16.msra.mxu0 %v2506
    %3448 = vmatprep.subr.bf16.mxu0 %v2503
    %3449 = vmatpush1.bf16.msra.mxu0 %v2502
    %3450 = vmatprep.subr.bf16.mxu0 %v2563
    %3451 = vmatpush2.bf16.msra.mxu0 %v2562
    %3452 = vmatprep.subr.bf16.mxu0 %v2559
    %3453 = vmatpush2.bf16.msra.mxu0 %v2558
    %3454 = vmatprep.subr.bf16.mxu0 %v2555
    %3455 = vmatpush2.bf16.msra.mxu0 %v2554
    %3456 = vmatprep.subr.bf16.mxu0 %v2551
    %3457 = vmatpush2.bf16.msra.mxu0 %v2550
    %3458 = vmatprep.subr.bf16.mxu0 %v2547
    %3459 = vmatpush2.bf16.msra.mxu0 %v2546
    %3460 = vmatprep.subr.bf16.mxu0 %v2543
    %3461 = vmatpush2.bf16.msra.mxu0 %v2542
    %3462 = vmatprep.subr.bf16.mxu0 %v2539
    %3463 = vmatpush2.bf16.msra.mxu0 %v2538
    %3464 = vmatprep.subr.bf16.mxu0 %v2535
    %3465 = vmatpush2.bf16.msra.mxu0 %v2534
    %3466 = vmatprep.mubr.bf16.mxu0 %v687
    %3467 = vmatmul.mubr.bf16.gmra.mxu0 %v686
    %v3468 = vpop.f32.mrf.mxu0
    %v3469 = vadd.f32 %v3428, %v3468
    %v3470 = vpop.f32.mrf.mxu0
    %v3471 = vadd.f32 %v3430, %v3470
    %v3472 = vpop.f32.mrf.mxu0
    %v3473 = vpop.f32.mrf.mxu0
    %3474 = vdwg.mxu0
    %3475 = vmatprep.subr.bf16.mxu0 %v2595
    %3476 = vmatpush1.bf16.msra.mxu0 %v2594
    %3477 = vmatprep.subr.bf16.mxu0 %v2591
    %3478 = vmatpush1.bf16.msra.mxu0 %v2590
    %3479 = vmatprep.subr.bf16.mxu0 %v2587
    %3480 = vmatpush1.bf16.msra.mxu0 %v2586
    %3481 = vmatprep.subr.bf16.mxu0 %v2583
    %3482 = vmatpush1.bf16.msra.mxu0 %v2582
    %3483 = vmatprep.subr.bf16.mxu0 %v2579
    %3484 = vmatpush1.bf16.msra.mxu0 %v2578
    %3485 = vmatprep.subr.bf16.mxu0 %v2575
    %3486 = vmatpush1.bf16.msra.mxu0 %v2574
    %3487 = vmatprep.subr.bf16.mxu0 %v2571
    %3488 = vmatpush1.bf16.msra.mxu0 %v2570
    %3489 = vmatprep.subr.bf16.mxu0 %v2567
    %3490 = vmatpush1.bf16.msra.mxu0 %v2566
    %3491 = vmatprep.subr.bf16.mxu0 %v2627
    %3492 = vmatpush2.bf16.msra.mxu0 %v2626
    %3493 = vmatprep.subr.bf16.mxu0 %v2623
    %3494 = vmatpush2.bf16.msra.mxu0 %v2622
    %3495 = vmatprep.subr.bf16.mxu0 %v2619
    %3496 = vmatpush2.bf16.msra.mxu0 %v2618
    %3497 = vmatprep.subr.bf16.mxu0 %v2615
    %3498 = vmatpush2.bf16.msra.mxu0 %v2614
    %3499 = vmatprep.subr.bf16.mxu0 %v2611
    %3500 = vmatpush2.bf16.msra.mxu0 %v2610
    %3501 = vmatprep.subr.bf16.mxu0 %v2607
    %3502 = vmatpush2.bf16.msra.mxu0 %v2606
    %3503 = vmatprep.subr.bf16.mxu0 %v2603
    %3504 = vmatpush2.bf16.msra.mxu0 %v2602
    %3505 = vmatprep.subr.bf16.mxu0 %v2599
    %3506 = vmatpush2.bf16.msra.mxu0 %v2598
    %3507 = vmatprep.mubr.bf16.mxu0 %v689
    %3508 = vmatmul.mubr.bf16.gmra.mxu0 %v688
    %v3509 = vpop.f32.mrf.mxu0
    %v3510 = vadd.f32 %v3469, %v3509
    %v3511 = vpop.f32.mrf.mxu0
    %v3512 = vadd.f32 %v3471, %v3511
    %v3513 = vpop.f32.mrf.mxu0
    %v3514 = vpop.f32.mrf.mxu0
    %3515 = vdwg.mxu0
    %3516 = vmatprep.subr.bf16.mxu0 %v2659
    %3517 = vmatpush1.bf16.msra.mxu0 %v2658
    %3518 = vmatprep.subr.bf16.mxu0 %v2655
    %3519 = vmatpush1.bf16.msra.mxu0 %v2654
    %3520 = vmatprep.subr.bf16.mxu0 %v2651
    %3521 = vmatpush1.bf16.msra.mxu0 %v2650
    %3522 = vmatprep.subr.bf16.mxu0 %v2647
    %3523 = vmatpush1.bf16.msra.mxu0 %v2646
    %3524 = vmatprep.subr.bf16.mxu0 %v2643
    %3525 = vmatpush1.bf16.msra.mxu0 %v2642
    %3526 = vmatprep.subr.bf16.mxu0 %v2639
    %3527 = vmatpush1.bf16.msra.mxu0 %v2638
    %3528 = vmatprep.subr.bf16.mxu0 %v2635
    %3529 = vmatpush1.bf16.msra.mxu0 %v2634
    %3530 = vmatprep.subr.bf16.mxu0 %v2631
    %3531 = vmatpush1.bf16.msra.mxu0 %v2630
    %3532 = vmatprep.subr.bf16.mxu0 %v2691
    %3533 = vmatpush2.bf16.msra.mxu0 %v2690
    %3534 = vmatprep.subr.bf16.mxu0 %v2687
    %3535 = vmatpush2.bf16.msra.mxu0 %v2686
    %3536 = vmatprep.subr.bf16.mxu0 %v2683
    %3537 = vmatpush2.bf16.msra.mxu0 %v2682
    %3538 = vmatprep.subr.bf16.mxu0 %v2679
    %3539 = vmatpush2.bf16.msra.mxu0 %v2678
    %3540 = vmatprep.subr.bf16.mxu0 %v2675
    %3541 = vmatpush2.bf16.msra.mxu0 %v2674
    %3542 = vmatprep.subr.bf16.mxu0 %v2671
    %3543 = vmatpush2.bf16.msra.mxu0 %v2670
    %3544 = vmatprep.subr.bf16.mxu0 %v2667
    %3545 = vmatpush2.bf16.msra.mxu0 %v2666
    %3546 = vmatprep.subr.bf16.mxu0 %v2663
    %3547 = vmatpush2.bf16.msra.mxu0 %v2662
    %3548 = vmatprep.mubr.bf16.mxu0 %v691
    %3549 = vmatmul.mubr.bf16.gmra.mxu0 %v690
    %v3550 = vpop.f32.mrf.mxu0
    %v3551 = vadd.f32 %v3510, %v3550
    %v3552 = vpop.f32.mrf.mxu0
    %v3553 = vadd.f32 %v3512, %v3552
    %v3554 = vpop.f32.mrf.mxu0
    %v3555 = vpop.f32.mrf.mxu0
    %3556 = vdwg.mxu0
    %3557 = vmatprep.subr.bf16.mxu0 %v2723
    %3558 = vmatpush1.bf16.msra.mxu0 %v2722
    %3559 = vmatprep.subr.bf16.mxu0 %v2719
    %3560 = vmatpush1.bf16.msra.mxu0 %v2718
    %3561 = vmatprep.subr.bf16.mxu0 %v2715
    %3562 = vmatpush1.bf16.msra.mxu0 %v2714
    %3563 = vmatprep.subr.bf16.mxu0 %v2711
    %3564 = vmatpush1.bf16.msra.mxu0 %v2710
    %3565 = vmatprep.subr.bf16.mxu0 %v2707
    %3566 = vmatpush1.bf16.msra.mxu0 %v2706
    %3567 = vmatprep.subr.bf16.mxu0 %v2703
    %3568 = vmatpush1.bf16.msra.mxu0 %v2702
    %3569 = vmatprep.subr.bf16.mxu0 %v2699
    %3570 = vmatpush1.bf16.msra.mxu0 %v2698
    %3571 = vmatprep.subr.bf16.mxu0 %v2695
    %3572 = vmatpush1.bf16.msra.mxu0 %v2694
    %3573 = vmatprep.subr.bf16.mxu0 %v2755
    %3574 = vmatpush2.bf16.msra.mxu0 %v2754
    %3575 = vmatprep.subr.bf16.mxu0 %v2751
    %3576 = vmatpush2.bf16.msra.mxu0 %v2750
    %3577 = vmatprep.subr.bf16.mxu0 %v2747
    %3578 = vmatpush2.bf16.msra.mxu0 %v2746
    %3579 = vmatprep.subr.bf16.mxu0 %v2743
    %3580 = vmatpush2.bf16.msra.mxu0 %v2742
    %3581 = vmatprep.subr.bf16.mxu0 %v2739
    %3582 = vmatpush2.bf16.msra.mxu0 %v2738
    %3583 = vmatprep.subr.bf16.mxu0 %v2735
    %3584 = vmatpush2.bf16.msra.mxu0 %v2734
    %3585 = vmatprep.subr.bf16.mxu0 %v2731
    %3586 = vmatpush2.bf16.msra.mxu0 %v2730
    %3587 = vmatprep.subr.bf16.mxu0 %v2727
    %3588 = vmatpush2.bf16.msra.mxu0 %v2726
    %3589 = vmatprep.mubr.bf16.mxu0 %v693
    %3590 = vmatmul.mubr.bf16.gmra.mxu0 %v692
    %v3591 = vpop.f32.mrf.mxu0
    %v3592 = vadd.f32 %v3551, %v3591
    %v3593 = vpop.f32.mrf.mxu0
    %v3594 = vadd.f32 %v3553, %v3593
    %v3595 = vpop.f32.mrf.mxu0
    %v3596 = vpop.f32.mrf.mxu0
    %3597 = vdwg.mxu0
    %3598 = vmatprep.subr.bf16.mxu0 %v2277
    %3599 = vmatpush1.bf16.msra.mxu0 %v2276
    %3600 = vmatprep.subr.bf16.mxu0 %v2273
    %3601 = vmatpush1.bf16.msra.mxu0 %v2272
    %3602 = vmatprep.subr.bf16.mxu0 %v2269
    %3603 = vmatpush1.bf16.msra.mxu0 %v2268
    %3604 = vmatprep.subr.bf16.mxu0 %v2265
    %3605 = vmatpush1.bf16.msra.mxu0 %v2264
    %3606 = vmatprep.subr.bf16.mxu0 %v2261
    %3607 = vmatpush1.bf16.msra.mxu0 %v2260
    %3608 = vmatprep.subr.bf16.mxu0 %v2257
    %3609 = vmatpush1.bf16.msra.mxu0 %v2256
    %3610 = vmatprep.subr.bf16.mxu0 %v2253
    %3611 = vmatpush1.bf16.msra.mxu0 %v2252
    %3612 = vmatprep.subr.bf16.mxu0 %v2249
    %3613 = vmatpush1.bf16.msra.mxu0 %v2248
    %3614 = vmatprep.subr.bf16.mxu0 %v2309
    %3615 = vmatpush2.bf16.msra.mxu0 %v2308
    %3616 = vmatprep.subr.bf16.mxu0 %v2305
    %3617 = vmatpush2.bf16.msra.mxu0 %v2304
    %3618 = vmatprep.subr.bf16.mxu0 %v2301
    %3619 = vmatpush2.bf16.msra.mxu0 %v2300
    %3620 = vmatprep.subr.bf16.mxu0 %v2297
    %3621 = vmatpush2.bf16.msra.mxu0 %v2296
    %3622 = vmatprep.subr.bf16.mxu0 %v2293
    %3623 = vmatpush2.bf16.msra.mxu0 %v2292
    %3624 = vmatprep.subr.bf16.mxu0 %v2289
    %3625 = vmatpush2.bf16.msra.mxu0 %v2288
    %3626 = vmatprep.subr.bf16.mxu0 %v2285
    %3627 = vmatpush2.bf16.msra.mxu0 %v2284
    %3628 = vmatprep.subr.bf16.mxu0 %v2281
    %3629 = vmatpush2.bf16.msra.mxu0 %v2280
    %3630 = vmatprep.mubr.bf16.mxu0 %v679
    %3631 = vmatmul.mubr.bf16.gmra.mxu0 %v678
    %v3632 = vpop.f32.mrf.mxu0
    %v3633 = vadd.f32 %v645, %v3632
    %v3634 = vpop.f32.mrf.mxu0
    %v3635 = vadd.f32 %v649, %v3634
    %v3636 = vpop.f32.mrf.mxu0
    %v3637 = vpop.f32.mrf.mxu0
    %3638 = vdwg.mxu0
    %3639 = vmatprep.subr.bf16.mxu0 %v2341
    %3640 = vmatpush1.bf16.msra.mxu0 %v2340
    %3641 = vmatprep.subr.bf16.mxu0 %v2337
    %3642 = vmatpush1.bf16.msra.mxu0 %v2336
    %3643 = vmatprep.subr.bf16.mxu0 %v2333
    %3644 = vmatpush1.bf16.msra.mxu0 %v2332
    %3645 = vmatprep.subr.bf16.mxu0 %v2329
    %3646 = vmatpush1.bf16.msra.mxu0 %v2328
    %3647 = vmatprep.subr.bf16.mxu0 %v2325
    %3648 = vmatpush1.bf16.msra.mxu0 %v2324
    %3649 = vmatprep.subr.bf16.mxu0 %v2321
    %3650 = vmatpush1.bf16.msra.mxu0 %v2320
    %3651 = vmatprep.subr.bf16.mxu0 %v2317
    %3652 = vmatpush1.bf16.msra.mxu0 %v2316
    %3653 = vmatprep.subr.bf16.mxu0 %v2313
    %3654 = vmatpush1.bf16.msra.mxu0 %v2312
    %3655 = vmatprep.subr.bf16.mxu0 %v2373
    %3656 = vmatpush2.bf16.msra.mxu0 %v2372
    %3657 = vmatprep.subr.bf16.mxu0 %v2369
    %3658 = vmatpush2.bf16.msra.mxu0 %v2368
    %3659 = vmatprep.subr.bf16.mxu0 %v2365
    %3660 = vmatpush2.bf16.msra.mxu0 %v2364
    %3661 = vmatprep.subr.bf16.mxu0 %v2361
    %3662 = vmatpush2.bf16.msra.mxu0 %v2360
    %3663 = vmatprep.subr.bf16.mxu0 %v2357
    %3664 = vmatpush2.bf16.msra.mxu0 %v2356
    %3665 = vmatprep.subr.bf16.mxu0 %v2353
    %3666 = vmatpush2.bf16.msra.mxu0 %v2352
    %3667 = vmatprep.subr.bf16.mxu0 %v2349
    %3668 = vmatpush2.bf16.msra.mxu0 %v2348
    %3669 = vmatprep.subr.bf16.mxu0 %v2345
    %3670 = vmatpush2.bf16.msra.mxu0 %v2344
    %3671 = vmatprep.mubr.bf16.mxu0 %v681
    %3672 = vmatmul.mubr.bf16.gmra.mxu0 %v680
    %v3673 = vpop.f32.mrf.mxu0
    %v3674 = vadd.f32 %v3633, %v3673
    %v3675 = vpop.f32.mrf.mxu0
    %v3676 = vadd.f32 %v3635, %v3675
    %v3677 = vpop.f32.mrf.mxu0
    %v3678 = vpop.f32.mrf.mxu0
    %3679 = vdwg.mxu0
    %3680 = vmatprep.subr.bf16.mxu0 %v2405
    %3681 = vmatpush1.bf16.msra.mxu0 %v2404
    %3682 = vmatprep.subr.bf16.mxu0 %v2401
    %3683 = vmatpush1.bf16.msra.mxu0 %v2400
    %3684 = vmatprep.subr.bf16.mxu0 %v2397
    %3685 = vmatpush1.bf16.msra.mxu0 %v2396
    %3686 = vmatprep.subr.bf16.mxu0 %v2393
    %3687 = vmatpush1.bf16.msra.mxu0 %v2392
    %3688 = vmatprep.subr.bf16.mxu0 %v2389
    %3689 = vmatpush1.bf16.msra.mxu0 %v2388
    %3690 = vmatprep.subr.bf16.mxu0 %v2385
    %3691 = vmatpush1.bf16.msra.mxu0 %v2384
    %3692 = vmatprep.subr.bf16.mxu0 %v2381
    %3693 = vmatpush1.bf16.msra.mxu0 %v2380
    %3694 = vmatprep.subr.bf16.mxu0 %v2377
    %3695 = vmatpush1.bf16.msra.mxu0 %v2376
    %3696 = vmatprep.subr.bf16.mxu0 %v2437
    %3697 = vmatpush2.bf16.msra.mxu0 %v2436
    %3698 = vmatprep.subr.bf16.mxu0 %v2433
    %3699 = vmatpush2.bf16.msra.mxu0 %v2432
    %3700 = vmatprep.subr.bf16.mxu0 %v2429
    %3701 = vmatpush2.bf16.msra.mxu0 %v2428
    %3702 = vmatprep.subr.bf16.mxu0 %v2425
    %3703 = vmatpush2.bf16.msra.mxu0 %v2424
    %3704 = vmatprep.subr.bf16.mxu0 %v2421
    %3705 = vmatpush2.bf16.msra.mxu0 %v2420
    %3706 = vmatprep.subr.bf16.mxu0 %v2417
    %3707 = vmatpush2.bf16.msra.mxu0 %v2416
    %3708 = vmatprep.subr.bf16.mxu0 %v2413
    %3709 = vmatpush2.bf16.msra.mxu0 %v2412
    %3710 = vmatprep.subr.bf16.mxu0 %v2409
    %3711 = vmatpush2.bf16.msra.mxu0 %v2408
    %3712 = vmatprep.mubr.bf16.mxu0 %v683
    %3713 = vmatmul.mubr.bf16.gmra.mxu0 %v682
    %v3714 = vpop.f32.mrf.mxu0
    %v3715 = vadd.f32 %v3674, %v3714
    %v3716 = vpop.f32.mrf.mxu0
    %v3717 = vadd.f32 %v3676, %v3716
    %v3718 = vpop.f32.mrf.mxu0
    %v3719 = vpop.f32.mrf.mxu0
    %3720 = vdwg.mxu0
    %3721 = vmatprep.subr.bf16.mxu0 %v2469
    %3722 = vmatpush1.bf16.msra.mxu0 %v2468
    %3723 = vmatprep.subr.bf16.mxu0 %v2465
    %3724 = vmatpush1.bf16.msra.mxu0 %v2464
    %3725 = vmatprep.subr.bf16.mxu0 %v2461
    %3726 = vmatpush1.bf16.msra.mxu0 %v2460
    %3727 = vmatprep.subr.bf16.mxu0 %v2457
    %3728 = vmatpush1.bf16.msra.mxu0 %v2456
    %3729 = vmatprep.subr.bf16.mxu0 %v2453
    %3730 = vmatpush1.bf16.msra.mxu0 %v2452
    %3731 = vmatprep.subr.bf16.mxu0 %v2449
    %3732 = vmatpush1.bf16.msra.mxu0 %v2448
    %3733 = vmatprep.subr.bf16.mxu0 %v2445
    %3734 = vmatpush1.bf16.msra.mxu0 %v2444
    %3735 = vmatprep.subr.bf16.mxu0 %v2441
    %3736 = vmatpush1.bf16.msra.mxu0 %v2440
    %3737 = vmatprep.subr.bf16.mxu0 %v2501
    %3738 = vmatpush2.bf16.msra.mxu0 %v2500
    %3739 = vmatprep.subr.bf16.mxu0 %v2497
    %3740 = vmatpush2.bf16.msra.mxu0 %v2496
    %3741 = vmatprep.subr.bf16.mxu0 %v2493
    %3742 = vmatpush2.bf16.msra.mxu0 %v2492
    %3743 = vmatprep.subr.bf16.mxu0 %v2489
    %3744 = vmatpush2.bf16.msra.mxu0 %v2488
    %3745 = vmatprep.subr.bf16.mxu0 %v2485
    %3746 = vmatpush2.bf16.msra.mxu0 %v2484
    %3747 = vmatprep.subr.bf16.mxu0 %v2481
    %3748 = vmatpush2.bf16.msra.mxu0 %v2480
    %3749 = vmatprep.subr.bf16.mxu0 %v2477
    %3750 = vmatpush2.bf16.msra.mxu0 %v2476
    %3751 = vmatprep.subr.bf16.mxu0 %v2473
    %3752 = vmatpush2.bf16.msra.mxu0 %v2472
    %3753 = vmatprep.mubr.bf16.mxu0 %v685
    %3754 = vmatmul.mubr.bf16.gmra.mxu0 %v684
    %v3755 = vpop.f32.mrf.mxu0
    %v3756 = vadd.f32 %v3715, %v3755
    %v3757 = vpop.f32.mrf.mxu0
    %v3758 = vadd.f32 %v3717, %v3757
    %v3759 = vpop.f32.mrf.mxu0
    %v3760 = vpop.f32.mrf.mxu0
    %3761 = vdwg.mxu0
    %3762 = vmatprep.subr.bf16.mxu0 %v2533
    %3763 = vmatpush1.bf16.msra.mxu0 %v2532
    %3764 = vmatprep.subr.bf16.mxu0 %v2529
    %3765 = vmatpush1.bf16.msra.mxu0 %v2528
    %3766 = vmatprep.subr.bf16.mxu0 %v2525
    %3767 = vmatpush1.bf16.msra.mxu0 %v2524
    %3768 = vmatprep.subr.bf16.mxu0 %v2521
    %3769 = vmatpush1.bf16.msra.mxu0 %v2520
    %3770 = vmatprep.subr.bf16.mxu0 %v2517
    %3771 = vmatpush1.bf16.msra.mxu0 %v2516
    %3772 = vmatprep.subr.bf16.mxu0 %v2513
    %3773 = vmatpush1.bf16.msra.mxu0 %v2512
    %3774 = vmatprep.subr.bf16.mxu0 %v2509
    %3775 = vmatpush1.bf16.msra.mxu0 %v2508
    %3776 = vmatprep.subr.bf16.mxu0 %v2505
    %3777 = vmatpush1.bf16.msra.mxu0 %v2504
    %3778 = vmatprep.subr.bf16.mxu0 %v2565
    %3779 = vmatpush2.bf16.msra.mxu0 %v2564
    %3780 = vmatprep.subr.bf16.mxu0 %v2561
    %3781 = vmatpush2.bf16.msra.mxu0 %v2560
    %3782 = vmatprep.subr.bf16.mxu0 %v2557
    %3783 = vmatpush2.bf16.msra.mxu0 %v2556
    %3784 = vmatprep.subr.bf16.mxu0 %v2553
    %3785 = vmatpush2.bf16.msra.mxu0 %v2552
    %3786 = vmatprep.subr.bf16.mxu0 %v2549
    %3787 = vmatpush2.bf16.msra.mxu0 %v2548
    %3788 = vmatprep.subr.bf16.mxu0 %v2545
    %3789 = vmatpush2.bf16.msra.mxu0 %v2544
    %3790 = vmatprep.subr.bf16.mxu0 %v2541
    %3791 = vmatpush2.bf16.msra.mxu0 %v2540
    %3792 = vmatprep.subr.bf16.mxu0 %v2537
    %3793 = vmatpush2.bf16.msra.mxu0 %v2536
    %3794 = vmatprep.mubr.bf16.mxu0 %v687
    %3795 = vmatmul.mubr.bf16.gmra.mxu0 %v686
    %v3796 = vpop.f32.mrf.mxu0
    %v3797 = vadd.f32 %v3756, %v3796
    %v3798 = vpop.f32.mrf.mxu0
    %v3799 = vadd.f32 %v3758, %v3798
    %v3800 = vpop.f32.mrf.mxu0
    %v3801 = vpop.f32.mrf.mxu0
    %3802 = vdwg.mxu0
    %3803 = vmatprep.subr.bf16.mxu0 %v2597
    %3804 = vmatpush1.bf16.msra.mxu0 %v2596
    %3805 = vmatprep.subr.bf16.mxu0 %v2593
    %3806 = vmatpush1.bf16.msra.mxu0 %v2592
    %3807 = vmatprep.subr.bf16.mxu0 %v2589
    %3808 = vmatpush1.bf16.msra.mxu0 %v2588
    %3809 = vmatprep.subr.bf16.mxu0 %v2585
    %3810 = vmatpush1.bf16.msra.mxu0 %v2584
    %3811 = vmatprep.subr.bf16.mxu0 %v2581
    %3812 = vmatpush1.bf16.msra.mxu0 %v2580
    %3813 = vmatprep.subr.bf16.mxu0 %v2577
    %3814 = vmatpush1.bf16.msra.mxu0 %v2576
    %3815 = vmatprep.subr.bf16.mxu0 %v2573
    %3816 = vmatpush1.bf16.msra.mxu0 %v2572
    %3817 = vmatprep.subr.bf16.mxu0 %v2569
    %3818 = vmatpush1.bf16.msra.mxu0 %v2568
    %3819 = vmatprep.subr.bf16.mxu0 %v2629
    %3820 = vmatpush2.bf16.msra.mxu0 %v2628
    %3821 = vmatprep.subr.bf16.mxu0 %v2625
    %3822 = vmatpush2.bf16.msra.mxu0 %v2624
    %3823 = vmatprep.subr.bf16.mxu0 %v2621
    %3824 = vmatpush2.bf16.msra.mxu0 %v2620
    %3825 = vmatprep.subr.bf16.mxu0 %v2617
    %3826 = vmatpush2.bf16.msra.mxu0 %v2616
    %3827 = vmatprep.subr.bf16.mxu0 %v2613
    %3828 = vmatpush2.bf16.msra.mxu0 %v2612
    %3829 = vmatprep.subr.bf16.mxu0 %v2609
    %3830 = vmatpush2.bf16.msra.mxu0 %v2608
    %3831 = vmatprep.subr.bf16.mxu0 %v2605
    %3832 = vmatpush2.bf16.msra.mxu0 %v2604
    %3833 = vmatprep.subr.bf16.mxu0 %v2601
    %3834 = vmatpush2.bf16.msra.mxu0 %v2600
    %3835 = vmatprep.mubr.bf16.mxu0 %v689
    %3836 = vmatmul.mubr.bf16.gmra.mxu0 %v688
    %v3837 = vpop.f32.mrf.mxu0
    %v3838 = vadd.f32 %v3797, %v3837
    %v3839 = vpop.f32.mrf.mxu0
    %v3840 = vadd.f32 %v3799, %v3839
    %v3841 = vpop.f32.mrf.mxu0
    %v3842 = vpop.f32.mrf.mxu0
    %3843 = vdwg.mxu0
    %3844 = vmatprep.subr.bf16.mxu0 %v2661
    %3845 = vmatpush1.bf16.msra.mxu0 %v2660
    %3846 = vmatprep.subr.bf16.mxu0 %v2657
    %3847 = vmatpush1.bf16.msra.mxu0 %v2656
    %3848 = vmatprep.subr.bf16.mxu0 %v2653
    %3849 = vmatpush1.bf16.msra.mxu0 %v2652
    %3850 = vmatprep.subr.bf16.mxu0 %v2649
    %3851 = vmatpush1.bf16.msra.mxu0 %v2648
    %3852 = vmatprep.subr.bf16.mxu0 %v2645
    %3853 = vmatpush1.bf16.msra.mxu0 %v2644
    %3854 = vmatprep.subr.bf16.mxu0 %v2641
    %3855 = vmatpush1.bf16.msra.mxu0 %v2640
    %3856 = vmatprep.subr.bf16.mxu0 %v2637
    %3857 = vmatpush1.bf16.msra.mxu0 %v2636
    %3858 = vmatprep.subr.bf16.mxu0 %v2633
    %3859 = vmatpush1.bf16.msra.mxu0 %v2632
    %3860 = vmatprep.subr.bf16.mxu0 %v2693
    %3861 = vmatpush2.bf16.msra.mxu0 %v2692
    %3862 = vmatprep.subr.bf16.mxu0 %v2689
    %3863 = vmatpush2.bf16.msra.mxu0 %v2688
    %3864 = vmatprep.subr.bf16.mxu0 %v2685
    %3865 = vmatpush2.bf16.msra.mxu0 %v2684
    %3866 = vmatprep.subr.bf16.mxu0 %v2681
    %3867 = vmatpush2.bf16.msra.mxu0 %v2680
    %3868 = vmatprep.subr.bf16.mxu0 %v2677
    %3869 = vmatpush2.bf16.msra.mxu0 %v2676
    %3870 = vmatprep.subr.bf16.mxu0 %v2673
    %3871 = vmatpush2.bf16.msra.mxu0 %v2672
    %3872 = vmatprep.subr.bf16.mxu0 %v2669
    %3873 = vmatpush2.bf16.msra.mxu0 %v2668
    %3874 = vmatprep.subr.bf16.mxu0 %v2665
    %3875 = vmatpush2.bf16.msra.mxu0 %v2664
    %3876 = vmatprep.mubr.bf16.mxu0 %v691
    %3877 = vmatmul.mubr.bf16.gmra.mxu0 %v690
    %v3878 = vpop.f32.mrf.mxu0
    %v3879 = vadd.f32 %v3838, %v3878
    %v3880 = vpop.f32.mrf.mxu0
    %v3881 = vadd.f32 %v3840, %v3880
    %v3882 = vpop.f32.mrf.mxu0
    %v3883 = vpop.f32.mrf.mxu0
    %3884 = vdwg.mxu0
    %3885 = vmatprep.subr.bf16.mxu0 %v2725
    %3886 = vmatpush1.bf16.msra.mxu0 %v2724
    %3887 = vmatprep.subr.bf16.mxu0 %v2721
    %3888 = vmatpush1.bf16.msra.mxu0 %v2720
    %3889 = vmatprep.subr.bf16.mxu0 %v2717
    %3890 = vmatpush1.bf16.msra.mxu0 %v2716
    %3891 = vmatprep.subr.bf16.mxu0 %v2713
    %3892 = vmatpush1.bf16.msra.mxu0 %v2712
    %3893 = vmatprep.subr.bf16.mxu0 %v2709
    %3894 = vmatpush1.bf16.msra.mxu0 %v2708
    %3895 = vmatprep.subr.bf16.mxu0 %v2705
    %3896 = vmatpush1.bf16.msra.mxu0 %v2704
    %3897 = vmatprep.subr.bf16.mxu0 %v2701
    %3898 = vmatpush1.bf16.msra.mxu0 %v2700
    %3899 = vmatprep.subr.bf16.mxu0 %v2697
    %3900 = vmatpush1.bf16.msra.mxu0 %v2696
    %3901 = vmatprep.subr.bf16.mxu0 %v2757
    %3902 = vmatpush2.bf16.msra.mxu0 %v2756
    %3903 = vmatprep.subr.bf16.mxu0 %v2753
    %3904 = vmatpush2.bf16.msra.mxu0 %v2752
    %3905 = vmatprep.subr.bf16.mxu0 %v2749
    %3906 = vmatpush2.bf16.msra.mxu0 %v2748
    %3907 = vmatprep.subr.bf16.mxu0 %v2745
    %3908 = vmatpush2.bf16.msra.mxu0 %v2744
    %3909 = vmatprep.subr.bf16.mxu0 %v2741
    %3910 = vmatpush2.bf16.msra.mxu0 %v2740
    %3911 = vmatprep.subr.bf16.mxu0 %v2737
    %3912 = vmatpush2.bf16.msra.mxu0 %v2736
    %3913 = vmatprep.subr.bf16.mxu0 %v2733
    %3914 = vmatpush2.bf16.msra.mxu0 %v2732
    %3915 = vmatprep.subr.bf16.mxu0 %v2729
    %3916 = vmatpush2.bf16.msra.mxu0 %v2728
    %3917 = vmatprep.mubr.bf16.mxu0 %v693
    %3918 = vmatmul.mubr.bf16.gmra.mxu0 %v692
    %v3919 = vpop.f32.mrf.mxu0
    %v3920 = vadd.f32 %v3879, %v3919
    %v3921 = vpop.f32.mrf.mxu0
    %v3922 = vadd.f32 %v3881, %v3921
    %v3923 = vpop.f32.mrf.mxu0
    %v3924 = vpop.f32.mrf.mxu0
    %3925 = vdwg.mxu0
    %v3926 = vadd.f32 %v3592, %v3594
    %v3927 = vadd.f32 %v3926, %v3920
    %v3928 = vadd.f32 %v3927, %v3922
    %3929 = vadd.xlane.f32.xlu0 %v3928
    %v3930 = vpop.xlane.xlu0 %3929
    %v3931 = vrcp.pop 512.0
    %v3932 = vmul.f32 %v3930, %v3931
    %v3933 = vsub.f32 %v3592, %v3932
    %v3934 = vsub.f32 %v3594, %v3932
    %v3935 = vsub.f32 %v3920, %v3932
    %v3936 = vsub.f32 %v3922, %v3932
    %v3937 = vmul.f32 %v3933, %v3933
    %v3938 = vmul.f32 %v3934, %v3934
    %v3939 = vmul.f32 %v3935, %v3935
    %v3940 = vmul.f32 %v3936, %v3936
    %v3941 = vadd.f32 %v3937, %v3938
    %v3942 = vadd.f32 %v3941, %v3939
    %v3943 = vadd.f32 %v3942, %v3940
    %3944 = vadd.xlane.f32.xlu0 %v3943
    %v3945 = vpop.xlane.xlu0 %3944
    %v3946 = vmul.f32 %v3945, %v3931
    %v3947 = vadd.f32 %v3946, 1e-05
    %v3948 = vrsqrt.pop %v3947
    %v3949 = vmul.f32 %v3933, %v3948
    %v3950 = vmul.f32 %v3934, %v3948
    %v3951 = vmul.f32 %v3935, %v3948
    %v3952 = vmul.f32 %v3936, %v3948
    %v3953 = vld [vmem:[#allocation8] sm:$0xf]
    %v3955 = vlaneseq
    %v3956 = vshrl.u32 %v3955, 7
    %v3957 = vsub.s32 0, %v3956
    %v3958 = vrot.slane %v3953, %v3957
    %v3959 = vlaneseq
    %v3960 = vshrl.u32 %v3959, 7
    %v3961 = vsub.s32 1, %v3960
    %v3962 = vrot.slane %v3953, %v3961
    %v3963 = vlaneseq
    %v3964 = vshrl.u32 %v3963, 7
    %v3965 = vsub.s32 2, %v3964
    %v3966 = vrot.slane %v3953, %v3965
    %v3967 = vlaneseq
    %v3968 = vshrl.u32 %v3967, 7
    %v3969 = vsub.s32 3, %v3968
    %v3970 = vrot.slane %v3953, %v3969
    %v3975 = vmul.f32 %v3949, %v3958
    %v3976 = vmul.f32 %v3950, %v3962
    %v3977 = vmul.f32 %v3951, %v3966
    %v3978 = vmul.f32 %v3952, %v3970
    %v3979 = vld [vmem:[#allocation10] sm:$0xf]
    %v3981 = vlaneseq
    %v3982 = vshrl.u32 %v3981, 7
    %v3983 = vsub.s32 0, %v3982
    %v3984 = vrot.slane %v3979, %v3983
    %v3985 = vlaneseq
    %v3986 = vshrl.u32 %v3985, 7
    %v3987 = vsub.s32 1, %v3986
    %v3988 = vrot.slane %v3979, %v3987
    %v3989 = vlaneseq
    %v3990 = vshrl.u32 %v3989, 7
    %v3991 = vsub.s32 2, %v3990
    %v3992 = vrot.slane %v3979, %v3991
    %v3993 = vlaneseq
    %v3994 = vshrl.u32 %v3993, 7
    %v3995 = vsub.s32 3, %v3994
    %v3996 = vrot.slane %v3979, %v3995
    %v4001 = vadd.f32 %v3975, %v3984
    %v4002 = vadd.f32 %v3976, %v3988
    %v4003 = vadd.f32 %v3977, %v3992
    %v4004 = vadd.f32 %v3978, %v3996
    %vm4005 = vcmp.ge.f32.partialorder %v4001, 0.0
    %vm4006 = vcmp.ge.f32.partialorder %v4002, 0.0
    %vm4007 = vcmp.ge.f32.partialorder %v4003, 0.0
    %vm4008 = vcmp.ge.f32.partialorder %v4004, 0.0
    %v4009 = vmul.f32 %v4001, 0.01
    %v4010 = vmul.f32 %v4002, 0.01
    %v4011 = vmul.f32 %v4003, 0.01
    %v4012 = vmul.f32 %v4004, 0.01
    %v4013 = vsel %vm4005, %v4001, %v4009
    %v4014 = vsel %vm4006, %v4002, %v4010
    %v4015 = vsel %vm4007, %v4003, %v4011
    %v4016 = vsel %vm4008, %v4004, %v4012
    %v4017 = vld [vmem:[#allocation11] sm:$0xff]
    %v4018 = vld [vmem:[#allocation11 + $0x8] sm:$0xff]
    %v4019 = vld [vmem:[#allocation11 + $0x10] sm:$0xff]
    %v4020 = vld [vmem:[#allocation11 + $0x18] sm:$0xff]
    %v4021 = vld [vmem:[#allocation11 + $0x20] sm:$0xff]
    %v4022 = vld [vmem:[#allocation11 + $0x28] sm:$0xff]
    %v4023 = vld [vmem:[#allocation11 + $0x30] sm:$0xff]
    %v4024 = vld [vmem:[#allocation11 + $0x38] sm:$0xff]
    %v4025 = vld [vmem:[#allocation11 + $0x40] sm:$0xff]
    %v4026 = vld [vmem:[#allocation11 + $0x48] sm:$0xff]
    %v4027 = vld [vmem:[#allocation11 + $0x50] sm:$0xff]
    %v4028 = vld [vmem:[#allocation11 + $0x58] sm:$0xff]
    %v4029 = vld [vmem:[#allocation11 + $0x60] sm:$0xff]
    %v4030 = vld [vmem:[#allocation11 + $0x68] sm:$0xff]
    %v4031 = vld [vmem:[#allocation11 + $0x70] sm:$0xff]
    %v4032 = vld [vmem:[#allocation11 + $0x78] sm:$0xff]
    %v4033 = vld [vmem:[#allocation11 + $0x80] sm:$0xff]
    %v4034 = vld [vmem:[#allocation11 + $0x88] sm:$0xff]
    %v4035 = vld [vmem:[#allocation11 + $0x90] sm:$0xff]
    %v4036 = vld [vmem:[#allocation11 + $0x98] sm:$0xff]
    %v4037 = vld [vmem:[#allocation11 + $0xa0] sm:$0xff]
    %v4038 = vld [vmem:[#allocation11 + $0xa8] sm:$0xff]
    %v4039 = vld [vmem:[#allocation11 + $0xb0] sm:$0xff]
    %v4040 = vld [vmem:[#allocation11 + $0xb8] sm:$0xff]
    %v4041 = vld [vmem:[#allocation11 + $0xc0] sm:$0xff]
    %v4042 = vld [vmem:[#allocation11 + $0xc8] sm:$0xff]
    %v4043 = vld [vmem:[#allocation11 + $0xd0] sm:$0xff]
    %v4044 = vld [vmem:[#allocation11 + $0xd8] sm:$0xff]
    %v4045 = vld [vmem:[#allocation11 + $0xe0] sm:$0xff]
    %v4046 = vld [vmem:[#allocation11 + $0xe8] sm:$0xff]
    %v4047 = vld [vmem:[#allocation11 + $0xf0] sm:$0xff]
    %v4048 = vld [vmem:[#allocation11 + $0xf8] sm:$0xff]
    %v4049 = vld [vmem:[#allocation11 + $0x100] sm:$0xff]
    %v4050 = vld [vmem:[#allocation11 + $0x108] sm:$0xff]
    %v4051 = vld [vmem:[#allocation11 + $0x110] sm:$0xff]
    %v4052 = vld [vmem:[#allocation11 + $0x118] sm:$0xff]
    %v4053 = vld [vmem:[#allocation11 + $0x120] sm:$0xff]
    %v4054 = vld [vmem:[#allocation11 + $0x128] sm:$0xff]
    %v4055 = vld [vmem:[#allocation11 + $0x130] sm:$0xff]
    %v4056 = vld [vmem:[#allocation11 + $0x138] sm:$0xff]
    %v4057 = vld [vmem:[#allocation11 + $0x140] sm:$0xff]
    %v4058 = vld [vmem:[#allocation11 + $0x148] sm:$0xff]
    %v4059 = vld [vmem:[#allocation11 + $0x150] sm:$0xff]
    %v4060 = vld [vmem:[#allocation11 + $0x158] sm:$0xff]
    %v4061 = vld [vmem:[#allocation11 + $0x160] sm:$0xff]
    %v4062 = vld [vmem:[#allocation11 + $0x168] sm:$0xff]
    %v4063 = vld [vmem:[#allocation11 + $0x170] sm:$0xff]
    %v4064 = vld [vmem:[#allocation11 + $0x178] sm:$0xff]
    %v4065 = vld [vmem:[#allocation11 + $0x180] sm:$0xff]
    %v4066 = vld [vmem:[#allocation11 + $0x188] sm:$0xff]
    %v4067 = vld [vmem:[#allocation11 + $0x190] sm:$0xff]
    %v4068 = vld [vmem:[#allocation11 + $0x198] sm:$0xff]
    %v4069 = vld [vmem:[#allocation11 + $0x1a0] sm:$0xff]
    %v4070 = vld [vmem:[#allocation11 + $0x1a8] sm:$0xff]
    %v4071 = vld [vmem:[#allocation11 + $0x1b0] sm:$0xff]
    %v4072 = vld [vmem:[#allocation11 + $0x1b8] sm:$0xff]
    %v4073 = vld [vmem:[#allocation11 + $0x1c0] sm:$0xff]
    %v4074 = vld [vmem:[#allocation11 + $0x1c8] sm:$0xff]
    %v4075 = vld [vmem:[#allocation11 + $0x1d0] sm:$0xff]
    %v4076 = vld [vmem:[#allocation11 + $0x1d8] sm:$0xff]
    %v4077 = vld [vmem:[#allocation11 + $0x1e0] sm:$0xff]
    %v4078 = vld [vmem:[#allocation11 + $0x1e8] sm:$0xff]
    %v4079 = vld [vmem:[#allocation11 + $0x1f0] sm:$0xff]
    %v4080 = vld [vmem:[#allocation11 + $0x1f8] sm:$0xff]
    %v4081 = vld [vmem:[#allocation13] sm:$0x1]
    %v4083 = vlaneseq
    %v4084 = vshrl.u32 %v4083, 7
    %v4085 = vsub.s32 0, %v4084
    %v4086 = vrot.slane %v4081, %v4085
    %4088 = vmatprep.subr.mxu0 0.0
    %4089 = vmatpush1.msra.mxu0 %v4032
    %4090 = vmatprep.subr.mxu0 0.0
    %4091 = vmatpush1.msra.mxu0 %v4031
    %4092 = vmatprep.subr.mxu0 0.0
    %4093 = vmatpush1.msra.mxu0 %v4030
    %4094 = vmatprep.subr.mxu0 0.0
    %4095 = vmatpush1.msra.mxu0 %v4029
    %4096 = vmatprep.subr.mxu0 0.0
    %4097 = vmatpush1.msra.mxu0 %v4028
    %4098 = vmatprep.subr.mxu0 0.0
    %4099 = vmatpush1.msra.mxu0 %v4027
    %4100 = vmatprep.subr.mxu0 0.0
    %4101 = vmatpush1.msra.mxu0 %v4026
    %4102 = vmatprep.subr.mxu0 0.0
    %4103 = vmatpush1.msra.mxu0 %v4025
    %4104 = vmatprep.subr.mxu0 0.0
    %4105 = vmatpush1.msra.mxu0 %v4024
    %4106 = vmatprep.subr.mxu0 0.0
    %4107 = vmatpush1.msra.mxu0 %v4023
    %4108 = vmatprep.subr.mxu0 0.0
    %4109 = vmatpush1.msra.mxu0 %v4022
    %4110 = vmatprep.subr.mxu0 0.0
    %4111 = vmatpush1.msra.mxu0 %v4021
    %4112 = vmatprep.subr.mxu0 0.0
    %4113 = vmatpush1.msra.mxu0 %v4020
    %4114 = vmatprep.subr.mxu0 0.0
    %4115 = vmatpush1.msra.mxu0 %v4019
    %4116 = vmatprep.subr.mxu0 0.0
    %4117 = vmatpush1.msra.mxu0 %v4018
    %4118 = vmatprep.subr.mxu0 0.0
    %4119 = vmatpush1.msra.mxu0 %v4017
    %4120 = vmatprep.subr.mxu0 0.0
    %4121 = vmatpush2.msra.mxu0 %v4048
    %4122 = vmatprep.subr.mxu0 0.0
    %4123 = vmatpush2.msra.mxu0 %v4047
    %4124 = vmatprep.subr.mxu0 0.0
    %4125 = vmatpush2.msra.mxu0 %v4046
    %4126 = vmatprep.subr.mxu0 0.0
    %4127 = vmatpush2.msra.mxu0 %v4045
    %4128 = vmatprep.subr.mxu0 0.0
    %4129 = vmatpush2.msra.mxu0 %v4044
    %4130 = vmatprep.subr.mxu0 0.0
    %4131 = vmatpush2.msra.mxu0 %v4043
    %4132 = vmatprep.subr.mxu0 0.0
    %4133 = vmatpush2.msra.mxu0 %v4042
    %4134 = vmatprep.subr.mxu0 0.0
    %4135 = vmatpush2.msra.mxu0 %v4041
    %4136 = vmatprep.subr.mxu0 0.0
    %4137 = vmatpush2.msra.mxu0 %v4040
    %4138 = vmatprep.subr.mxu0 0.0
    %4139 = vmatpush2.msra.mxu0 %v4039
    %4140 = vmatprep.subr.mxu0 0.0
    %4141 = vmatpush2.msra.mxu0 %v4038
    %4142 = vmatprep.subr.mxu0 0.0
    %4143 = vmatpush2.msra.mxu0 %v4037
    %4144 = vmatprep.subr.mxu0 0.0
    %4145 = vmatpush2.msra.mxu0 %v4036
    %4146 = vmatprep.subr.mxu0 0.0
    %4147 = vmatpush2.msra.mxu0 %v4035
    %4148 = vmatprep.subr.mxu0 0.0
    %4149 = vmatpush2.msra.mxu0 %v4034
    %4150 = vmatprep.subr.mxu0 0.0
    %4151 = vmatpush2.msra.mxu0 %v4033
    %4152 = vmatprep.mubr.f32.mxu0 %v4014
    %4153 = vmatmul.mubr.f32.gmra.mxu0 %v4013
    %v4154 = vpop.f32.mrf.mxu0
    %v4155 = vadd.f32 %v4086, %v4154
    %v4156 = vpop.f32.mrf.mxu0
    %4157 = vdwg.mxu0
    %4158 = vmatprep.subr.mxu0 0.0
    %4159 = vmatpush1.msra.mxu0 %v4064
    %4160 = vmatprep.subr.mxu0 0.0
    %4161 = vmatpush1.msra.mxu0 %v4063
    %4162 = vmatprep.subr.mxu0 0.0
    %4163 = vmatpush1.msra.mxu0 %v4062
    %4164 = vmatprep.subr.mxu0 0.0
    %4165 = vmatpush1.msra.mxu0 %v4061
    %4166 = vmatprep.subr.mxu0 0.0
    %4167 = vmatpush1.msra.mxu0 %v4060
    %4168 = vmatprep.subr.mxu0 0.0
    %4169 = vmatpush1.msra.mxu0 %v4059
    %4170 = vmatprep.subr.mxu0 0.0
    %4171 = vmatpush1.msra.mxu0 %v4058
    %4172 = vmatprep.subr.mxu0 0.0
    %4173 = vmatpush1.msra.mxu0 %v4057
    %4174 = vmatprep.subr.mxu0 0.0
    %4175 = vmatpush1.msra.mxu0 %v4056
    %4176 = vmatprep.subr.mxu0 0.0
    %4177 = vmatpush1.msra.mxu0 %v4055
    %4178 = vmatprep.subr.mxu0 0.0
    %4179 = vmatpush1.msra.mxu0 %v4054
    %4180 = vmatprep.subr.mxu0 0.0
    %4181 = vmatpush1.msra.mxu0 %v4053
    %4182 = vmatprep.subr.mxu0 0.0
    %4183 = vmatpush1.msra.mxu0 %v4052
    %4184 = vmatprep.subr.mxu0 0.0
    %4185 = vmatpush1.msra.mxu0 %v4051
    %4186 = vmatprep.subr.mxu0 0.0
    %4187 = vmatpush1.msra.mxu0 %v4050
    %4188 = vmatprep.subr.mxu0 0.0
    %4189 = vmatpush1.msra.mxu0 %v4049
    %4190 = vmatprep.subr.mxu0 0.0
    %4191 = vmatpush2.msra.mxu0 %v4080
    %4192 = vmatprep.subr.mxu0 0.0
    %4193 = vmatpush2.msra.mxu0 %v4079
    %4194 = vmatprep.subr.mxu0 0.0
    %4195 = vmatpush2.msra.mxu0 %v4078
    %4196 = vmatprep.subr.mxu0 0.0
    %4197 = vmatpush2.msra.mxu0 %v4077
    %4198 = vmatprep.subr.mxu0 0.0
    %4199 = vmatpush2.msra.mxu0 %v4076
    %4200 = vmatprep.subr.mxu0 0.0
    %4201 = vmatpush2.msra.mxu0 %v4075
    %4202 = vmatprep.subr.mxu0 0.0
    %4203 = vmatpush2.msra.mxu0 %v4074
    %4204 = vmatprep.subr.mxu0 0.0
    %4205 = vmatpush2.msra.mxu0 %v4073
    %4206 = vmatprep.subr.mxu0 0.0
    %4207 = vmatpush2.msra.mxu0 %v4072
    %4208 = vmatprep.subr.mxu0 0.0
    %4209 = vmatpush2.msra.mxu0 %v4071
    %4210 = vmatprep.subr.mxu0 0.0
    %4211 = vmatpush2.msra.mxu0 %v4070
    %4212 = vmatprep.subr.mxu0 0.0
    %4213 = vmatpush2.msra.mxu0 %v4069
    %4214 = vmatprep.subr.mxu0 0.0
    %4215 = vmatpush2.msra.mxu0 %v4068
    %4216 = vmatprep.subr.mxu0 0.0
    %4217 = vmatpush2.msra.mxu0 %v4067
    %4218 = vmatprep.subr.mxu0 0.0
    %4219 = vmatpush2.msra.mxu0 %v4066
    %4220 = vmatprep.subr.mxu0 0.0
    %4221 = vmatpush2.msra.mxu0 %v4065
    %4222 = vmatprep.mubr.f32.mxu0 %v4016
    %4223 = vmatmul.mubr.f32.gmra.mxu0 %v4015
    %v4224 = vpop.f32.mrf.mxu0
    %v4225 = vadd.f32 %v4155, %v4224
    %v4226 = vpop.f32.mrf.mxu0
    %4227 = vdwg.mxu0
    %v4228 = vlaneseq
    %v4229 = vand.u32 %v4228, 127
    %vm4230 = vcmp.lt.s32.totalorder %v4229, 4
    %v4231 = vmul.f32 %v4225, %v4225
    %v4232 = vsel %vm4230, %v4231, 0.0
    %4233 = vadd.xlane.f32.xlu0 %v4232
    %v4234 = vpop.xlane.xlu0 %4233
    %v4235 = vmax.f32 %v4234, 1e-24
    %v4236 = vrsqrt.pop %v4235
    %v4237 = vmul.f32 %v4225, %v4236
    %v4238 = vsel %vm4230, %v4237, %v4225
    %4239 = vst [vmem:[#allocation14] sm:$0xff] %v4238
    // Predicated region
    $region58: #{tpu_custom_call.1} parent=1 // pred_check
      _
    $region59: #{tpu_custom_call.1} parent=1 // pred_check_branch
      %4241 = sbr.rel (0) target = $region61
    $region60: #{tpu_custom_call.1} parent=1 // pred_region
      %s4243 = ssub.s32 128, 128
      %4244 = vsyncadd [#allocation4], %s4243
      %s4246 = sshll.u32 [#allocation14], 4
      %s4247 = int_to_ptr.vmem [resolvable:$true] %s4246
      %4249 = dma.vmem_to_hbm [thread:$0]  %s4247, 128, %s7, [#allocation4]
    $region61: #{tpu_custom_call.1} parent=1 // pred_fallthru
      _
    // Predicated region
    $region62: #{tpu_custom_call.1} parent=1 // pred_check
      _
    $region63: #{tpu_custom_call.1} parent=1 // pred_check_branch
      %4251 = sbr.rel (0) target = $region65
    $region64: #{tpu_custom_call.1} parent=1 // pred_region
      %4252 = dma.done [#allocation4], 128
    $region65: #{tpu_custom_call.1} parent=1 // pred_fallthru
      _
    %4253 = vsyncpa [#allocation3], 1
    %4254 = vsyncpa [#allocation6], 1
    %4255 = vsyncpa [#allocation9], 1
    %4256 = vsyncpa [#allocation12], 1
    %4257 = vsyncpa [#allocation4], 1

</llo_original>
